<compile_context>
chip_gen: v7x
topology: tpu7x:2x2x1
jax: 0.10.0
libtpu: 0.0.40
codegen_flags: <defaults>
</compile_context>

<pallas_src>
import functools

import jax
import jax.numpy as jnp
from jax import lax
from jax.experimental import pallas as pl
from jax.experimental.pallas import tpu as pltpu

EPS = 1e-5
LANE = 128


def _round_up(x, m):
    return (x + m - 1) // m * m


# ------------------------------ Pallas kernel ------------------------------ #
def _fused_kernel(top_ref, bot_ref,
                  w_top_ref, w_bot_ref, w_fin_top_ref, w_fin_bot_ref,
                  bias_top_ref, bias_bot_ref,
                  out_ref):
    # top_ref:   (1, H+2, W+2, Ctp) bf16  zero-padded top frame (resident per batch)
    # bot_ref:   (1, H+2, W+2, Cbp) bf16  zero-padded, bilinearly-resized bottom frame
    # w_top_ref: (9, Ctp, Ctp)      bf16  3x3 taps [ky*3+kx, cin, cout], BN scale folded
    # w_bot_ref: (9, Cbp, Ctp)      bf16
    # w_fin_*:   (Ctp, Ctp)         bf16  halves of the 1x1 fusion conv, [cin, cout]
    # bias_*:    (1, Ctp)           f32   folded BatchNorm biases
    # out_ref:   (1, TH, W, Ctp)    f32
    t = pl.program_id(1)
    th, w_out, ctp = out_ref.shape[1], out_ref.shape[2], out_ref.shape[3]
    row0 = t * th
    if th % 8 == 0:
        row0 = pl.multiple_of(row0, 8)

    def conv3x3_bn_relu(x_ref, w_taps_ref, bias_ref):
        cin = x_ref.shape[-1]
        acc = None
        for ky in range(3):
            # Leading-dim (non-tiled) dynamic slice of the resident padded frame
            # -> (TH, W+2, cin).  Stage in f32 so the kx window shift below is a
            # plain 32-bit sublane relayout (no packed-bf16 odd-offset shifts);
            # negligible VPU cost vs the MXU work.
            slab = x_ref[0, pl.ds(row0 + ky, th), :, :].astype(jnp.float32)
            for kx in range(3):
                tile = slab[:, kx:kx + w_out, :].reshape(th * w_out, cin)
                d = jnp.dot(tile.astype(jnp.bfloat16), w_taps_ref[ky * 3 + kx],
                            preferred_element_type=jnp.float32)
                acc = d if acc is None else acc + d
        # folded BN bias + ReLU, once per branch.
        return jnp.maximum(acc + bias_ref[...], 0.0)          # (TH*W, Ctp) f32

    top = conv3x3_bn_relu(top_ref, w_top_ref, bias_top_ref)
    bot = conv3x3_bn_relu(bot_ref, w_bot_ref, bias_bot_ref)

    # Final 1x1 conv on the (never materialized) channel concat, then ReLU.
    fin = jnp.dot(top.astype(jnp.bfloat16), w_fin_top_ref[...],
                  preferred_element_type=jnp.float32)
    fin = fin + jnp.dot(bot.astype(jnp.bfloat16), w_fin_bot_ref[...],
                        preferred_element_type=jnp.float32)
    fin = jnp.maximum(fin, 0.0)
    out_ref[0] = fin.reshape(th, w_out, ctp).astype(out_ref.dtype)


# ------------------ glue: torch-style bilinear (NHWC) ---------------------- #
def _bilinear_resize_nhwc(x, out_h, out_w):
    """F.interpolate(mode='bilinear', align_corners=False) on NHWC input."""
    n, in_h, in_w, c = x.shape
    if (in_h, in_w) == (out_h, out_w):
        return x

    def src_idx(out_size, in_size):
        scale = in_size / out_size
        s = (jnp.arange(out_size, dtype=jnp.float32) + 0.5) * scale - 0.5
        s = jnp.maximum(s, 0.0)
        i0 = jnp.minimum(jnp.floor(s).astype(jnp.int32), in_size - 1)
        i1 = jnp.minimum(i0 + 1, in_size - 1)
        w1 = s - i0.astype(jnp.float32)
        return i0, i1, 1.0 - w1, w1

    y0, y1, wy0, wy1 = src_idx(out_h, in_h)
    x0, x1, wx0, wx1 = src_idx(out_w, in_w)
    r0 = x[:, y0, :, :]
    r1 = x[:, y1, :, :]
    rows = r0 * wy0[None, :, None, None] + r1 * wy1[None, :, None, None]
    c0 = rows[:, :, x0, :]
    c1 = rows[:, :, x1, :]
    return c0 * wx0[None, None, :, None] + c1 * wx1[None, None, :, None]


# ------------------------------- parameters -------------------------------- #
def init_params(key, top_channels, bottom_channels):
    Ct, Cb = top_channels, bottom_channels
    ks = jax.random.split(key, 11)
    w_top = 0.1 * jax.random.normal(ks[0], (Ct, Ct, 3, 3), jnp.float32)       # OIHW
    w_bot = 0.1 * jax.random.normal(ks[1], (Ct, Cb, 3, 3), jnp.float32)       # OIHW
    w_fin = 0.1 * jax.random.normal(ks[2], (Ct, 2 * Ct, 1, 1), jnp.float32)   # OIHW

    gamma_t = 1.0 + 0.1 * jax.random.normal(ks[3], (Ct,), jnp.float32)
    beta_t = 0.1 * jax.random.normal(ks[4], (Ct,), jnp.float32)
    mean_t = 0.1 * jax.random.normal(ks[5], (Ct,), jnp.float32)
    var_t = 0.5 + jnp.abs(jax.random.normal(ks[6], (Ct,), jnp.float32))
    gamma_b = 1.0 + 0.1 * jax.random.normal(ks[7], (Ct,), jnp.float32)
    beta_b = 0.1 * jax.random.normal(ks[8], (Ct,), jnp.float32)
    mean_b = 0.1 * jax.random.normal(ks[9], (Ct,), jnp.float32)
    var_b = 0.5 + jnp.abs(jax.random.normal(ks[10], (Ct,), jnp.float32))

    return dict(w_top=w_top, w_bot=w_bot, w_fin=w_fin,
                gamma_t=gamma_t, beta_t=beta_t, mean_t=mean_t, var_t=var_t,
                gamma_b=gamma_b, beta_b=beta_b, mean_b=mean_b, var_b=var_b)


def prepare_kernel_params(p):
    """Fold BN into the weights, pad channels to lane multiples, cast to bf16."""
    w_top, w_bot, w_fin = p['w_top'], p['w_bot'], p['w_fin']
    Ct = w_top.shape[0]
    Cb = w_bot.shape[1]
    Ctp = _round_up(Ct, LANE)
    Cbp = _round_up(Cb, LANE)

    scale_t = p['gamma_t'] / jnp.sqrt(p['var_t'] + EPS)
    bias_t = p['beta_t'] - p['mean_t'] * scale_t
    scale_b = p['gamma_b'] / jnp.sqrt(p['var_b'] + EPS)
    bias_b = p['beta_b'] - p['mean_b'] * scale_b

    # 3x3 taps: OIHW -> [ky, kx, cin, cout] -> (9, cin, cout); BN scale folded in.
    wt = jnp.transpose(w_top, (2, 3, 1, 0)).reshape(9, Ct, Ct) * scale_t[None, None, :]
    wb = jnp.transpose(w_bot, (2, 3, 1, 0)).reshape(9, Cb, Ct) * scale_b[None, None, :]

    # 1x1 fusion conv split into top/bottom input halves, [cin, cout].
    wf = w_fin[:, :, 0, 0]                        # (Ct, 2Ct)  [cout, cin]
    wf_top = jnp.transpose(wf[:, :Ct], (1, 0))
    wf_bot = jnp.transpose(wf[:, Ct:], (1, 0))

    def pad2(a, r, c):
        return jnp.pad(a, ((0, r - a.shape[0]), (0, c - a.shape[1])))

    def pad3(a, r, c):
        return jnp.pad(a, ((0, 0), (0, r - a.shape[1]), (0, c - a.shape[2])))

    kp = dict(
        w_top_taps=pad3(wt, Ctp, Ctp).astype(jnp.bfloat16),
        w_bot_taps=pad3(wb, Cbp, Ctp).astype(jnp.bfloat16),
        w_fin_top=pad2(wf_top, Ctp, Ctp).astype(jnp.bfloat16),
        w_fin_bot=pad2(wf_bot, Ctp, Ctp).astype(jnp.bfloat16),
        bias_top=jnp.pad(bias_t, (0, Ctp - Ct)).reshape(1, Ctp).astype(jnp.float32),
        bias_bot=jnp.pad(bias_b, (0, Ctp - Ct)).reshape(1, Ctp).astype(jnp.float32),
    )
    return kp, Ctp, Cbp


def _pick_row_tile(h, w, target_rows=512):
    best = 1
    for d in range(1, h + 1):
        if h % d == 0 and d * w <= target_rows:
            best = d
    return best


# --------------------------------- wrapper --------------------------------- #
def feature_fused_concat(top_nchw, bot_nchw, params, *, row_tile=None):
    N, Ct, H, W = top_nchw.shape
    # In production, fold/pad the weights once at load time instead of per call.
    kp, Ctp, Cbp = prepare_kernel_params(params)

    th = row_tile if row_tile is not None else _pick_row_tile(H, W)
    assert H % th == 0, (H, th)
    n_tiles = H // th

    # glue: NCHW -> NHWC (interface mirrors the PyTorch module; keep NHWC
    # end-to-end in a real graph), bilinear resize (align_corners=False),
    # 1-pixel spatial zero pad, channel pad to lane multiples, bf16 cast.
    top_nhwc = jnp.transpose(top_nchw, (0, 2, 3, 1))
    bot_nhwc = _bilinear_resize_nhwc(jnp.transpose(bot_nchw, (0, 2, 3, 1)), H, W)

    def pad_frame(x, cp):
        c = x.shape[-1]
        x = jnp.pad(x, ((0, 0), (1, 1), (1, 1), (0, cp - c)))
        return x.astype(jnp.bfloat16)

    top_pad = pad_frame(top_nhwc, Ctp)            # (N, H+2, W+2, Ctp) bf16
    bot_pad = pad_frame(bot_nhwc, Cbp)            # (N, H+2, W+2, Cbp) bf16

    # VMEM budget: double-buffered bf16 frames + resident weights + f32 tiles
    # (staged slabs, branch activations, output tile).
    frame = (H + 2) * (W + 2)
    est = (2 * frame * (Ctp + Cbp) * 2
           + 2 * (9 * Ctp * Ctp + 9 * Cbp * Ctp + 2 * Ctp * Ctp) * 2
           + 2 * th * W * Ctp * 4
           + 6 * th * (W + 2) * max(Ctp, Cbp) * 4)
    vmem_limit = int(min(max(32 * 1024 * 1024, 2 * est), 48 * 1024 * 1024))

    out_nhwc = pl.pallas_call(
        _fused_kernel,
        out_shape=jax.ShapeDtypeStruct((N, H, W, Ctp), jnp.float32),
        grid_spec=pltpu.PrefetchScalarGridSpec(
            num_scalar_prefetch=0,
            grid=(N, n_tiles),
            in_specs=[
                pl.BlockSpec((1, H + 2, W + 2, Ctp), lambda n, t: (n, 0, 0, 0)),
                pl.BlockSpec((1, H + 2, W + 2, Cbp), lambda n, t: (n, 0, 0, 0)),
                pl.BlockSpec((9, Ctp, Ctp), lambda n, t: (0, 0, 0)),
                pl.BlockSpec((9, Cbp, Ctp), lambda n, t: (0, 0, 0)),
                pl.BlockSpec((Ctp, Ctp), lambda n, t: (0, 0)),
                pl.BlockSpec((Ctp, Ctp), lambda n, t: (0, 0)),
                pl.BlockSpec((1, Ctp), lambda n, t: (0, 0)),
                pl.BlockSpec((1, Ctp), lambda n, t: (0, 0)),
            ],
            out_specs=pl.BlockSpec((1, th, W, Ctp), lambda n, t: (n, t, 0, 0)),
        ),
        compiler_params=pltpu.CompilerParams(
            dimension_semantics=("parallel", "parallel"),
            vmem_limit_bytes=vmem_limit),
    )(top_pad, bot_pad,
      kp['w_top_taps'], kp['w_bot_taps'],
      kp['w_fin_top'], kp['w_fin_bot'],
      kp['bias_top'], kp['bias_bot'])

    out_nhwc = out_nhwc[:, :, :, :Ct]             # drop lane padding
    return jnp.transpose(out_nhwc, (0, 3, 1, 2))  # back to NCHW (PyTorch interface)


# ----------------------------- pure-JAX reference -------------------------- #
def reference_forward(top_nchw, bot_nchw, p):
    dn = ('NCHW', 'OIHW', 'NCHW')
    scale_t = p['gamma_t'] / jnp.sqrt(p['var_t'] + EPS)
    bias_t = p['beta_t'] - p['mean_t'] * scale_t
    scale_b = p['gamma_b'] / jnp.sqrt(p['var_b'] + EPS)
    bias_b = p['beta_b'] - p['mean_b'] * scale_b

    top = lax.conv_general_dilated(top_nchw, p['w_top'], (1, 1), ((1, 1), (1, 1)),
                                   dimension_numbers=dn,
                                   precision=lax.Precision.HIGHEST)
    top = jnp.maximum(top * scale_t[None, :, None, None]
                      + bias_t[None, :, None, None], 0.0)

    H, W = top_nchw.shape[2], top_nchw.shape[3]
    bot_r = jnp.transpose(
        _bilinear_resize_nhwc(jnp.transpose(bot_nchw, (0, 2, 3, 1)), H, W),
        (0, 3, 1, 2))
    bot = lax.conv_general_dilated(bot_r, p['w_bot'], (1, 1), ((1, 1), (1, 1)),
                                   dimension_numbers=dn,
                                   precision=lax.Precision.HIGHEST)
    bot = jnp.maximum(bot * scale_b[None, :, None, None]
                      + bias_b[None, :, None, None], 0.0)

    cat = jnp.concatenate([top, bot], axis=1)
    out = lax.conv_general_dilated(cat, p['w_fin'], (1, 1), ((0, 0), (0, 0)),
                                   dimension_numbers=dn,
                                   precision=lax.Precision.HIGHEST)
    return jnp.maximum(out, 0.0)


if __name__ == "__main__":
    key = jax.random.PRNGKey(0)
    k_top, k_bot, k_param = jax.random.split(key, 3)

    N, Ct, Cb, H, W = 2, 4, 8, 16, 16          # top_channels=4, bottom_channels=8
    top_feature = jax.random.normal(k_top, (N, Ct, H, W), jnp.float32)
    bottom_feature = jax.random.normal(k_bot, (N, Cb, H // 2, W // 2), jnp.float32)
    params = init_params(k_param, Ct, Cb)

    # row_tile=8 -> grid (2 batches x 2 row tiles), exercises the tiled path.
    fwd = jax.jit(functools.partial(feature_fused_concat, row_tile=8))
    out = fwd(top_feature, bottom_feature, params)
    out = jax.block_until_ready(out)

    ref = reference_forward(top_feature, bottom_feature, params)
    assert out.shape == (N, Ct, H, W), out.shape
    max_err = float(jnp.max(jnp.abs(out - ref)))
    # bf16 activations/weights with f32 accumulation => ~1e-3 .. 1e-2 abs error
    # vs the f32 HIGHEST-precision reference.
    assert jnp.allclose(out, ref, atol=3e-2, rtol=2e-2), max_err

    print("KERNEL_OK")
</pallas_src>

<mosaic_0001>
module attributes {stable_mosaic.version = 11 : i64} {
  func.func @_fused_kernel(%arg0: i32, %arg1: i32, %arg2: memref<1x18x18x128xbf16, #tpu.memory_space<vmem>>, %arg3: memref<1x18x18x128xbf16, #tpu.memory_space<vmem>>, %arg4: memref<9x128x128xbf16, #tpu.memory_space<vmem>>, %arg5: memref<9x128x128xbf16, #tpu.memory_space<vmem>>, %arg6: memref<128x128xbf16, #tpu.memory_space<vmem>>, %arg7: memref<128x128xbf16, #tpu.memory_space<vmem>>, %arg8: memref<1x128xf32, #tpu.memory_space<vmem>>, %arg9: memref<1x128xf32, #tpu.memory_space<vmem>>, %arg10: memref<1x8x16x128xf32, #tpu.memory_space<vmem>>) attributes {dimension_semantics = [#tpu.dimension_semantics<parallel>, #tpu.dimension_semantics<parallel>], iteration_bounds = array<i64: 2, 2>, scalar_prefetch = 0 : i64, scratch_operands = 0 : i64, tpu.core_type = #tpu.core_type<tc>, window_params = [{transform_indices = @transform_0, window_bounds = array<i64: 1, 18, 18, 128>}, {transform_indices = @transform_1, window_bounds = array<i64: 1, 18, 18, 128>}, {pipeline_mode = #tpu.pipeline_mode<synchronous>, transform_indices = @transform_2, window_bounds = array<i64: 9, 128, 128>}, {pipeline_mode = #tpu.pipeline_mode<synchronous>, transform_indices = @transform_3, window_bounds = array<i64: 9, 128, 128>}, {pipeline_mode = #tpu.pipeline_mode<synchronous>, transform_indices = @transform_4, window_bounds = array<i64: 128, 128>}, {pipeline_mode = #tpu.pipeline_mode<synchronous>, transform_indices = @transform_5, window_bounds = array<i64: 128, 128>}, {pipeline_mode = #tpu.pipeline_mode<synchronous>, transform_indices = @transform_6, window_bounds = array<i64: 1, 128>}, {pipeline_mode = #tpu.pipeline_mode<synchronous>, transform_indices = @transform_7, window_bounds = array<i64: 1, 128>}, {transform_indices = @transform_8, window_bounds = array<i64: 1, 8, 16, 128>}]} {
    %c8_i32 = arith.constant 8 : i32
    %0 = arith.muli %arg1, %c8_i32 : i32
    %1 = tpu.assume_multiple %0, 8 : i32
    %c0_i32 = arith.constant 0 : i32
    %2 = arith.addi %1, %c0_i32 : i32
    %c0 = arith.constant 0 : index
    %3 = arith.index_cast %2 : i32 to index
    %c0_0 = arith.constant 0 : index
    %c0_1 = arith.constant 0 : index
    %4 = vector.load %arg2[%c0, %3, %c0_0, %c0_1] : memref<1x18x18x128xbf16, #tpu.memory_space<vmem>>, vector<1x8x18x128xbf16>
    %5 = vector.shape_cast %4 : vector<1x8x18x128xbf16> to vector<8x18x128xbf16>
    %6 = arith.extf %5 : vector<8x18x128xbf16> to vector<8x18x128xf32>
    %7 = vector.extract_strided_slice %6 {offsets = [0, 0, 0], sizes = [8, 16, 128], strides = [1, 1, 1]} : vector<8x18x128xf32> to vector<8x16x128xf32>
    %8 = vector.shape_cast %7 : vector<8x16x128xf32> to vector<128x128xf32>
    %9 = arith.truncf %8 : vector<128x128xf32> to vector<128x128xbf16>
    %c0_2 = arith.constant 0 : index
    %c0_3 = arith.constant 0 : index
    %c0_4 = arith.constant 0 : index
    %10 = vector.load %arg4[%c0_2, %c0_3, %c0_4] : memref<9x128x128xbf16, #tpu.memory_space<vmem>>, vector<1x128x128xbf16>
    %11 = vector.shape_cast %10 : vector<1x128x128xbf16> to vector<128x128xbf16>
    %cst = arith.constant dense<0.000000e+00> : vector<128x128xf32>
    %12 = tpu.matmul %9, %11, %cst {dimension_numbers = #tpu.dot_dimension_numbers<[1], [0], [0], [1], [0, 0, 1, 1], [], []>} : vector<128x128xbf16>, vector<128x128xbf16>, vector<128x128xf32> -> vector<128x128xf32>
    %13 = vector.extract_strided_slice %6 {offsets = [0, 1, 0], sizes = [8, 16, 128], strides = [1, 1, 1]} : vector<8x18x128xf32> to vector<8x16x128xf32>
    %14 = vector.shape_cast %13 : vector<8x16x128xf32> to vector<128x128xf32>
    %15 = arith.truncf %14 : vector<128x128xf32> to vector<128x128xbf16>
    %c1 = arith.constant 1 : index
    %c0_5 = arith.constant 0 : index
    %c0_6 = arith.constant 0 : index
    %16 = vector.load %arg4[%c1, %c0_5, %c0_6] : memref<9x128x128xbf16, #tpu.memory_space<vmem>>, vector<1x128x128xbf16>
    %17 = vector.shape_cast %16 : vector<1x128x128xbf16> to vector<128x128xbf16>
    %cst_7 = arith.constant dense<0.000000e+00> : vector<128x128xf32>
    %18 = tpu.matmul %15, %17, %cst_7 {dimension_numbers = #tpu.dot_dimension_numbers<[1], [0], [0], [1], [0, 0, 1, 1], [], []>} : vector<128x128xbf16>, vector<128x128xbf16>, vector<128x128xf32> -> vector<128x128xf32>
    %19 = arith.addf %12, %18 : vector<128x128xf32>
    %20 = vector.extract_strided_slice %6 {offsets = [0, 2, 0], sizes = [8, 16, 128], strides = [1, 1, 1]} : vector<8x18x128xf32> to vector<8x16x128xf32>
    %21 = vector.shape_cast %20 : vector<8x16x128xf32> to vector<128x128xf32>
    %22 = arith.truncf %21 : vector<128x128xf32> to vector<128x128xbf16>
    %c2 = arith.constant 2 : index
    %c0_8 = arith.constant 0 : index
    %c0_9 = arith.constant 0 : index
    %23 = vector.load %arg4[%c2, %c0_8, %c0_9] : memref<9x128x128xbf16, #tpu.memory_space<vmem>>, vector<1x128x128xbf16>
    %24 = vector.shape_cast %23 : vector<1x128x128xbf16> to vector<128x128xbf16>
    %cst_10 = arith.constant dense<0.000000e+00> : vector<128x128xf32>
    %25 = tpu.matmul %22, %24, %cst_10 {dimension_numbers = #tpu.dot_dimension_numbers<[1], [0], [0], [1], [0, 0, 1, 1], [], []>} : vector<128x128xbf16>, vector<128x128xbf16>, vector<128x128xf32> -> vector<128x128xf32>
    %26 = arith.addf %19, %25 : vector<128x128xf32>
    %c1_i32 = arith.constant 1 : i32
    %27 = arith.addi %1, %c1_i32 : i32
    %c0_11 = arith.constant 0 : index
    %28 = arith.index_cast %27 : i32 to index
    %c0_12 = arith.constant 0 : index
    %c0_13 = arith.constant 0 : index
    %29 = vector.load %arg2[%c0_11, %28, %c0_12, %c0_13] : memref<1x18x18x128xbf16, #tpu.memory_space<vmem>>, vector<1x8x18x128xbf16>
    %30 = vector.shape_cast %29 : vector<1x8x18x128xbf16> to vector<8x18x128xbf16>
    %31 = arith.extf %30 : vector<8x18x128xbf16> to vector<8x18x128xf32>
    %32 = vector.extract_strided_slice %31 {offsets = [0, 0, 0], sizes = [8, 16, 128], strides = [1, 1, 1]} : vector<8x18x128xf32> to vector<8x16x128xf32>
    %33 = vector.shape_cast %32 : vector<8x16x128xf32> to vector<128x128xf32>
    %34 = arith.truncf %33 : vector<128x128xf32> to vector<128x128xbf16>
    %c3 = arith.constant 3 : index
    %c0_14 = arith.constant 0 : index
    %c0_15 = arith.constant 0 : index
    %35 = vector.load %arg4[%c3, %c0_14, %c0_15] : memref<9x128x128xbf16, #tpu.memory_space<vmem>>, vector<1x128x128xbf16>
    %36 = vector.shape_cast %35 : vector<1x128x128xbf16> to vector<128x128xbf16>
    %cst_16 = arith.constant dense<0.000000e+00> : vector<128x128xf32>
    %37 = tpu.matmul %34, %36, %cst_16 {dimension_numbers = #tpu.dot_dimension_numbers<[1], [0], [0], [1], [0, 0, 1, 1], [], []>} : vector<128x128xbf16>, vector<128x128xbf16>, vector<128x128xf32> -> vector<128x128xf32>
    %38 = arith.addf %26, %37 : vector<128x128xf32>
    %39 = vector.extract_strided_slice %31 {offsets = [0, 1, 0], sizes = [8, 16, 128], strides = [1, 1, 1]} : vector<8x18x128xf32> to vector<8x16x128xf32>
    %40 = vector.shape_cast %39 : vector<8x16x128xf32> to vector<128x128xf32>
    %41 = arith.truncf %40 : vector<128x128xf32> to vector<128x128xbf16>
    %c4 = arith.constant 4 : index
    %c0_17 = arith.constant 0 : index
    %c0_18 = arith.constant 0 : index
    %42 = vector.load %arg4[%c4, %c0_17, %c0_18] : memref<9x128x128xbf16, #tpu.memory_space<vmem>>, vector<1x128x128xbf16>
    %43 = vector.shape_cast %42 : vector<1x128x128xbf16> to vector<128x128xbf16>
    %cst_19 = arith.constant dense<0.000000e+00> : vector<128x128xf32>
    %44 = tpu.matmul %41, %43, %cst_19 {dimension_numbers = #tpu.dot_dimension_numbers<[1], [0], [0], [1], [0, 0, 1, 1], [], []>} : vector<128x128xbf16>, vector<128x128xbf16>, vector<128x128xf32> -> vector<128x128xf32>
    %45 = arith.addf %38, %44 : vector<128x128xf32>
    %46 = vector.extract_strided_slice %31 {offsets = [0, 2, 0], sizes = [8, 16, 128], strides = [1, 1, 1]} : vector<8x18x128xf32> to vector<8x16x128xf32>
    %47 = vector.shape_cast %46 : vector<8x16x128xf32> to vector<128x128xf32>
    %48 = arith.truncf %47 : vector<128x128xf32> to vector<128x128xbf16>
    %c5 = arith.constant 5 : index
    %c0_20 = arith.constant 0 : index
    %c0_21 = arith.constant 0 : index
    %49 = vector.load %arg4[%c5, %c0_20, %c0_21] : memref<9x128x128xbf16, #tpu.memory_space<vmem>>, vector<1x128x128xbf16>
    %50 = vector.shape_cast %49 : vector<1x128x128xbf16> to vector<128x128xbf16>
    %cst_22 = arith.constant dense<0.000000e+00> : vector<128x128xf32>
    %51 = tpu.matmul %48, %50, %cst_22 {dimension_numbers = #tpu.dot_dimension_numbers<[1], [0], [0], [1], [0, 0, 1, 1], [], []>} : vector<128x128xbf16>, vector<128x128xbf16>, vector<128x128xf32> -> vector<128x128xf32>
    %52 = arith.addf %45, %51 : vector<128x128xf32>
    %c2_i32 = arith.constant 2 : i32
    %53 = arith.addi %1, %c2_i32 : i32
    %c0_23 = arith.constant 0 : index
    %54 = arith.index_cast %53 : i32 to index
    %c0_24 = arith.constant 0 : index
    %c0_25 = arith.constant 0 : index
    %55 = vector.load %arg2[%c0_23, %54, %c0_24, %c0_25] : memref<1x18x18x128xbf16, #tpu.memory_space<vmem>>, vector<1x8x18x128xbf16>
    %56 = vector.shape_cast %55 : vector<1x8x18x128xbf16> to vector<8x18x128xbf16>
    %57 = arith.extf %56 : vector<8x18x128xbf16> to vector<8x18x128xf32>
    %58 = vector.extract_strided_slice %57 {offsets = [0, 0, 0], sizes = [8, 16, 128], strides = [1, 1, 1]} : vector<8x18x128xf32> to vector<8x16x128xf32>
    %59 = vector.shape_cast %58 : vector<8x16x128xf32> to vector<128x128xf32>
    %60 = arith.truncf %59 : vector<128x128xf32> to vector<128x128xbf16>
    %c6 = arith.constant 6 : index
    %c0_26 = arith.constant 0 : index
    %c0_27 = arith.constant 0 : index
    %61 = vector.load %arg4[%c6, %c0_26, %c0_27] : memref<9x128x128xbf16, #tpu.memory_space<vmem>>, vector<1x128x128xbf16>
    %62 = vector.shape_cast %61 : vector<1x128x128xbf16> to vector<128x128xbf16>
    %cst_28 = arith.constant dense<0.000000e+00> : vector<128x128xf32>
    %63 = tpu.matmul %60, %62, %cst_28 {dimension_numbers = #tpu.dot_dimension_numbers<[1], [0], [0], [1], [0, 0, 1, 1], [], []>} : vector<128x128xbf16>, vector<128x128xbf16>, vector<128x128xf32> -> vector<128x128xf32>
    %64 = arith.addf %52, %63 : vector<128x128xf32>
    %65 = vector.extract_strided_slice %57 {offsets = [0, 1, 0], sizes = [8, 16, 128], strides = [1, 1, 1]} : vector<8x18x128xf32> to vector<8x16x128xf32>
    %66 = vector.shape_cast %65 : vector<8x16x128xf32> to vector<128x128xf32>
    %67 = arith.truncf %66 : vector<128x128xf32> to vector<128x128xbf16>
    %c7 = arith.constant 7 : index
    %c0_29 = arith.constant 0 : index
    %c0_30 = arith.constant 0 : index
    %68 = vector.load %arg4[%c7, %c0_29, %c0_30] : memref<9x128x128xbf16, #tpu.memory_space<vmem>>, vector<1x128x128xbf16>
    %69 = vector.shape_cast %68 : vector<1x128x128xbf16> to vector<128x128xbf16>
    %cst_31 = arith.constant dense<0.000000e+00> : vector<128x128xf32>
    %70 = tpu.matmul %67, %69, %cst_31 {dimension_numbers = #tpu.dot_dimension_numbers<[1], [0], [0], [1], [0, 0, 1, 1], [], []>} : vector<128x128xbf16>, vector<128x128xbf16>, vector<128x128xf32> -> vector<128x128xf32>
    %71 = arith.addf %64, %70 : vector<128x128xf32>
    %72 = vector.extract_strided_slice %57 {offsets = [0, 2, 0], sizes = [8, 16, 128], strides = [1, 1, 1]} : vector<8x18x128xf32> to vector<8x16x128xf32>
    %73 = vector.shape_cast %72 : vector<8x16x128xf32> to vector<128x128xf32>
    %74 = arith.truncf %73 : vector<128x128xf32> to vector<128x128xbf16>
    %c8 = arith.constant 8 : index
    %c0_32 = arith.constant 0 : index
    %c0_33 = arith.constant 0 : index
    %75 = vector.load %arg4[%c8, %c0_32, %c0_33] : memref<9x128x128xbf16, #tpu.memory_space<vmem>>, vector<1x128x128xbf16>
    %76 = vector.shape_cast %75 : vector<1x128x128xbf16> to vector<128x128xbf16>
    %cst_34 = arith.constant dense<0.000000e+00> : vector<128x128xf32>
    %77 = tpu.matmul %74, %76, %cst_34 {dimension_numbers = #tpu.dot_dimension_numbers<[1], [0], [0], [1], [0, 0, 1, 1], [], []>} : vector<128x128xbf16>, vector<128x128xbf16>, vector<128x128xf32> -> vector<128x128xf32>
    %78 = arith.addf %71, %77 : vector<128x128xf32>
    %c0_35 = arith.constant 0 : index
    %c0_36 = arith.constant 0 : index
    %79 = vector.load %arg8[%c0_35, %c0_36] : memref<1x128xf32, #tpu.memory_space<vmem>>, vector<1x128xf32>
    %80 = vector.broadcast %79 : vector<1x128xf32> to vector<128x128xf32>
    %81 = arith.addf %78, %80 : vector<128x128xf32>
    %cst_37 = arith.constant 0.000000e+00 : f32
    %82 = vector.broadcast %cst_37 : f32 to vector<128x128xf32>
    %83 = arith.maximumf %81, %82 : vector<128x128xf32>
    %c0_i32_38 = arith.constant 0 : i32
    %84 = arith.addi %1, %c0_i32_38 : i32
    %c0_39 = arith.constant 0 : index
    %85 = arith.index_cast %84 : i32 to index
    %c0_40 = arith.constant 0 : index
    %c0_41 = arith.constant 0 : index
    %86 = vector.load %arg3[%c0_39, %85, %c0_40, %c0_41] : memref<1x18x18x128xbf16, #tpu.memory_space<vmem>>, vector<1x8x18x128xbf16>
    %87 = vector.shape_cast %86 : vector<1x8x18x128xbf16> to vector<8x18x128xbf16>
    %88 = arith.extf %87 : vector<8x18x128xbf16> to vector<8x18x128xf32>
    %89 = vector.extract_strided_slice %88 {offsets = [0, 0, 0], sizes = [8, 16, 128], strides = [1, 1, 1]} : vector<8x18x128xf32> to vector<8x16x128xf32>
    %90 = vector.shape_cast %89 : vector<8x16x128xf32> to vector<128x128xf32>
    %91 = arith.truncf %90 : vector<128x128xf32> to vector<128x128xbf16>
    %c0_42 = arith.constant 0 : index
    %c0_43 = arith.constant 0 : index
    %c0_44 = arith.constant 0 : index
    %92 = vector.load %arg5[%c0_42, %c0_43, %c0_44] : memref<9x128x128xbf16, #tpu.memory_space<vmem>>, vector<1x128x128xbf16>
    %93 = vector.shape_cast %92 : vector<1x128x128xbf16> to vector<128x128xbf16>
    %cst_45 = arith.constant dense<0.000000e+00> : vector<128x128xf32>
    %94 = tpu.matmul %91, %93, %cst_45 {dimension_numbers = #tpu.dot_dimension_numbers<[1], [0], [0], [1], [0, 0, 1, 1], [], []>} : vector<128x128xbf16>, vector<128x128xbf16>, vector<128x128xf32> -> vector<128x128xf32>
    %95 = vector.extract_strided_slice %88 {offsets = [0, 1, 0], sizes = [8, 16, 128], strides = [1, 1, 1]} : vector<8x18x128xf32> to vector<8x16x128xf32>
    %96 = vector.shape_cast %95 : vector<8x16x128xf32> to vector<128x128xf32>
    %97 = arith.truncf %96 : vector<128x128xf32> to vector<128x128xbf16>
    %c1_46 = arith.constant 1 : index
    %c0_47 = arith.constant 0 : index
    %c0_48 = arith.constant 0 : index
    %98 = vector.load %arg5[%c1_46, %c0_47, %c0_48] : memref<9x128x128xbf16, #tpu.memory_space<vmem>>, vector<1x128x128xbf16>
    %99 = vector.shape_cast %98 : vector<1x128x128xbf16> to vector<128x128xbf16>
    %cst_49 = arith.constant dense<0.000000e+00> : vector<128x128xf32>
    %100 = tpu.matmul %97, %99, %cst_49 {dimension_numbers = #tpu.dot_dimension_numbers<[1], [0], [0], [1], [0, 0, 1, 1], [], []>} : vector<128x128xbf16>, vector<128x128xbf16>, vector<128x128xf32> -> vector<128x128xf32>
    %101 = arith.addf %94, %100 : vector<128x128xf32>
    %102 = vector.extract_strided_slice %88 {offsets = [0, 2, 0], sizes = [8, 16, 128], strides = [1, 1, 1]} : vector<8x18x128xf32> to vector<8x16x128xf32>
    %103 = vector.shape_cast %102 : vector<8x16x128xf32> to vector<128x128xf32>
    %104 = arith.truncf %103 : vector<128x128xf32> to vector<128x128xbf16>
    %c2_50 = arith.constant 2 : index
    %c0_51 = arith.constant 0 : index
    %c0_52 = arith.constant 0 : index
    %105 = vector.load %arg5[%c2_50, %c0_51, %c0_52] : memref<9x128x128xbf16, #tpu.memory_space<vmem>>, vector<1x128x128xbf16>
    %106 = vector.shape_cast %105 : vector<1x128x128xbf16> to vector<128x128xbf16>
    %cst_53 = arith.constant dense<0.000000e+00> : vector<128x128xf32>
    %107 = tpu.matmul %104, %106, %cst_53 {dimension_numbers = #tpu.dot_dimension_numbers<[1], [0], [0], [1], [0, 0, 1, 1], [], []>} : vector<128x128xbf16>, vector<128x128xbf16>, vector<128x128xf32> -> vector<128x128xf32>
    %108 = arith.addf %101, %107 : vector<128x128xf32>
    %c1_i32_54 = arith.constant 1 : i32
    %109 = arith.addi %1, %c1_i32_54 : i32
    %c0_55 = arith.constant 0 : index
    %110 = arith.index_cast %109 : i32 to index
    %c0_56 = arith.constant 0 : index
    %c0_57 = arith.constant 0 : index
    %111 = vector.load %arg3[%c0_55, %110, %c0_56, %c0_57] : memref<1x18x18x128xbf16, #tpu.memory_space<vmem>>, vector<1x8x18x128xbf16>
    %112 = vector.shape_cast %111 : vector<1x8x18x128xbf16> to vector<8x18x128xbf16>
    %113 = arith.extf %112 : vector<8x18x128xbf16> to vector<8x18x128xf32>
    %114 = vector.extract_strided_slice %113 {offsets = [0, 0, 0], sizes = [8, 16, 128], strides = [1, 1, 1]} : vector<8x18x128xf32> to vector<8x16x128xf32>
    %115 = vector.shape_cast %114 : vector<8x16x128xf32> to vector<128x128xf32>
    %116 = arith.truncf %115 : vector<128x128xf32> to vector<128x128xbf16>
    %c3_58 = arith.constant 3 : index
    %c0_59 = arith.constant 0 : index
    %c0_60 = arith.constant 0 : index
    %117 = vector.load %arg5[%c3_58, %c0_59, %c0_60] : memref<9x128x128xbf16, #tpu.memory_space<vmem>>, vector<1x128x128xbf16>
    %118 = vector.shape_cast %117 : vector<1x128x128xbf16> to vector<128x128xbf16>
    %cst_61 = arith.constant dense<0.000000e+00> : vector<128x128xf32>
    %119 = tpu.matmul %116, %118, %cst_61 {dimension_numbers = #tpu.dot_dimension_numbers<[1], [0], [0], [1], [0, 0, 1, 1], [], []>} : vector<128x128xbf16>, vector<128x128xbf16>, vector<128x128xf32> -> vector<128x128xf32>
    %120 = arith.addf %108, %119 : vector<128x128xf32>
    %121 = vector.extract_strided_slice %113 {offsets = [0, 1, 0], sizes = [8, 16, 128], strides = [1, 1, 1]} : vector<8x18x128xf32> to vector<8x16x128xf32>
    %122 = vector.shape_cast %121 : vector<8x16x128xf32> to vector<128x128xf32>
    %123 = arith.truncf %122 : vector<128x128xf32> to vector<128x128xbf16>
    %c4_62 = arith.constant 4 : index
    %c0_63 = arith.constant 0 : index
    %c0_64 = arith.constant 0 : index
    %124 = vector.load %arg5[%c4_62, %c0_63, %c0_64] : memref<9x128x128xbf16, #tpu.memory_space<vmem>>, vector<1x128x128xbf16>
    %125 = vector.shape_cast %124 : vector<1x128x128xbf16> to vector<128x128xbf16>
    %cst_65 = arith.constant dense<0.000000e+00> : vector<128x128xf32>
    %126 = tpu.matmul %123, %125, %cst_65 {dimension_numbers = #tpu.dot_dimension_numbers<[1], [0], [0], [1], [0, 0, 1, 1], [], []>} : vector<128x128xbf16>, vector<128x128xbf16>, vector<128x128xf32> -> vector<128x128xf32>
    %127 = arith.addf %120, %126 : vector<128x128xf32>
    %128 = vector.extract_strided_slice %113 {offsets = [0, 2, 0], sizes = [8, 16, 128], strides = [1, 1, 1]} : vector<8x18x128xf32> to vector<8x16x128xf32>
    %129 = vector.shape_cast %128 : vector<8x16x128xf32> to vector<128x128xf32>
    %130 = arith.truncf %129 : vector<128x128xf32> to vector<128x128xbf16>
    %c5_66 = arith.constant 5 : index
    %c0_67 = arith.constant 0 : index
    %c0_68 = arith.constant 0 : index
    %131 = vector.load %arg5[%c5_66, %c0_67, %c0_68] : memref<9x128x128xbf16, #tpu.memory_space<vmem>>, vector<1x128x128xbf16>
    %132 = vector.shape_cast %131 : vector<1x128x128xbf16> to vector<128x128xbf16>
    %cst_69 = arith.constant dense<0.000000e+00> : vector<128x128xf32>
    %133 = tpu.matmul %130, %132, %cst_69 {dimension_numbers = #tpu.dot_dimension_numbers<[1], [0], [0], [1], [0, 0, 1, 1], [], []>} : vector<128x128xbf16>, vector<128x128xbf16>, vector<128x128xf32> -> vector<128x128xf32>
    %134 = arith.addf %127, %133 : vector<128x128xf32>
    %c2_i32_70 = arith.constant 2 : i32
    %135 = arith.addi %1, %c2_i32_70 : i32
    %c0_71 = arith.constant 0 : index
    %136 = arith.index_cast %135 : i32 to index
    %c0_72 = arith.constant 0 : index
    %c0_73 = arith.constant 0 : index
    %137 = vector.load %arg3[%c0_71, %136, %c0_72, %c0_73] : memref<1x18x18x128xbf16, #tpu.memory_space<vmem>>, vector<1x8x18x128xbf16>
    %138 = vector.shape_cast %137 : vector<1x8x18x128xbf16> to vector<8x18x128xbf16>
    %139 = arith.extf %138 : vector<8x18x128xbf16> to vector<8x18x128xf32>
    %140 = vector.extract_strided_slice %139 {offsets = [0, 0, 0], sizes = [8, 16, 128], strides = [1, 1, 1]} : vector<8x18x128xf32> to vector<8x16x128xf32>
    %141 = vector.shape_cast %140 : vector<8x16x128xf32> to vector<128x128xf32>
    %142 = arith.truncf %141 : vector<128x128xf32> to vector<128x128xbf16>
    %c6_74 = arith.constant 6 : index
    %c0_75 = arith.constant 0 : index
    %c0_76 = arith.constant 0 : index
    %143 = vector.load %arg5[%c6_74, %c0_75, %c0_76] : memref<9x128x128xbf16, #tpu.memory_space<vmem>>, vector<1x128x128xbf16>
    %144 = vector.shape_cast %143 : vector<1x128x128xbf16> to vector<128x128xbf16>
    %cst_77 = arith.constant dense<0.000000e+00> : vector<128x128xf32>
    %145 = tpu.matmul %142, %144, %cst_77 {dimension_numbers = #tpu.dot_dimension_numbers<[1], [0], [0], [1], [0, 0, 1, 1], [], []>} : vector<128x128xbf16>, vector<128x128xbf16>, vector<128x128xf32> -> vector<128x128xf32>
    %146 = arith.addf %134, %145 : vector<128x128xf32>
    %147 = vector.extract_strided_slice %139 {offsets = [0, 1, 0], sizes = [8, 16, 128], strides = [1, 1, 1]} : vector<8x18x128xf32> to vector<8x16x128xf32>
    %148 = vector.shape_cast %147 : vector<8x16x128xf32> to vector<128x128xf32>
    %149 = arith.truncf %148 : vector<128x128xf32> to vector<128x128xbf16>
    %c7_78 = arith.constant 7 : index
    %c0_79 = arith.constant 0 : index
    %c0_80 = arith.constant 0 : index
    %150 = vector.load %arg5[%c7_78, %c0_79, %c0_80] : memref<9x128x128xbf16, #tpu.memory_space<vmem>>, vector<1x128x128xbf16>
    %151 = vector.shape_cast %150 : vector<1x128x128xbf16> to vector<128x128xbf16>
    %cst_81 = arith.constant dense<0.000000e+00> : vector<128x128xf32>
    %152 = tpu.matmul %149, %151, %cst_81 {dimension_numbers = #tpu.dot_dimension_numbers<[1], [0], [0], [1], [0, 0, 1, 1], [], []>} : vector<128x128xbf16>, vector<128x128xbf16>, vector<128x128xf32> -> vector<128x128xf32>
    %153 = arith.addf %146, %152 : vector<128x128xf32>
    %154 = vector.extract_strided_slice %139 {offsets = [0, 2, 0], sizes = [8, 16, 128], strides = [1, 1, 1]} : vector<8x18x128xf32> to vector<8x16x128xf32>
    %155 = vector.shape_cast %154 : vector<8x16x128xf32> to vector<128x128xf32>
    %156 = arith.truncf %155 : vector<128x128xf32> to vector<128x128xbf16>
    %c8_82 = arith.constant 8 : index
    %c0_83 = arith.constant 0 : index
    %c0_84 = arith.constant 0 : index
    %157 = vector.load %arg5[%c8_82, %c0_83, %c0_84] : memref<9x128x128xbf16, #tpu.memory_space<vmem>>, vector<1x128x128xbf16>
    %158 = vector.shape_cast %157 : vector<1x128x128xbf16> to vector<128x128xbf16>
    %cst_85 = arith.constant dense<0.000000e+00> : vector<128x128xf32>
    %159 = tpu.matmul %156, %158, %cst_85 {dimension_numbers = #tpu.dot_dimension_numbers<[1], [0], [0], [1], [0, 0, 1, 1], [], []>} : vector<128x128xbf16>, vector<128x128xbf16>, vector<128x128xf32> -> vector<128x128xf32>
    %160 = arith.addf %153, %159 : vector<128x128xf32>
    %c0_86 = arith.constant 0 : index
    %c0_87 = arith.constant 0 : index
    %161 = vector.load %arg9[%c0_86, %c0_87] : memref<1x128xf32, #tpu.memory_space<vmem>>, vector<1x128xf32>
    %162 = vector.broadcast %161 : vector<1x128xf32> to vector<128x128xf32>
    %163 = arith.addf %160, %162 : vector<128x128xf32>
    %cst_88 = arith.constant 0.000000e+00 : f32
    %164 = vector.broadcast %cst_88 : f32 to vector<128x128xf32>
    %165 = arith.maximumf %163, %164 : vector<128x128xf32>
    %166 = arith.truncf %83 : vector<128x128xf32> to vector<128x128xbf16>
    %c0_89 = arith.constant 0 : index
    %c0_90 = arith.constant 0 : index
    %167 = vector.load %arg6[%c0_89, %c0_90] : memref<128x128xbf16, #tpu.memory_space<vmem>>, vector<128x128xbf16>
    %cst_91 = arith.constant dense<0.000000e+00> : vector<128x128xf32>
    %168 = tpu.matmul %166, %167, %cst_91 {dimension_numbers = #tpu.dot_dimension_numbers<[1], [0], [0], [1], [0, 0, 1, 1], [], []>} : vector<128x128xbf16>, vector<128x128xbf16>, vector<128x128xf32> -> vector<128x128xf32>
    %169 = arith.truncf %165 : vector<128x128xf32> to vector<128x128xbf16>
    %c0_92 = arith.constant 0 : index
    %c0_93 = arith.constant 0 : index
    %170 = vector.load %arg7[%c0_92, %c0_93] : memref<128x128xbf16, #tpu.memory_space<vmem>>, vector<128x128xbf16>
    %cst_94 = arith.constant dense<0.000000e+00> : vector<128x128xf32>
    %171 = tpu.matmul %169, %170, %cst_94 {dimension_numbers = #tpu.dot_dimension_numbers<[1], [0], [0], [1], [0, 0, 1, 1], [], []>} : vector<128x128xbf16>, vector<128x128xbf16>, vector<128x128xf32> -> vector<128x128xf32>
    %172 = arith.addf %168, %171 : vector<128x128xf32>
    %cst_95 = arith.constant 0.000000e+00 : f32
    %173 = vector.broadcast %cst_95 : f32 to vector<128x128xf32>
    %174 = arith.maximumf %172, %173 : vector<128x128xf32>
    %175 = vector.shape_cast %174 : vector<128x128xf32> to vector<8x16x128xf32>
    %c0_96 = arith.constant 0 : index
    %c0_97 = arith.constant 0 : index
    %c0_98 = arith.constant 0 : index
    %c0_99 = arith.constant 0 : index
    %176 = vector.load %arg10[%c0_96, %c0_97, %c0_98, %c0_99] : memref<1x8x16x128xf32, #tpu.memory_space<vmem>>, vector<1x8x16x128xf32>
    %177 = vector.shape_cast %176 : vector<1x8x16x128xf32> to vector<8x16x128xf32>
    %178 = vector.shape_cast %175 : vector<8x16x128xf32> to vector<1x8x16x128xf32>
    tpu.vector_store %arg10[%c0_96, %c0_97, %c0_98, %c0_99], %178 {strides = array<i32>} : memref<1x8x16x128xf32, #tpu.memory_space<vmem>>, vector<1x8x16x128xf32>,
    return
  }
  func.func @transform_0(%arg0: i32, %arg1: i32) -> (i32, i32, i32, i32) {
    %c0_i32 = arith.constant 0 : i32
    %c0_i32_0 = arith.constant 0 : i32
    %c0_i32_1 = arith.constant 0 : i32
    %c0_i32_2 = arith.constant 0 : i32
    return %arg0, %c0_i32, %c0_i32_0, %c0_i32_1 : i32, i32, i32, i32
  }
  func.func @transform_1(%arg0: i32, %arg1: i32) -> (i32, i32, i32, i32) {
    %c0_i32 = arith.constant 0 : i32
    %c0_i32_0 = arith.constant 0 : i32
    %c0_i32_1 = arith.constant 0 : i32
    %c0_i32_2 = arith.constant 0 : i32
    return %arg0, %c0_i32, %c0_i32_0, %c0_i32_1 : i32, i32, i32, i32
  }
  func.func @transform_2(%arg0: i32, %arg1: i32) -> (i32, i32, i32) {
    %c0_i32 = arith.constant 0 : i32
    %c0_i32_0 = arith.constant 0 : i32
    %c0_i32_1 = arith.constant 0 : i32
    %c0_i32_2 = arith.constant 0 : i32
    return %c0_i32, %c0_i32_0, %c0_i32_1 : i32, i32, i32
  }
  func.func @transform_3(%arg0: i32, %arg1: i32) -> (i32, i32, i32) {
    %c0_i32 = arith.constant 0 : i32
    %c0_i32_0 = arith.constant 0 : i32
    %c0_i32_1 = arith.constant 0 : i32
    %c0_i32_2 = arith.constant 0 : i32
    return %c0_i32, %c0_i32_0, %c0_i32_1 : i32, i32, i32
  }
  func.func @transform_4(%arg0: i32, %arg1: i32) -> (i32, i32) {
    %c0_i32 = arith.constant 0 : i32
    %c0_i32_0 = arith.constant 0 : i32
    %c0_i32_1 = arith.constant 0 : i32
    return %c0_i32, %c0_i32_0 : i32, i32
  }
  func.func @transform_5(%arg0: i32, %arg1: i32) -> (i32, i32) {
    %c0_i32 = arith.constant 0 : i32
    %c0_i32_0 = arith.constant 0 : i32
    %c0_i32_1 = arith.constant 0 : i32
    return %c0_i32, %c0_i32_0 : i32, i32
  }
  func.func @transform_6(%arg0: i32, %arg1: i32) -> (i32, i32) {
    %c0_i32 = arith.constant 0 : i32
    %c0_i32_0 = arith.constant 0 : i32
    %c0_i32_1 = arith.constant 0 : i32
    return %c0_i32, %c0_i32_0 : i32, i32
  }
  func.func @transform_7(%arg0: i32, %arg1: i32) -> (i32, i32) {
    %c0_i32 = arith.constant 0 : i32
    %c0_i32_0 = arith.constant 0 : i32
    %c0_i32_1 = arith.constant 0 : i32
    return %c0_i32, %c0_i32_0 : i32, i32
  }
  func.func @transform_8(%arg0: i32, %arg1: i32) -> (i32, i32, i32, i32) {
    %c0_i32 = arith.constant 0 : i32
    %c0_i32_0 = arith.constant 0 : i32
    %c0_i32_1 = arith.constant 0 : i32
    return %arg0, %arg1, %c0_i32, %c0_i32_0 : i32, i32, i32, i32
  }
}

</mosaic_0001>

<llo_original>
// kernel: feature_fused_concat.1
$region0: #{feature_fused_concat.1}
  #allocation0 [shape = 'u32[]', space=smem, size = 0x4, offset = 0x4, fixed_abs, tag = 'smem constant byte address 0x4 - core index']
  #allocation1 [shape = 'u32[144,128]{1,0:T(1,128)}', space=vmem, size = 0x12000, scoped, tag = 'internal scratch']
  %s0 = inlined_call_operand.vmem [shape: bf16[2,18,18,128], index: 0, kind: input, shape index: {}]
  %s1 = inlined_call_operand.vmem [shape: bf16[2,18,18,128], index: 1, kind: input, shape index: {}]
  %s2 = inlined_call_operand.vmem [shape: bf16[9,128,128], index: 2, kind: input, shape index: {}]
  %s3 = inlined_call_operand.vmem [shape: bf16[9,128,128], index: 3, kind: input, shape index: {}]
  %s4 = inlined_call_operand.vmem [shape: bf16[128,128], index: 4, kind: input, shape index: {}]
  %s5 = inlined_call_operand.vmem [shape: bf16[128,128], index: 5, kind: input, shape index: {}]
  %s6 = inlined_call_operand.vmem [shape: f32[1,128], index: 6, kind: input, shape index: {}]
  %s7 = inlined_call_operand.vmem [shape: f32[1,128], index: 7, kind: input, shape index: {}]
  %s8 = inlined_call_operand.vmem [shape: f32[2,16,16,128], index: 8, kind: output, shape index: {}]
  %s9 = sld [smem:[#allocation0]]
  $region65: #{feature_fused_concat.1} parent=0
    _
  %s11 = ssub.s32 1, %s9
  %s12 = scalar_select 0, %s11, %s9
  loop: start=0, step=1, limit=6
  $region2: #{feature_fused_concat.1} parent=0 // loop_pre_header
    _
  $region3: #{feature_fused_concat.1} parent=0 // loop_header
    %s14 = sphi 0, %s18
    %p15 = scmp.ge.s32.totalorder %s14, 6
    %s21 = sphi 0, %s33
    %s22 = sphi 0, %s29
    %s23 = sphi 0, %s21
    %s24 = sphi 0, %s22
    %s25 = sphi 0, %s23
    %s26 = sphi 0, %s24
    %s36 = sphi 0, %s38
    %s39 = sphi 0, %s36
    %s40 = sphi 0, %s39
    %s56 = sphi 0, %s40
    %s62 = sphi 0, %s64
    %s65 = sphi 0, %s62
    %s66 = sphi 0, %s65
    %s82 = sphi 0, %s66
    %s86 = sphi 0, %s86
    %s88 = sphi 0, %s86
    %s89 = sphi 0, %s88
    %s103 = sphi 0, %s89
    %s107 = sphi 0, %s107
    %s109 = sphi 0, %s107
    %s110 = sphi 0, %s109
    %s124 = sphi 0, %s110
    %s128 = sphi 0, %s128
    %s130 = sphi 0, %s128
    %s131 = sphi 0, %s130
    %s145 = sphi 0, %s131
    %s149 = sphi 0, %s149
    %s151 = sphi 0, %s149
    %s152 = sphi 0, %s151
    %s166 = sphi 0, %s152
    %s170 = sphi 0, %s170
    %s172 = sphi 0, %s170
    %s173 = sphi 0, %s172
    %s187 = sphi 0, %s173
    %s191 = sphi 0, %s191
    %s193 = sphi 0, %s191
    %s194 = sphi 0, %s193
    %s208 = sphi 0, %s194
    %s216 = sphi 0, %s218
    %s219 = sphi 0, %s216
    %s220 = sphi 0, %s219
    %s236 = sphi 0, %s220
  $region4: #{feature_fused_concat.1} parent=0 // loop_header_branch
    %17 = sbr.rel (%p15) target = $region8
  $region5: #{feature_fused_concat.1} parent=0 // loop_body
    %s19 = ssub.s32 %s14, 1
    %s20 = ssub.s32 %s14, 2
    %s27 = sadd.s32 1, %s22
    %p28 = scmp.ge.s32.totalorder %s27, 2
    %s29 = scalar_select %p28, 0, %s27
    %s30 = sadd.s32 1, %s21
    %s31 = scalar_select %p28, %s30, %s21
    %p32 = scmp.ge.s32.totalorder %s31, 2
    %s33 = scalar_select %p32, 0, %s31
    %s34 = ssub.s32 %s21, %s33
    %p35 = scmp.eq.s32.totalorder %s34, 0
    %s37 = sadd.s32 %s36, 1
    %s38 = scalar_select %p35, %s36, %s37
    %p41 = pneg %p35
    %p42 = scmp.eq.s32.totalorder %s14, 3
    %p43 = por %p41, %p42
    %p44 = scmp.ne.s32.totalorder %s36, %s39
    %p45 = scmp.eq.s32.totalorder %s14, 0
    %p46 = por %p44, %p45
    %p47 = scmp.ne.s32.totalorder %s36, %s39
    %p48 = scmp.eq.s32.totalorder %s19, 3
    %p49 = por %p47, %p48
    %p50 = scmp.ne.s32.totalorder %s39, %s40
    %p51 = scmp.eq.s32.totalorder %s19, 0
    %p52 = por %p50, %p51
    %p53 = scmp.ne.s32.totalorder %s39, %s40
    %p54 = scmp.eq.s32.totalorder %s20, 3
    %p55 = por %p53, %p54
    %p57 = scmp.ne.s32.totalorder %s40, %s56
    %p58 = scmp.eq.s32.totalorder %s20, 0
    %p59 = por %p57, %p58
    %s60 = ssub.s32 %s21, %s33
    %p61 = scmp.eq.s32.totalorder %s60, 0
    %s63 = sadd.s32 %s62, 1
    %s64 = scalar_select %p61, %s62, %s63
    %p67 = pneg %p61
    %p68 = scmp.eq.s32.totalorder %s14, 3
    %p69 = por %p67, %p68
    %p70 = scmp.ne.s32.totalorder %s62, %s65
    %p71 = scmp.eq.s32.totalorder %s14, 0
    %p72 = por %p70, %p71
    %p73 = scmp.ne.s32.totalorder %s62, %s65
    %p74 = scmp.eq.s32.totalorder %s19, 3
    %p75 = por %p73, %p74
    %p76 = scmp.ne.s32.totalorder %s65, %s66
    %p77 = scmp.eq.s32.totalorder %s19, 0
    %p78 = por %p76, %p77
    %p79 = scmp.ne.s32.totalorder %s65, %s66
    %p80 = scmp.eq.s32.totalorder %s20, 3
    %p81 = por %p79, %p80
    %p83 = scmp.ne.s32.totalorder %s66, %s82
    %p84 = scmp.eq.s32.totalorder %s20, 0
    %p85 = por %p83, %p84
    %s87 = sadd.s32 %s86, 1
    %p90 = scmp.eq.s32.totalorder %s14, 3
    %p91 = scmp.ne.s32.totalorder %s86, %s88
    %p92 = scmp.eq.s32.totalorder %s14, 0
    %p93 = por %p91, %p92
    %p94 = scmp.ne.s32.totalorder %s86, %s88
    %p95 = scmp.eq.s32.totalorder %s19, 3
    %p96 = por %p94, %p95
    %p97 = scmp.ne.s32.totalorder %s88, %s89
    %p98 = scmp.eq.s32.totalorder %s19, 0
    %p99 = por %p97, %p98
    %p100 = scmp.ne.s32.totalorder %s88, %s89
    %p101 = scmp.eq.s32.totalorder %s20, 3
    %p102 = por %p100, %p101
    %p104 = scmp.ne.s32.totalorder %s89, %s103
    %p105 = scmp.eq.s32.totalorder %s20, 0
    %p106 = por %p104, %p105
    %s108 = sadd.s32 %s107, 1
    %p111 = scmp.eq.s32.totalorder %s14, 3
    %p112 = scmp.ne.s32.totalorder %s107, %s109
    %p113 = scmp.eq.s32.totalorder %s14, 0
    %p114 = por %p112, %p113
    %p115 = scmp.ne.s32.totalorder %s107, %s109
    %p116 = scmp.eq.s32.totalorder %s19, 3
    %p117 = por %p115, %p116
    %p118 = scmp.ne.s32.totalorder %s109, %s110
    %p119 = scmp.eq.s32.totalorder %s19, 0
    %p120 = por %p118, %p119
    %p121 = scmp.ne.s32.totalorder %s109, %s110
    %p122 = scmp.eq.s32.totalorder %s20, 3
    %p123 = por %p121, %p122
    %p125 = scmp.ne.s32.totalorder %s110, %s124
    %p126 = scmp.eq.s32.totalorder %s20, 0
    %p127 = por %p125, %p126
    %s129 = sadd.s32 %s128, 1
    %p132 = scmp.eq.s32.totalorder %s14, 3
    %p133 = scmp.ne.s32.totalorder %s128, %s130
    %p134 = scmp.eq.s32.totalorder %s14, 0
    %p135 = por %p133, %p134
    %p136 = scmp.ne.s32.totalorder %s128, %s130
    %p137 = scmp.eq.s32.totalorder %s19, 3
    %p138 = por %p136, %p137
    %p139 = scmp.ne.s32.totalorder %s130, %s131
    %p140 = scmp.eq.s32.totalorder %s19, 0
    %p141 = por %p139, %p140
    %p142 = scmp.ne.s32.totalorder %s130, %s131
    %p143 = scmp.eq.s32.totalorder %s20, 3
    %p144 = por %p142, %p143
    %p146 = scmp.ne.s32.totalorder %s131, %s145
    %p147 = scmp.eq.s32.totalorder %s20, 0
    %p148 = por %p146, %p147
    %s150 = sadd.s32 %s149, 1
    %p153 = scmp.eq.s32.totalorder %s14, 3
    %p154 = scmp.ne.s32.totalorder %s149, %s151
    %p155 = scmp.eq.s32.totalorder %s14, 0
    %p156 = por %p154, %p155
    %p157 = scmp.ne.s32.totalorder %s149, %s151
    %p158 = scmp.eq.s32.totalorder %s19, 3
    %p159 = por %p157, %p158
    %p160 = scmp.ne.s32.totalorder %s151, %s152
    %p161 = scmp.eq.s32.totalorder %s19, 0
    %p162 = por %p160, %p161
    %p163 = scmp.ne.s32.totalorder %s151, %s152
    %p164 = scmp.eq.s32.totalorder %s20, 3
    %p165 = por %p163, %p164
    %p167 = scmp.ne.s32.totalorder %s152, %s166
    %p168 = scmp.eq.s32.totalorder %s20, 0
    %p169 = por %p167, %p168
    %s171 = sadd.s32 %s170, 1
    %p174 = scmp.eq.s32.totalorder %s14, 3
    %p175 = scmp.ne.s32.totalorder %s170, %s172
    %p176 = scmp.eq.s32.totalorder %s14, 0
    %p177 = por %p175, %p176
    %p178 = scmp.ne.s32.totalorder %s170, %s172
    %p179 = scmp.eq.s32.totalorder %s19, 3
    %p180 = por %p178, %p179
    %p181 = scmp.ne.s32.totalorder %s172, %s173
    %p182 = scmp.eq.s32.totalorder %s19, 0
    %p183 = por %p181, %p182
    %p184 = scmp.ne.s32.totalorder %s172, %s173
    %p185 = scmp.eq.s32.totalorder %s20, 3
    %p186 = por %p184, %p185
    %p188 = scmp.ne.s32.totalorder %s173, %s187
    %p189 = scmp.eq.s32.totalorder %s20, 0
    %p190 = por %p188, %p189
    %s192 = sadd.s32 %s191, 1
    %p195 = scmp.eq.s32.totalorder %s14, 3
    %p196 = scmp.ne.s32.totalorder %s191, %s193
    %p197 = scmp.eq.s32.totalorder %s14, 0
    %p198 = por %p196, %p197
    %p199 = scmp.ne.s32.totalorder %s191, %s193
    %p200 = scmp.eq.s32.totalorder %s19, 3
    %p201 = por %p199, %p200
    %p202 = scmp.ne.s32.totalorder %s193, %s194
    %p203 = scmp.eq.s32.totalorder %s19, 0
    %p204 = por %p202, %p203
    %p205 = scmp.ne.s32.totalorder %s193, %s194
    %p206 = scmp.eq.s32.totalorder %s20, 3
    %p207 = por %p205, %p206
    %p209 = scmp.ne.s32.totalorder %s194, %s208
    %p210 = scmp.eq.s32.totalorder %s20, 0
    %p211 = por %p209, %p210
    %s212 = ssub.s32 %s21, %s33
    %s213 = ssub.s32 %s22, %s29
    %s214 = sor.u32 %s212, %s213
    %p215 = scmp.eq.s32.totalorder %s214, 0
    %s217 = sadd.s32 %s216, 1
    %s218 = scalar_select %p215, %s216, %s217
    %p221 = pneg %p215
    %p222 = scmp.eq.s32.totalorder %s14, 3
    %p223 = por %p221, %p222
    %p224 = scmp.ne.s32.totalorder %s216, %s219
    %p225 = scmp.eq.s32.totalorder %s14, 0
    %p226 = por %p224, %p225
    %p227 = scmp.ne.s32.totalorder %s216, %s219
    %p228 = scmp.eq.s32.totalorder %s19, 3
    %p229 = por %p227, %p228
    %p230 = scmp.ne.s32.totalorder %s219, %s220
    %p231 = scmp.eq.s32.totalorder %s19, 0
    %p232 = por %p230, %p231
    %p233 = scmp.ne.s32.totalorder %s219, %s220
    %p234 = scmp.eq.s32.totalorder %s20, 3
    %p235 = por %p233, %p234
    %p237 = scmp.ne.s32.totalorder %s220, %s236
    %p238 = scmp.eq.s32.totalorder %s20, 0
    %p239 = por %p237, %p238
    %p240 = scmp.le.s32.totalorder 1, %s14
    %p241 = scmp.lt.s32.totalorder %s14, 5
    %p242 = pnand %p240, %p241
    %p243 = pneg %p242
    // Predicated region
    $region9: #{feature_fused_concat.1} parent=5 // pred_check
      _
    $region10: #{feature_fused_concat.1} parent=5 // pred_check_branch
      %245 = sbr.rel (%p242) target = $region12
    $region11: #{feature_fused_concat.1} parent=5 // pred_region
      %s246 = ssub.s32 %s14, 1
      // Predicated region
      $region13: #{feature_fused_concat.1} parent=11 // pred_check
        %p247 = pneg %p99
      $region14: #{feature_fused_concat.1} parent=11 // pred_check_branch
        %249 = sbr.rel (%p247) target = $region16
      $region15: #{feature_fused_concat.1} parent=11 // pred_region
        _
      $region16: #{feature_fused_concat.1} parent=11 // pred_fallthru
        _
      // Predicated region
      $region17: #{feature_fused_concat.1} parent=11 // pred_check
        %p250 = pneg %p120
      $region18: #{feature_fused_concat.1} parent=11 // pred_check_branch
        %252 = sbr.rel (%p250) target = $region20
      $region19: #{feature_fused_concat.1} parent=11 // pred_region
        _
      $region20: #{feature_fused_concat.1} parent=11 // pred_fallthru
        _
      // Predicated region
      $region21: #{feature_fused_concat.1} parent=11 // pred_check
        %p253 = pneg %p141
      $region22: #{feature_fused_concat.1} parent=11 // pred_check_branch
        %255 = sbr.rel (%p253) target = $region24
      $region23: #{feature_fused_concat.1} parent=11 // pred_region
        _
      $region24: #{feature_fused_concat.1} parent=11 // pred_fallthru
        _
      // Predicated region
      $region25: #{feature_fused_concat.1} parent=11 // pred_check
        %p256 = pneg %p162
      $region26: #{feature_fused_concat.1} parent=11 // pred_check_branch
        %258 = sbr.rel (%p256) target = $region28
      $region27: #{feature_fused_concat.1} parent=11 // pred_region
        _
      $region28: #{feature_fused_concat.1} parent=11 // pred_fallthru
        _
      // Predicated region
      $region29: #{feature_fused_concat.1} parent=11 // pred_check
        %p259 = pneg %p183
      $region30: #{feature_fused_concat.1} parent=11 // pred_check_branch
        %261 = sbr.rel (%p259) target = $region32
      $region31: #{feature_fused_concat.1} parent=11 // pred_region
        _
      $region32: #{feature_fused_concat.1} parent=11 // pred_fallthru
        _
      // Predicated region
      $region33: #{feature_fused_concat.1} parent=11 // pred_check
        %p262 = pneg %p204
      $region34: #{feature_fused_concat.1} parent=11 // pred_check_branch
        %264 = sbr.rel (%p262) target = $region36
      $region35: #{feature_fused_concat.1} parent=11 // pred_region
        _
      $region36: #{feature_fused_concat.1} parent=11 // pred_fallthru
        _
    $region12: #{feature_fused_concat.1} parent=5 // pred_fallthru
      _
    %p265 = scmp.lt.s32.totalorder %s14, 4
    // Predicated region
    $region37: #{feature_fused_concat.1} parent=5 // pred_check
      %p266 = pneg %p265
    $region38: #{feature_fused_concat.1} parent=5 // pred_check_branch
      %268 = sbr.rel (%p266) target = $region40
    $region39: #{feature_fused_concat.1} parent=5 // pred_region
      // Predicated region
      $region41: #{feature_fused_concat.1} parent=39 // pred_check
        %p269 = pneg %p46
      $region42: #{feature_fused_concat.1} parent=39 // pred_check_branch
        %271 = sbr.rel (%p269) target = $region44
      $region43: #{feature_fused_concat.1} parent=39 // pred_region
        %p272 = scmp.lt.s32.totalorder %s21, 1
        %s273 = scalar_select %p272, %s21, 1
        %s274 = smul.addr %s273, 54
        %s275 = smul.addr %s274, 4
        %s276 = scalar_lea.vmem %s0, %s275
      $region44: #{feature_fused_concat.1} parent=39 // pred_fallthru
        _
      // Predicated region
      $region45: #{feature_fused_concat.1} parent=39 // pred_check
        %p277 = pneg %p72
      $region46: #{feature_fused_concat.1} parent=39 // pred_check_branch
        %279 = sbr.rel (%p277) target = $region48
      $region47: #{feature_fused_concat.1} parent=39 // pred_region
        %p280 = scmp.lt.s32.totalorder %s21, 1
        %s281 = scalar_select %p280, %s21, 1
        %s282 = smul.addr %s281, 54
        %s283 = smul.addr %s282, 4
        %s284 = scalar_lea.vmem %s1, %s283
      $region48: #{feature_fused_concat.1} parent=39 // pred_fallthru
        _
    $region40: #{feature_fused_concat.1} parent=5 // pred_fallthru
      _
    %p285 = scmp.le.s32.totalorder 1, %s14
    %p286 = scmp.lt.s32.totalorder %s14, 5
    %p287 = pnand %p285, %p286
    %p288 = pneg %p287
    // Predicated region
    $region49: #{feature_fused_concat.1} parent=5 // pred_check
      _
    $region50: #{feature_fused_concat.1} parent=5 // pred_check_branch
      %290 = sbr.rel (%p287) target = $region52
    $region51: #{feature_fused_concat.1} parent=5 // pred_region
      %s291 = ssub.s32 %s14, 1
      %p292 = scmp.lt.s32.totalorder %s23, 1
      %s293 = scalar_select %p292, %s23, 1
      %s294 = smul.addr %s293, 54
      %s295 = smul.addr %s294, 4
      %s296 = scalar_lea.vmem %s0, %s295
      %p297 = pneg %p52
      %p298 = pneg %p49
      %p299 = scmp.lt.s32.totalorder %s23, 1
      %s300 = scalar_select %p299, %s23, 1
      %s301 = smul.addr %s300, 54
      %s302 = smul.addr %s301, 4
      %s303 = scalar_lea.vmem %s1, %s302
      %p304 = pneg %p78
      %p305 = pneg %p75
      %p306 = pneg %p99
      %p307 = pneg %p96
      %p308 = pneg %p120
      %p309 = pneg %p117
      %p310 = pneg %p141
      %p311 = pneg %p138
      %p312 = pneg %p162
      %p313 = pneg %p159
      %p314 = pneg %p183
      %p315 = pneg %p180
      %p316 = pneg %p204
      %p317 = pneg %p201
      %p318 = pneg %p232
      %p319 = pneg %p229
      %s320 = smul.u32 8, %s24
      %p321 = scmp.lt.s32.totalorder %s23, 1
      %s322 = scalar_select %p321, %s23, 1
      %p323 = scmp.lt.s32.totalorder %s320, 15
      %s324 = scalar_select %p323, %s320, 15
      %s325 = smul.addr %s324, 2
      %s326 = smul.addr %s322, 32
      %s327 = sadd.s32 %s325, %s326
      %s328 = smul.addr %s327, 8
      %s329 = scalar_lea.vmem %s8, %s328
      %p330 = scmp.lt.s32.totalorder %s23, 1
      %s331 = scalar_select %p330, %s23, 1
      %s332 = smul.addr %s331, 54
      %s333 = smul.addr %s332, 4
      %s334 = scalar_lea.vmem %s0, %s333
      %p335 = scmp.lt.s32.totalorder %s23, 1
      %s336 = scalar_select %p335, %s23, 1
      %s337 = smul.addr %s336, 54
      %s338 = smul.addr %s337, 4
      %s339 = scalar_lea.vmem %s1, %s338
      %s340 = smul.u32 8, %s24
      %p341 = scmp.lt.s32.totalorder %s23, 1
      %s342 = scalar_select %p341, %s23, 1
      %p343 = scmp.lt.s32.totalorder %s340, 15
      %s344 = scalar_select %p343, %s340, 15
      %s345 = smul.addr %s344, 2
      %s346 = smul.addr %s342, 32
      %s347 = sadd.s32 %s345, %s346
      %s348 = smul.addr %s347, 8
      %s349 = scalar_lea.vmem %s8, %s348
      %s350 = smul.u32 8, %s24
      %s352 = smul.u32 %s24, 8
      %s353 = smul.u32 %s352, 3
      %s354 = smul.addr %s353, 4
      %s355 = scalar_lea.vmem %s334, %s354
      %v356 = vld [vmem:[%s355] sm:$0xf]
      %v357 = vld [vmem:[%s355 + $0x4] sm:$0xf]
      %v358 = vld [vmem:[%s355 + $0x8] sm:$0x1]
      %v359 = vld [vmem:[%s355 + $0xc] sm:$0xf]
      %v360 = vld [vmem:[%s355 + $0x10] sm:$0xf]
      %v361 = vld [vmem:[%s355 + $0x14] sm:$0x1]
      %v362 = vld [vmem:[%s355 + $0x18] sm:$0xf]
      %v363 = vld [vmem:[%s355 + $0x1c] sm:$0xf]
      %v364 = vld [vmem:[%s355 + $0x20] sm:$0x1]
      %v365 = vld [vmem:[%s355 + $0x24] sm:$0xf]
      %v366 = vld [vmem:[%s355 + $0x28] sm:$0xf]
      %v367 = vld [vmem:[%s355 + $0x2c] sm:$0x1]
      %v368 = vld [vmem:[%s355 + $0x30] sm:$0xf]
      %v369 = vld [vmem:[%s355 + $0x34] sm:$0xf]
      %v370 = vld [vmem:[%s355 + $0x38] sm:$0x1]
      %v371 = vld [vmem:[%s355 + $0x3c] sm:$0xf]
      %v372 = vld [vmem:[%s355 + $0x40] sm:$0xf]
      %v373 = vld [vmem:[%s355 + $0x44] sm:$0x1]
      %v374 = vld [vmem:[%s355 + $0x48] sm:$0xf]
      %v375 = vld [vmem:[%s355 + $0x4c] sm:$0xf]
      %v376 = vld [vmem:[%s355 + $0x50] sm:$0x1]
      %v377 = vld [vmem:[%s355 + $0x54] sm:$0xf]
      %v378 = vld [vmem:[%s355 + $0x58] sm:$0xf]
      %v379 = vld [vmem:[%s355 + $0x5c] sm:$0x1]
      %v380 = vunpack.c.l.bf16 %v356
      %v381 = vunpack.c.l.bf16 %v357
      %v382 = vunpack.c.l.bf16 %v358
      %v383 = vunpack.c.l.bf16 %v359
      %v384 = vunpack.c.l.bf16 %v360
      %v385 = vunpack.c.l.bf16 %v361
      %v386 = vunpack.c.l.bf16 %v362
      %v387 = vunpack.c.l.bf16 %v363
      %v388 = vunpack.c.l.bf16 %v364
      %v389 = vunpack.c.l.bf16 %v365
      %v390 = vunpack.c.l.bf16 %v366
      %v391 = vunpack.c.l.bf16 %v367
      %v392 = vunpack.c.l.bf16 %v368
      %v393 = vunpack.c.l.bf16 %v369
      %v394 = vunpack.c.l.bf16 %v370
      %v395 = vunpack.c.l.bf16 %v371
      %v396 = vunpack.c.l.bf16 %v372
      %v397 = vunpack.c.l.bf16 %v373
      %v398 = vunpack.c.l.bf16 %v374
      %v399 = vunpack.c.l.bf16 %v375
      %v400 = vunpack.c.l.bf16 %v376
      %v401 = vunpack.c.l.bf16 %v377
      %v402 = vunpack.c.l.bf16 %v378
      %v403 = vunpack.c.l.bf16 %v379
      %v404 = vpack.c.bf16 %v381, %v380
      %v405 = vpack.c.bf16 %v384, %v383
      %v406 = vpack.c.bf16 %v387, %v386
      %v407 = vpack.c.bf16 %v390, %v389
      %v408 = vpack.c.bf16 %v393, %v392
      %v409 = vpack.c.bf16 %v396, %v395
      %v410 = vpack.c.bf16 %v399, %v398
      %v411 = vpack.c.bf16 %v402, %v401
      %v412 = vld [vmem:[%s2] sm:$0xf]
      %v413 = vld [vmem:[%s2 + $0x4] sm:$0xf]
      %v414 = vld [vmem:[%s2 + $0x8] sm:$0xf]
      %v415 = vld [vmem:[%s2 + $0xc] sm:$0xf]
      %v416 = vld [vmem:[%s2 + $0x10] sm:$0xf]
      %v417 = vld [vmem:[%s2 + $0x14] sm:$0xf]
      %v418 = vld [vmem:[%s2 + $0x18] sm:$0xf]
      %v419 = vld [vmem:[%s2 + $0x1c] sm:$0xf]
      %v420 = vld [vmem:[%s2 + $0x20] sm:$0xf]
      %v421 = vld [vmem:[%s2 + $0x24] sm:$0xf]
      %v422 = vld [vmem:[%s2 + $0x28] sm:$0xf]
      %v423 = vld [vmem:[%s2 + $0x2c] sm:$0xf]
      %v424 = vld [vmem:[%s2 + $0x30] sm:$0xf]
      %v425 = vld [vmem:[%s2 + $0x34] sm:$0xf]
      %v426 = vld [vmem:[%s2 + $0x38] sm:$0xf]
      %v427 = vld [vmem:[%s2 + $0x3c] sm:$0xf]
      %vm452 = vcmask 1046528
      %v453 = vrot.slane %v380, 1
      %v454 = vrot.slane %v381, 1
      %v455 = vsel %vm452, %v453, %v454
      %v456 = vrot.slane %v382, 1
      %v457 = vsel %vm452, %v454, %v456
      %v458 = vrot.slane %v383, 1
      %v459 = vrot.slane %v384, 1
      %v460 = vsel %vm452, %v458, %v459
      %v461 = vrot.slane %v385, 1
      %v462 = vsel %vm452, %v459, %v461
      %v463 = vrot.slane %v386, 1
      %v464 = vrot.slane %v387, 1
      %v465 = vsel %vm452, %v463, %v464
      %v466 = vrot.slane %v388, 1
      %v467 = vsel %vm452, %v464, %v466
      %v468 = vrot.slane %v389, 1
      %v469 = vrot.slane %v390, 1
      %v470 = vsel %vm452, %v468, %v469
      %v471 = vrot.slane %v391, 1
      %v472 = vsel %vm452, %v469, %v471
      %v473 = vrot.slane %v392, 1
      %v474 = vrot.slane %v393, 1
      %v475 = vsel %vm452, %v473, %v474
      %v476 = vrot.slane %v394, 1
      %v477 = vsel %vm452, %v474, %v476
      %v478 = vrot.slane %v395, 1
      %v479 = vrot.slane %v396, 1
      %v480 = vsel %vm452, %v478, %v479
      %v481 = vrot.slane %v397, 1
      %v482 = vsel %vm452, %v479, %v481
      %v483 = vrot.slane %v398, 1
      %v484 = vrot.slane %v399, 1
      %v485 = vsel %vm452, %v483, %v484
      %v486 = vrot.slane %v400, 1
      %v487 = vsel %vm452, %v484, %v486
      %v488 = vrot.slane %v401, 1
      %v489 = vrot.slane %v402, 1
      %v490 = vsel %vm452, %v488, %v489
      %v491 = vrot.slane %v403, 1
      %v492 = vsel %vm452, %v489, %v491
      %v509 = vpack.c.bf16 %v457, %v455
      %v510 = vpack.c.bf16 %v462, %v460
      %v511 = vpack.c.bf16 %v467, %v465
      %v512 = vpack.c.bf16 %v472, %v470
      %v513 = vpack.c.bf16 %v477, %v475
      %v514 = vpack.c.bf16 %v482, %v480
      %v515 = vpack.c.bf16 %v487, %v485
      %v516 = vpack.c.bf16 %v492, %v490
      %s517 = scalar_lea.vmem %s2, 64
      %v518 = vld [vmem:[%s517] sm:$0xf]
      %v519 = vld [vmem:[%s517 + $0x4] sm:$0xf]
      %v520 = vld [vmem:[%s517 + $0x8] sm:$0xf]
      %v521 = vld [vmem:[%s517 + $0xc] sm:$0xf]
      %v522 = vld [vmem:[%s517 + $0x10] sm:$0xf]
      %v523 = vld [vmem:[%s517 + $0x14] sm:$0xf]
      %v524 = vld [vmem:[%s517 + $0x18] sm:$0xf]
      %v525 = vld [vmem:[%s517 + $0x1c] sm:$0xf]
      %v526 = vld [vmem:[%s517 + $0x20] sm:$0xf]
      %v527 = vld [vmem:[%s517 + $0x24] sm:$0xf]
      %v528 = vld [vmem:[%s517 + $0x28] sm:$0xf]
      %v529 = vld [vmem:[%s517 + $0x2c] sm:$0xf]
      %v530 = vld [vmem:[%s517 + $0x30] sm:$0xf]
      %v531 = vld [vmem:[%s517 + $0x34] sm:$0xf]
      %v532 = vld [vmem:[%s517 + $0x38] sm:$0xf]
      %v533 = vld [vmem:[%s517 + $0x3c] sm:$0xf]
      %v550 = vunpack.c.l.b16 %v518
      %v551 = vunpack.c.l.b16 %v519
      %v552 = vunpack.c.l.b16 %v520
      %v553 = vunpack.c.l.b16 %v521
      %v554 = vunpack.c.l.b16 %v522
      %v555 = vunpack.c.l.b16 %v523
      %v556 = vunpack.c.l.b16 %v524
      %v557 = vunpack.c.l.b16 %v525
      %v558 = vunpack.c.l.b16 %v526
      %v559 = vunpack.c.l.b16 %v527
      %v560 = vunpack.c.l.b16 %v528
      %v561 = vunpack.c.l.b16 %v529
      %v562 = vunpack.c.l.b16 %v530
      %v563 = vunpack.c.l.b16 %v531
      %v564 = vunpack.c.l.b16 %v532
      %v565 = vunpack.c.l.b16 %v533
      %v566 = vpack.c.b16 %v551, %v550
      %v567 = vpack.c.b16 %v553, %v552
      %v568 = vpack.c.b16 %v555, %v554
      %v569 = vpack.c.b16 %v557, %v556
      %v570 = vpack.c.b16 %v559, %v558
      %v571 = vpack.c.b16 %v561, %v560
      %v572 = vpack.c.b16 %v563, %v562
      %v573 = vpack.c.b16 %v565, %v564
      %582 = vmatprep.subr.bf16.mxu0 0
      %583 = vmatpush1.bf16.msra.mxu0 %v566
      %584 = vmatprep.subr.bf16.mxu0 0
      %585 = vmatpush1.bf16.msra.mxu0 %v567
      %586 = vmatprep.subr.bf16.mxu0 0
      %587 = vmatpush1.bf16.msra.mxu0 %v568
      %588 = vmatprep.subr.bf16.mxu0 0
      %589 = vmatpush1.bf16.msra.mxu0 %v569
      %590 = vmatprep.subr.bf16.mxu0 0
      %591 = vmatpush1.bf16.msra.mxu0 %v570
      %592 = vmatprep.subr.bf16.mxu0 0
      %593 = vmatpush1.bf16.msra.mxu0 %v571
      %594 = vmatprep.subr.bf16.mxu0 0
      %595 = vmatpush1.bf16.msra.mxu0 %v572
      %596 = vmatprep.subr.bf16.mxu0 0
      %597 = vmatpush1.bf16.msra.mxu0 %v573
      %598 = vmatprep.subr.bf16.mxu0 0
      %599 = vmatpush1.bf16.msra.mxu0 0
      %600 = vmatprep.subr.bf16.mxu0 0
      %601 = vmatpush1.bf16.msra.mxu0 0
      %602 = vmatprep.subr.bf16.mxu0 0
      %603 = vmatpush1.bf16.msra.mxu0 0
      %604 = vmatprep.subr.bf16.mxu0 0
      %605 = vmatpush1.bf16.msra.mxu0 0
      %606 = vmatprep.subr.bf16.mxu0 0
      %607 = vmatpush1.bf16.msra.mxu0 0
      %608 = vmatprep.subr.bf16.mxu0 0
      %609 = vmatpush1.bf16.msra.mxu0 0
      %610 = vmatprep.subr.bf16.mxu0 0
      %611 = vmatpush1.bf16.msra.mxu0 0
      %612 = vmatprep.subr.bf16.mxu0 0
      %613 = vmatpush1.bf16.msra.mxu0 0
      %614 = vmatprep.mubr.bf16.mxu0 0
      %615 = vmatmul.mubr.bf16.gmra.mrb[0].mxu0 %v509
      %v616 = vpop.f32.mrb[0].mxu0
      %v617 = vadd.f32 0.0, %v616
      %v618 = vpop.f32.mrb[0].mxu0
      %v619 = vpop.f32.mrb[0].mxu0
      %v620 = vadd.f32 0.0, %v619
      %v621 = vpop.f32.mrb[0].mxu0
      %622 = vmatprep.mubr.bf16.mxu0 0
      %623 = vmatmul.mubr.bf16.gmra.mrb[0].mxu0 %v510
      %v624 = vpop.f32.mrb[0].mxu0
      %v625 = vadd.f32 0.0, %v624
      %v626 = vpop.f32.mrb[0].mxu0
      %v627 = vpop.f32.mrb[0].mxu0
      %v628 = vadd.f32 0.0, %v627
      %v629 = vpop.f32.mrb[0].mxu0
      %630 = vmatprep.mubr.bf16.mxu0 0
      %631 = vmatmul.mubr.bf16.gmra.mrb[0].mxu0 %v511
      %v632 = vpop.f32.mrb[0].mxu0
      %v633 = vadd.f32 0.0, %v632
      %v634 = vpop.f32.mrb[0].mxu0
      %v635 = vpop.f32.mrb[0].mxu0
      %v636 = vadd.f32 0.0, %v635
      %v637 = vpop.f32.mrb[0].mxu0
      %638 = vmatprep.mubr.bf16.mxu0 0
      %639 = vmatmul.mubr.bf16.gmra.mrb[0].mxu0 %v512
      %v640 = vpop.f32.mrb[0].mxu0
      %v641 = vadd.f32 0.0, %v640
      %v642 = vpop.f32.mrb[0].mxu0
      %v643 = vpop.f32.mrb[0].mxu0
      %v644 = vadd.f32 0.0, %v643
      %v645 = vpop.f32.mrb[0].mxu0
      %646 = vmatprep.mubr.bf16.mxu0 0
      %647 = vmatmul.mubr.bf16.gmra.mrb[0].mxu0 %v513
      %v648 = vpop.f32.mrb[0].mxu0
      %v649 = vadd.f32 0.0, %v648
      %v650 = vpop.f32.mrb[0].mxu0
      %v651 = vpop.f32.mrb[0].mxu0
      %v652 = vadd.f32 0.0, %v651
      %v653 = vpop.f32.mrb[0].mxu0
      %654 = vmatprep.mubr.bf16.mxu0 0
      %655 = vmatmul.mubr.bf16.gmra.mrb[0].mxu0 %v514
      %v656 = vpop.f32.mrb[0].mxu0
      %v657 = vadd.f32 0.0, %v656
      %v658 = vpop.f32.mrb[0].mxu0
      %v659 = vpop.f32.mrb[0].mxu0
      %v660 = vadd.f32 0.0, %v659
      %v661 = vpop.f32.mrb[0].mxu0
      %662 = vmatprep.mubr.bf16.mxu0 0
      %663 = vmatmul.mubr.bf16.gmra.mrb[0].mxu0 %v515
      %v664 = vpop.f32.mrb[0].mxu0
      %v665 = vadd.f32 0.0, %v664
      %v666 = vpop.f32.mrb[0].mxu0
      %v667 = vpop.f32.mrb[0].mxu0
      %v668 = vadd.f32 0.0, %v667
      %v669 = vpop.f32.mrb[0].mxu0
      %670 = vmatprep.mubr.bf16.mxu0 0
      %671 = vmatmul.mubr.bf16.gmra.mrb[0].mxu0 %v516
      %v672 = vpop.f32.mrb[0].mxu0
      %v673 = vadd.f32 0.0, %v672
      %v674 = vpop.f32.mrb[0].mxu0
      %v675 = vpop.f32.mrb[0].mxu0
      %v676 = vadd.f32 0.0, %v675
      %v677 = vpop.f32.mrb[0].mxu0
      %678 = vdwg.mxu0
      %v695 = vunpack.c.l.b16 %v412
      %v696 = vunpack.c.l.b16 %v413
      %v697 = vunpack.c.l.b16 %v414
      %v698 = vunpack.c.l.b16 %v415
      %v699 = vunpack.c.l.b16 %v416
      %v700 = vunpack.c.l.b16 %v417
      %v701 = vunpack.c.l.b16 %v418
      %v702 = vunpack.c.l.b16 %v419
      %v703 = vunpack.c.l.b16 %v420
      %v704 = vunpack.c.l.b16 %v421
      %v705 = vunpack.c.l.b16 %v422
      %v706 = vunpack.c.l.b16 %v423
      %v707 = vunpack.c.l.b16 %v424
      %v708 = vunpack.c.l.b16 %v425
      %v709 = vunpack.c.l.b16 %v426
      %v710 = vunpack.c.l.b16 %v427
      %v711 = vpack.c.b16 %v696, %v695
      %v712 = vpack.c.b16 %v698, %v697
      %v713 = vpack.c.b16 %v700, %v699
      %v714 = vpack.c.b16 %v702, %v701
      %v715 = vpack.c.b16 %v704, %v703
      %v716 = vpack.c.b16 %v706, %v705
      %v717 = vpack.c.b16 %v708, %v707
      %v718 = vpack.c.b16 %v710, %v709
      %727 = vmatprep.subr.bf16.mxu0 0
      %728 = vmatpush1.bf16.msra.mxu0 %v711
      %729 = vmatprep.subr.bf16.mxu0 0
      %730 = vmatpush1.bf16.msra.mxu0 %v712
      %731 = vmatprep.subr.bf16.mxu0 0
      %732 = vmatpush1.bf16.msra.mxu0 %v713
      %733 = vmatprep.subr.bf16.mxu0 0
      %734 = vmatpush1.bf16.msra.mxu0 %v714
      %735 = vmatprep.subr.bf16.mxu0 0
      %736 = vmatpush1.bf16.msra.mxu0 %v715
      %737 = vmatprep.subr.bf16.mxu0 0
      %738 = vmatpush1.bf16.msra.mxu0 %v716
      %739 = vmatprep.subr.bf16.mxu0 0
      %740 = vmatpush1.bf16.msra.mxu0 %v717
      %741 = vmatprep.subr.bf16.mxu0 0
      %742 = vmatpush1.bf16.msra.mxu0 %v718
      %743 = vmatprep.subr.bf16.mxu0 0
      %744 = vmatpush1.bf16.msra.mxu0 0
      %745 = vmatprep.subr.bf16.mxu0 0
      %746 = vmatpush1.bf16.msra.mxu0 0
      %747 = vmatprep.subr.bf16.mxu0 0
      %748 = vmatpush1.bf16.msra.mxu0 0
      %749 = vmatprep.subr.bf16.mxu0 0
      %750 = vmatpush1.bf16.msra.mxu0 0
      %751 = vmatprep.subr.bf16.mxu0 0
      %752 = vmatpush1.bf16.msra.mxu0 0
      %753 = vmatprep.subr.bf16.mxu0 0
      %754 = vmatpush1.bf16.msra.mxu0 0
      %755 = vmatprep.subr.bf16.mxu0 0
      %756 = vmatpush1.bf16.msra.mxu0 0
      %757 = vmatprep.subr.bf16.mxu0 0
      %758 = vmatpush1.bf16.msra.mxu0 0
      %759 = vmatprep.mubr.bf16.mxu0 0
      %760 = vmatmul.mubr.bf16.gmra.mrb[0].mxu0 %v404
      %v761 = vpop.f32.mrb[0].mxu0
      %v762 = vadd.f32 %v617, %v761
      %v763 = vpop.f32.mrb[0].mxu0
      %v764 = vpop.f32.mrb[0].mxu0
      %v765 = vadd.f32 %v620, %v764
      %v766 = vpop.f32.mrb[0].mxu0
      %767 = vmatprep.mubr.bf16.mxu0 0
      %768 = vmatmul.mubr.bf16.gmra.mrb[0].mxu0 %v405
      %v769 = vpop.f32.mrb[0].mxu0
      %v770 = vadd.f32 %v625, %v769
      %v771 = vpop.f32.mrb[0].mxu0
      %v772 = vpop.f32.mrb[0].mxu0
      %v773 = vadd.f32 %v628, %v772
      %v774 = vpop.f32.mrb[0].mxu0
      %775 = vmatprep.mubr.bf16.mxu0 0
      %776 = vmatmul.mubr.bf16.gmra.mrb[0].mxu0 %v406
      %v777 = vpop.f32.mrb[0].mxu0
      %v778 = vadd.f32 %v633, %v777
      %v779 = vpop.f32.mrb[0].mxu0
      %v780 = vpop.f32.mrb[0].mxu0
      %v781 = vadd.f32 %v636, %v780
      %v782 = vpop.f32.mrb[0].mxu0
      %783 = vmatprep.mubr.bf16.mxu0 0
      %784 = vmatmul.mubr.bf16.gmra.mrb[0].mxu0 %v407
      %v785 = vpop.f32.mrb[0].mxu0
      %v786 = vadd.f32 %v641, %v785
      %v787 = vpop.f32.mrb[0].mxu0
      %v788 = vpop.f32.mrb[0].mxu0
      %v789 = vadd.f32 %v644, %v788
      %v790 = vpop.f32.mrb[0].mxu0
      %791 = vmatprep.mubr.bf16.mxu0 0
      %792 = vmatmul.mubr.bf16.gmra.mrb[0].mxu0 %v408
      %v793 = vpop.f32.mrb[0].mxu0
      %v794 = vadd.f32 %v649, %v793
      %v795 = vpop.f32.mrb[0].mxu0
      %v796 = vpop.f32.mrb[0].mxu0
      %v797 = vadd.f32 %v652, %v796
      %v798 = vpop.f32.mrb[0].mxu0
      %799 = vmatprep.mubr.bf16.mxu0 0
      %800 = vmatmul.mubr.bf16.gmra.mrb[0].mxu0 %v409
      %v801 = vpop.f32.mrb[0].mxu0
      %v802 = vadd.f32 %v657, %v801
      %v803 = vpop.f32.mrb[0].mxu0
      %v804 = vpop.f32.mrb[0].mxu0
      %v805 = vadd.f32 %v660, %v804
      %v806 = vpop.f32.mrb[0].mxu0
      %807 = vmatprep.mubr.bf16.mxu0 0
      %808 = vmatmul.mubr.bf16.gmra.mrb[0].mxu0 %v410
      %v809 = vpop.f32.mrb[0].mxu0
      %v810 = vadd.f32 %v665, %v809
      %v811 = vpop.f32.mrb[0].mxu0
      %v812 = vpop.f32.mrb[0].mxu0
      %v813 = vadd.f32 %v668, %v812
      %v814 = vpop.f32.mrb[0].mxu0
      %815 = vmatprep.mubr.bf16.mxu0 0
      %816 = vmatmul.mubr.bf16.gmra.mrb[0].mxu0 %v411
      %v817 = vpop.f32.mrb[0].mxu0
      %v818 = vadd.f32 %v673, %v817
      %v819 = vpop.f32.mrb[0].mxu0
      %v820 = vpop.f32.mrb[0].mxu0
      %v821 = vadd.f32 %v676, %v820
      %v822 = vpop.f32.mrb[0].mxu0
      %823 = vdwg.mxu0
      %vm824 = vcmask 1045504
      %v825 = vrot.slane %v380, 2
      %v826 = vrot.slane %v381, 2
      %v827 = vsel %vm824, %v825, %v826
      %v828 = vrot.slane %v382, 2
      %v829 = vsel %vm824, %v826, %v828
      %v830 = vrot.slane %v383, 2
      %v831 = vrot.slane %v384, 2
      %v832 = vsel %vm824, %v830, %v831
      %v833 = vrot.slane %v385, 2
      %v834 = vsel %vm824, %v831, %v833
      %v835 = vrot.slane %v386, 2
      %v836 = vrot.slane %v387, 2
      %v837 = vsel %vm824, %v835, %v836
      %v838 = vrot.slane %v388, 2
      %v839 = vsel %vm824, %v836, %v838
      %v840 = vrot.slane %v389, 2
      %v841 = vrot.slane %v390, 2
      %v842 = vsel %vm824, %v840, %v841
      %v843 = vrot.slane %v391, 2
      %v844 = vsel %vm824, %v841, %v843
      %v845 = vrot.slane %v392, 2
      %v846 = vrot.slane %v393, 2
      %v847 = vsel %vm824, %v845, %v846
      %v848 = vrot.slane %v394, 2
      %v849 = vsel %vm824, %v846, %v848
      %v850 = vrot.slane %v395, 2
      %v851 = vrot.slane %v396, 2
      %v852 = vsel %vm824, %v850, %v851
      %v853 = vrot.slane %v397, 2
      %v854 = vsel %vm824, %v851, %v853
      %v855 = vrot.slane %v398, 2
      %v856 = vrot.slane %v399, 2
      %v857 = vsel %vm824, %v855, %v856
      %v858 = vrot.slane %v400, 2
      %v859 = vsel %vm824, %v856, %v858
      %v860 = vrot.slane %v401, 2
      %v861 = vrot.slane %v402, 2
      %v862 = vsel %vm824, %v860, %v861
      %v863 = vrot.slane %v403, 2
      %v864 = vsel %vm824, %v861, %v863
      %v881 = vpack.c.bf16 %v829, %v827
      %v882 = vpack.c.bf16 %v834, %v832
      %v883 = vpack.c.bf16 %v839, %v837
      %v884 = vpack.c.bf16 %v844, %v842
      %v885 = vpack.c.bf16 %v849, %v847
      %v886 = vpack.c.bf16 %v854, %v852
      %v887 = vpack.c.bf16 %v859, %v857
      %v888 = vpack.c.bf16 %v864, %v862
      %s889 = scalar_lea.vmem %s2, 128
      %v890 = vld [vmem:[%s889] sm:$0xf]
      %v891 = vld [vmem:[%s889 + $0x4] sm:$0xf]
      %v892 = vld [vmem:[%s889 + $0x8] sm:$0xf]
      %v893 = vld [vmem:[%s889 + $0xc] sm:$0xf]
      %v894 = vld [vmem:[%s889 + $0x10] sm:$0xf]
      %v895 = vld [vmem:[%s889 + $0x14] sm:$0xf]
      %v896 = vld [vmem:[%s889 + $0x18] sm:$0xf]
      %v897 = vld [vmem:[%s889 + $0x1c] sm:$0xf]
      %v898 = vld [vmem:[%s889 + $0x20] sm:$0xf]
      %v899 = vld [vmem:[%s889 + $0x24] sm:$0xf]
      %v900 = vld [vmem:[%s889 + $0x28] sm:$0xf]
      %v901 = vld [vmem:[%s889 + $0x2c] sm:$0xf]
      %v902 = vld [vmem:[%s889 + $0x30] sm:$0xf]
      %v903 = vld [vmem:[%s889 + $0x34] sm:$0xf]
      %v904 = vld [vmem:[%s889 + $0x38] sm:$0xf]
      %v905 = vld [vmem:[%s889 + $0x3c] sm:$0xf]
      %v922 = vunpack.c.l.b16 %v890
      %v923 = vunpack.c.l.b16 %v891
      %v924 = vunpack.c.l.b16 %v892
      %v925 = vunpack.c.l.b16 %v893
      %v926 = vunpack.c.l.b16 %v894
      %v927 = vunpack.c.l.b16 %v895
      %v928 = vunpack.c.l.b16 %v896
      %v929 = vunpack.c.l.b16 %v897
      %v930 = vunpack.c.l.b16 %v898
      %v931 = vunpack.c.l.b16 %v899
      %v932 = vunpack.c.l.b16 %v900
      %v933 = vunpack.c.l.b16 %v901
      %v934 = vunpack.c.l.b16 %v902
      %v935 = vunpack.c.l.b16 %v903
      %v936 = vunpack.c.l.b16 %v904
      %v937 = vunpack.c.l.b16 %v905
      %v938 = vpack.c.b16 %v923, %v922
      %v939 = vpack.c.b16 %v925, %v924
      %v940 = vpack.c.b16 %v927, %v926
      %v941 = vpack.c.b16 %v929, %v928
      %v942 = vpack.c.b16 %v931, %v930
      %v943 = vpack.c.b16 %v933, %v932
      %v944 = vpack.c.b16 %v935, %v934
      %v945 = vpack.c.b16 %v937, %v936
      %954 = vmatprep.subr.bf16.mxu0 0
      %955 = vmatpush1.bf16.msra.mxu0 %v938
      %956 = vmatprep.subr.bf16.mxu0 0
      %957 = vmatpush1.bf16.msra.mxu0 %v939
      %958 = vmatprep.subr.bf16.mxu0 0
      %959 = vmatpush1.bf16.msra.mxu0 %v940
      %960 = vmatprep.subr.bf16.mxu0 0
      %961 = vmatpush1.bf16.msra.mxu0 %v941
      %962 = vmatprep.subr.bf16.mxu0 0
      %963 = vmatpush1.bf16.msra.mxu0 %v942
      %964 = vmatprep.subr.bf16.mxu0 0
      %965 = vmatpush1.bf16.msra.mxu0 %v943
      %966 = vmatprep.subr.bf16.mxu0 0
      %967 = vmatpush1.bf16.msra.mxu0 %v944
      %968 = vmatprep.subr.bf16.mxu0 0
      %969 = vmatpush1.bf16.msra.mxu0 %v945
      %970 = vmatprep.subr.bf16.mxu0 0
      %971 = vmatpush1.bf16.msra.mxu0 0
      %972 = vmatprep.subr.bf16.mxu0 0
      %973 = vmatpush1.bf16.msra.mxu0 0
      %974 = vmatprep.subr.bf16.mxu0 0
      %975 = vmatpush1.bf16.msra.mxu0 0
      %976 = vmatprep.subr.bf16.mxu0 0
      %977 = vmatpush1.bf16.msra.mxu0 0
      %978 = vmatprep.subr.bf16.mxu0 0
      %979 = vmatpush1.bf16.msra.mxu0 0
      %980 = vmatprep.subr.bf16.mxu0 0
      %981 = vmatpush1.bf16.msra.mxu0 0
      %982 = vmatprep.subr.bf16.mxu0 0
      %983 = vmatpush1.bf16.msra.mxu0 0
      %984 = vmatprep.subr.bf16.mxu0 0
      %985 = vmatpush1.bf16.msra.mxu0 0
      %986 = vmatprep.mubr.bf16.mxu0 0
      %987 = vmatmul.mubr.bf16.gmra.mrb[0].mxu0 %v881
      %v988 = vpop.f32.mrb[0].mxu0
      %v989 = vadd.f32 0.0, %v988
      %v990 = vpop.f32.mrb[0].mxu0
      %v991 = vpop.f32.mrb[0].mxu0
      %v992 = vadd.f32 0.0, %v991
      %v993 = vpop.f32.mrb[0].mxu0
      %994 = vmatprep.mubr.bf16.mxu0 0
      %995 = vmatmul.mubr.bf16.gmra.mrb[0].mxu0 %v882
      %v996 = vpop.f32.mrb[0].mxu0
      %v997 = vadd.f32 0.0, %v996
      %v998 = vpop.f32.mrb[0].mxu0
      %v999 = vpop.f32.mrb[0].mxu0
      %v1000 = vadd.f32 0.0, %v999
      %v1001 = vpop.f32.mrb[0].mxu0
      %1002 = vmatprep.mubr.bf16.mxu0 0
      %1003 = vmatmul.mubr.bf16.gmra.mrb[0].mxu0 %v883
      %v1004 = vpop.f32.mrb[0].mxu0
      %v1005 = vadd.f32 0.0, %v1004
      %v1006 = vpop.f32.mrb[0].mxu0
      %v1007 = vpop.f32.mrb[0].mxu0
      %v1008 = vadd.f32 0.0, %v1007
      %v1009 = vpop.f32.mrb[0].mxu0
      %1010 = vmatprep.mubr.bf16.mxu0 0
      %1011 = vmatmul.mubr.bf16.gmra.mrb[0].mxu0 %v884
      %v1012 = vpop.f32.mrb[0].mxu0
      %v1013 = vadd.f32 0.0, %v1012
      %v1014 = vpop.f32.mrb[0].mxu0
      %v1015 = vpop.f32.mrb[0].mxu0
      %v1016 = vadd.f32 0.0, %v1015
      %v1017 = vpop.f32.mrb[0].mxu0
      %1018 = vmatprep.mubr.bf16.mxu0 0
      %1019 = vmatmul.mubr.bf16.gmra.mrb[0].mxu0 %v885
      %v1020 = vpop.f32.mrb[0].mxu0
      %v1021 = vadd.f32 0.0, %v1020
      %v1022 = vpop.f32.mrb[0].mxu0
      %v1023 = vpop.f32.mrb[0].mxu0
      %v1024 = vadd.f32 0.0, %v1023
      %v1025 = vpop.f32.mrb[0].mxu0
      %1026 = vmatprep.mubr.bf16.mxu0 0
      %1027 = vmatmul.mubr.bf16.gmra.mrb[0].mxu0 %v886
      %v1028 = vpop.f32.mrb[0].mxu0
      %v1029 = vadd.f32 0.0, %v1028
      %v1030 = vpop.f32.mrb[0].mxu0
      %v1031 = vpop.f32.mrb[0].mxu0
      %v1032 = vadd.f32 0.0, %v1031
      %v1033 = vpop.f32.mrb[0].mxu0
      %1034 = vmatprep.mubr.bf16.mxu0 0
      %1035 = vmatmul.mubr.bf16.gmra.mrb[0].mxu0 %v887
      %v1036 = vpop.f32.mrb[0].mxu0
      %v1037 = vadd.f32 0.0, %v1036
      %v1038 = vpop.f32.mrb[0].mxu0
      %v1039 = vpop.f32.mrb[0].mxu0
      %v1040 = vadd.f32 0.0, %v1039
      %v1041 = vpop.f32.mrb[0].mxu0
      %1042 = vmatprep.mubr.bf16.mxu0 0
      %1043 = vmatmul.mubr.bf16.gmra.mrb[0].mxu0 %v888
      %v1044 = vpop.f32.mrb[0].mxu0
      %v1045 = vadd.f32 0.0, %v1044
      %v1046 = vpop.f32.mrb[0].mxu0
      %v1047 = vpop.f32.mrb[0].mxu0
      %v1048 = vadd.f32 0.0, %v1047
      %v1049 = vpop.f32.mrb[0].mxu0
      %1050 = vdwg.mxu0
      %v1051 = vadd.f32 %v762, %v989
      %v1052 = vadd.f32 %v765, %v992
      %v1053 = vadd.f32 %v770, %v997
      %v1054 = vadd.f32 %v773, %v1000
      %v1055 = vadd.f32 %v778, %v1005
      %v1056 = vadd.f32 %v781, %v1008
      %v1057 = vadd.f32 %v786, %v1013
      %v1058 = vadd.f32 %v789, %v1016
      %v1059 = vadd.f32 %v794, %v1021
      %v1060 = vadd.f32 %v797, %v1024
      %v1061 = vadd.f32 %v802, %v1029
      %v1062 = vadd.f32 %v805, %v1032
      %v1063 = vadd.f32 %v810, %v1037
      %v1064 = vadd.f32 %v813, %v1040
      %v1065 = vadd.f32 %v818, %v1045
      %v1066 = vadd.f32 %v821, %v1048
      %s1067 = sadd.s32 %s352, 1
      %s1068 = smul.u32 %s1067, 3
      %s1069 = smul.addr %s1068, 4
      %s1070 = scalar_lea.vmem %s334, %s1069
      %v1071 = vld [vmem:[%s1070] sm:$0xf]
      %v1072 = vld [vmem:[%s1070 + $0x4] sm:$0xf]
      %v1073 = vld [vmem:[%s1070 + $0x8] sm:$0x1]
      %v1074 = vld [vmem:[%s1070 + $0xc] sm:$0xf]
      %v1075 = vld [vmem:[%s1070 + $0x10] sm:$0xf]
      %v1076 = vld [vmem:[%s1070 + $0x14] sm:$0x1]
      %v1077 = vld [vmem:[%s1070 + $0x18] sm:$0xf]
      %v1078 = vld [vmem:[%s1070 + $0x1c] sm:$0xf]
      %v1079 = vld [vmem:[%s1070 + $0x20] sm:$0x1]
      %v1080 = vld [vmem:[%s1070 + $0x24] sm:$0xf]
      %v1081 = vld [vmem:[%s1070 + $0x28] sm:$0xf]
      %v1082 = vld [vmem:[%s1070 + $0x2c] sm:$0x1]
      %v1083 = vld [vmem:[%s1070 + $0x30] sm:$0xf]
      %v1084 = vld [vmem:[%s1070 + $0x34] sm:$0xf]
      %v1085 = vld [vmem:[%s1070 + $0x38] sm:$0x1]
      %v1086 = vld [vmem:[%s1070 + $0x3c] sm:$0xf]
      %v1087 = vld [vmem:[%s1070 + $0x40] sm:$0xf]
      %v1088 = vld [vmem:[%s1070 + $0x44] sm:$0x1]
      %v1089 = vld [vmem:[%s1070 + $0x48] sm:$0xf]
      %v1090 = vld [vmem:[%s1070 + $0x4c] sm:$0xf]
      %v1091 = vld [vmem:[%s1070 + $0x50] sm:$0x1]
      %v1092 = vld [vmem:[%s1070 + $0x54] sm:$0xf]
      %v1093 = vld [vmem:[%s1070 + $0x58] sm:$0xf]
      %v1094 = vld [vmem:[%s1070 + $0x5c] sm:$0x1]
      %v1095 = vunpack.c.l.bf16 %v1071
      %v1096 = vunpack.c.l.bf16 %v1072
      %v1097 = vunpack.c.l.bf16 %v1073
      %v1098 = vunpack.c.l.bf16 %v1074
      %v1099 = vunpack.c.l.bf16 %v1075
      %v1100 = vunpack.c.l.bf16 %v1076
      %v1101 = vunpack.c.l.bf16 %v1077
      %v1102 = vunpack.c.l.bf16 %v1078
      %v1103 = vunpack.c.l.bf16 %v1079
      %v1104 = vunpack.c.l.bf16 %v1080
      %v1105 = vunpack.c.l.bf16 %v1081
      %v1106 = vunpack.c.l.bf16 %v1082
      %v1107 = vunpack.c.l.bf16 %v1083
      %v1108 = vunpack.c.l.bf16 %v1084
      %v1109 = vunpack.c.l.bf16 %v1085
      %v1110 = vunpack.c.l.bf16 %v1086
      %v1111 = vunpack.c.l.bf16 %v1087
      %v1112 = vunpack.c.l.bf16 %v1088
      %v1113 = vunpack.c.l.bf16 %v1089
      %v1114 = vunpack.c.l.bf16 %v1090
      %v1115 = vunpack.c.l.bf16 %v1091
      %v1116 = vunpack.c.l.bf16 %v1092
      %v1117 = vunpack.c.l.bf16 %v1093
      %v1118 = vunpack.c.l.bf16 %v1094
      %v1119 = vpack.c.bf16 %v1096, %v1095
      %v1120 = vpack.c.bf16 %v1099, %v1098
      %v1121 = vpack.c.bf16 %v1102, %v1101
      %v1122 = vpack.c.bf16 %v1105, %v1104
      %v1123 = vpack.c.bf16 %v1108, %v1107
      %v1124 = vpack.c.bf16 %v1111, %v1110
      %v1125 = vpack.c.bf16 %v1114, %v1113
      %v1126 = vpack.c.bf16 %v1117, %v1116
      %s1127 = scalar_lea.vmem %s2, 192
      %v1128 = vld [vmem:[%s1127] sm:$0xf]
      %v1129 = vld [vmem:[%s1127 + $0x4] sm:$0xf]
      %v1130 = vld [vmem:[%s1127 + $0x8] sm:$0xf]
      %v1131 = vld [vmem:[%s1127 + $0xc] sm:$0xf]
      %v1132 = vld [vmem:[%s1127 + $0x10] sm:$0xf]
      %v1133 = vld [vmem:[%s1127 + $0x14] sm:$0xf]
      %v1134 = vld [vmem:[%s1127 + $0x18] sm:$0xf]
      %v1135 = vld [vmem:[%s1127 + $0x1c] sm:$0xf]
      %v1136 = vld [vmem:[%s1127 + $0x20] sm:$0xf]
      %v1137 = vld [vmem:[%s1127 + $0x24] sm:$0xf]
      %v1138 = vld [vmem:[%s1127 + $0x28] sm:$0xf]
      %v1139 = vld [vmem:[%s1127 + $0x2c] sm:$0xf]
      %v1140 = vld [vmem:[%s1127 + $0x30] sm:$0xf]
      %v1141 = vld [vmem:[%s1127 + $0x34] sm:$0xf]
      %v1142 = vld [vmem:[%s1127 + $0x38] sm:$0xf]
      %v1143 = vld [vmem:[%s1127 + $0x3c] sm:$0xf]
      %v1160 = vunpack.c.l.b16 %v1128
      %v1161 = vunpack.c.l.b16 %v1129
      %v1162 = vunpack.c.l.b16 %v1130
      %v1163 = vunpack.c.l.b16 %v1131
      %v1164 = vunpack.c.l.b16 %v1132
      %v1165 = vunpack.c.l.b16 %v1133
      %v1166 = vunpack.c.l.b16 %v1134
      %v1167 = vunpack.c.l.b16 %v1135
      %v1168 = vunpack.c.l.b16 %v1136
      %v1169 = vunpack.c.l.b16 %v1137
      %v1170 = vunpack.c.l.b16 %v1138
      %v1171 = vunpack.c.l.b16 %v1139
      %v1172 = vunpack.c.l.b16 %v1140
      %v1173 = vunpack.c.l.b16 %v1141
      %v1174 = vunpack.c.l.b16 %v1142
      %v1175 = vunpack.c.l.b16 %v1143
      %v1176 = vpack.c.b16 %v1161, %v1160
      %v1177 = vpack.c.b16 %v1163, %v1162
      %v1178 = vpack.c.b16 %v1165, %v1164
      %v1179 = vpack.c.b16 %v1167, %v1166
      %v1180 = vpack.c.b16 %v1169, %v1168
      %v1181 = vpack.c.b16 %v1171, %v1170
      %v1182 = vpack.c.b16 %v1173, %v1172
      %v1183 = vpack.c.b16 %v1175, %v1174
      %1192 = vmatprep.subr.bf16.mxu0 0
      %1193 = vmatpush1.bf16.msra.mxu0 %v1176
      %1194 = vmatprep.subr.bf16.mxu0 0
      %1195 = vmatpush1.bf16.msra.mxu0 %v1177
      %1196 = vmatprep.subr.bf16.mxu0 0
      %1197 = vmatpush1.bf16.msra.mxu0 %v1178
      %1198 = vmatprep.subr.bf16.mxu0 0
      %1199 = vmatpush1.bf16.msra.mxu0 %v1179
      %1200 = vmatprep.subr.bf16.mxu0 0
      %1201 = vmatpush1.bf16.msra.mxu0 %v1180
      %1202 = vmatprep.subr.bf16.mxu0 0
      %1203 = vmatpush1.bf16.msra.mxu0 %v1181
      %1204 = vmatprep.subr.bf16.mxu0 0
      %1205 = vmatpush1.bf16.msra.mxu0 %v1182
      %1206 = vmatprep.subr.bf16.mxu0 0
      %1207 = vmatpush1.bf16.msra.mxu0 %v1183
      %1208 = vmatprep.subr.bf16.mxu0 0
      %1209 = vmatpush1.bf16.msra.mxu0 0
      %1210 = vmatprep.subr.bf16.mxu0 0
      %1211 = vmatpush1.bf16.msra.mxu0 0
      %1212 = vmatprep.subr.bf16.mxu0 0
      %1213 = vmatpush1.bf16.msra.mxu0 0
      %1214 = vmatprep.subr.bf16.mxu0 0
      %1215 = vmatpush1.bf16.msra.mxu0 0
      %1216 = vmatprep.subr.bf16.mxu0 0
      %1217 = vmatpush1.bf16.msra.mxu0 0
      %1218 = vmatprep.subr.bf16.mxu0 0
      %1219 = vmatpush1.bf16.msra.mxu0 0
      %1220 = vmatprep.subr.bf16.mxu0 0
      %1221 = vmatpush1.bf16.msra.mxu0 0
      %1222 = vmatprep.subr.bf16.mxu0 0
      %1223 = vmatpush1.bf16.msra.mxu0 0
      %1224 = vmatprep.mubr.bf16.mxu0 0
      %1225 = vmatmul.mubr.bf16.gmra.mrb[0].mxu0 %v1119
      %v1226 = vpop.f32.mrb[0].mxu0
      %v1227 = vadd.f32 0.0, %v1226
      %v1228 = vpop.f32.mrb[0].mxu0
      %v1229 = vpop.f32.mrb[0].mxu0
      %v1230 = vadd.f32 0.0, %v1229
      %v1231 = vpop.f32.mrb[0].mxu0
      %1232 = vmatprep.mubr.bf16.mxu0 0
      %1233 = vmatmul.mubr.bf16.gmra.mrb[0].mxu0 %v1120
      %v1234 = vpop.f32.mrb[0].mxu0
      %v1235 = vadd.f32 0.0, %v1234
      %v1236 = vpop.f32.mrb[0].mxu0
      %v1237 = vpop.f32.mrb[0].mxu0
      %v1238 = vadd.f32 0.0, %v1237
      %v1239 = vpop.f32.mrb[0].mxu0
      %1240 = vmatprep.mubr.bf16.mxu0 0
      %1241 = vmatmul.mubr.bf16.gmra.mrb[0].mxu0 %v1121
      %v1242 = vpop.f32.mrb[0].mxu0
      %v1243 = vadd.f32 0.0, %v1242
      %v1244 = vpop.f32.mrb[0].mxu0
      %v1245 = vpop.f32.mrb[0].mxu0
      %v1246 = vadd.f32 0.0, %v1245
      %v1247 = vpop.f32.mrb[0].mxu0
      %1248 = vmatprep.mubr.bf16.mxu0 0
      %1249 = vmatmul.mubr.bf16.gmra.mrb[0].mxu0 %v1122
      %v1250 = vpop.f32.mrb[0].mxu0
      %v1251 = vadd.f32 0.0, %v1250
      %v1252 = vpop.f32.mrb[0].mxu0
      %v1253 = vpop.f32.mrb[0].mxu0
      %v1254 = vadd.f32 0.0, %v1253
      %v1255 = vpop.f32.mrb[0].mxu0
      %1256 = vmatprep.mubr.bf16.mxu0 0
      %1257 = vmatmul.mubr.bf16.gmra.mrb[0].mxu0 %v1123
      %v1258 = vpop.f32.mrb[0].mxu0
      %v1259 = vadd.f32 0.0, %v1258
      %v1260 = vpop.f32.mrb[0].mxu0
      %v1261 = vpop.f32.mrb[0].mxu0
      %v1262 = vadd.f32 0.0, %v1261
      %v1263 = vpop.f32.mrb[0].mxu0
      %1264 = vmatprep.mubr.bf16.mxu0 0
      %1265 = vmatmul.mubr.bf16.gmra.mrb[0].mxu0 %v1124
      %v1266 = vpop.f32.mrb[0].mxu0
      %v1267 = vadd.f32 0.0, %v1266
      %v1268 = vpop.f32.mrb[0].mxu0
      %v1269 = vpop.f32.mrb[0].mxu0
      %v1270 = vadd.f32 0.0, %v1269
      %v1271 = vpop.f32.mrb[0].mxu0
      %1272 = vmatprep.mubr.bf16.mxu0 0
      %1273 = vmatmul.mubr.bf16.gmra.mrb[0].mxu0 %v1125
      %v1274 = vpop.f32.mrb[0].mxu0
      %v1275 = vadd.f32 0.0, %v1274
      %v1276 = vpop.f32.mrb[0].mxu0
      %v1277 = vpop.f32.mrb[0].mxu0
      %v1278 = vadd.f32 0.0, %v1277
      %v1279 = vpop.f32.mrb[0].mxu0
      %1280 = vmatprep.mubr.bf16.mxu0 0
      %1281 = vmatmul.mubr.bf16.gmra.mrb[0].mxu0 %v1126
      %v1282 = vpop.f32.mrb[0].mxu0
      %v1283 = vadd.f32 0.0, %v1282
      %v1284 = vpop.f32.mrb[0].mxu0
      %v1285 = vpop.f32.mrb[0].mxu0
      %v1286 = vadd.f32 0.0, %v1285
      %v1287 = vpop.f32.mrb[0].mxu0
      %1288 = vdwg.mxu0
      %v1289 = vadd.f32 %v1051, %v1227
      %v1290 = vadd.f32 %v1052, %v1230
      %v1291 = vadd.f32 %v1053, %v1235
      %v1292 = vadd.f32 %v1054, %v1238
      %v1293 = vadd.f32 %v1055, %v1243
      %v1294 = vadd.f32 %v1056, %v1246
      %v1295 = vadd.f32 %v1057, %v1251
      %v1296 = vadd.f32 %v1058, %v1254
      %v1297 = vadd.f32 %v1059, %v1259
      %v1298 = vadd.f32 %v1060, %v1262
      %v1299 = vadd.f32 %v1061, %v1267
      %v1300 = vadd.f32 %v1062, %v1270
      %v1301 = vadd.f32 %v1063, %v1275
      %v1302 = vadd.f32 %v1064, %v1278
      %v1303 = vadd.f32 %v1065, %v1283
      %v1304 = vadd.f32 %v1066, %v1286
      %v1329 = vrot.slane %v1095, 1
      %v1330 = vrot.slane %v1096, 1
      %v1331 = vsel %vm452, %v1329, %v1330
      %v1332 = vrot.slane %v1097, 1
      %v1333 = vsel %vm452, %v1330, %v1332
      %v1334 = vrot.slane %v1098, 1
      %v1335 = vrot.slane %v1099, 1
      %v1336 = vsel %vm452, %v1334, %v1335
      %v1337 = vrot.slane %v1100, 1
      %v1338 = vsel %vm452, %v1335, %v1337
      %v1339 = vrot.slane %v1101, 1
      %v1340 = vrot.slane %v1102, 1
      %v1341 = vsel %vm452, %v1339, %v1340
      %v1342 = vrot.slane %v1103, 1
      %v1343 = vsel %vm452, %v1340, %v1342
      %v1344 = vrot.slane %v1104, 1
      %v1345 = vrot.slane %v1105, 1
      %v1346 = vsel %vm452, %v1344, %v1345
      %v1347 = vrot.slane %v1106, 1
      %v1348 = vsel %vm452, %v1345, %v1347
      %v1349 = vrot.slane %v1107, 1
      %v1350 = vrot.slane %v1108, 1
      %v1351 = vsel %vm452, %v1349, %v1350
      %v1352 = vrot.slane %v1109, 1
      %v1353 = vsel %vm452, %v1350, %v1352
      %v1354 = vrot.slane %v1110, 1
      %v1355 = vrot.slane %v1111, 1
      %v1356 = vsel %vm452, %v1354, %v1355
      %v1357 = vrot.slane %v1112, 1
      %v1358 = vsel %vm452, %v1355, %v1357
      %v1359 = vrot.slane %v1113, 1
      %v1360 = vrot.slane %v1114, 1
      %v1361 = vsel %vm452, %v1359, %v1360
      %v1362 = vrot.slane %v1115, 1
      %v1363 = vsel %vm452, %v1360, %v1362
      %v1364 = vrot.slane %v1116, 1
      %v1365 = vrot.slane %v1117, 1
      %v1366 = vsel %vm452, %v1364, %v1365
      %v1367 = vrot.slane %v1118, 1
      %v1368 = vsel %vm452, %v1365, %v1367
      %v1385 = vpack.c.bf16 %v1333, %v1331
      %v1386 = vpack.c.bf16 %v1338, %v1336
      %v1387 = vpack.c.bf16 %v1343, %v1341
      %v1388 = vpack.c.bf16 %v1348, %v1346
      %v1389 = vpack.c.bf16 %v1353, %v1351
      %v1390 = vpack.c.bf16 %v1358, %v1356
      %v1391 = vpack.c.bf16 %v1363, %v1361
      %v1392 = vpack.c.bf16 %v1368, %v1366
      %s1393 = scalar_lea.vmem %s2, 256
      %v1394 = vld [vmem:[%s1393] sm:$0xf]
      %v1395 = vld [vmem:[%s1393 + $0x4] sm:$0xf]
      %v1396 = vld [vmem:[%s1393 + $0x8] sm:$0xf]
      %v1397 = vld [vmem:[%s1393 + $0xc] sm:$0xf]
      %v1398 = vld [vmem:[%s1393 + $0x10] sm:$0xf]
      %v1399 = vld [vmem:[%s1393 + $0x14] sm:$0xf]
      %v1400 = vld [vmem:[%s1393 + $0x18] sm:$0xf]
      %v1401 = vld [vmem:[%s1393 + $0x1c] sm:$0xf]
      %v1402 = vld [vmem:[%s1393 + $0x20] sm:$0xf]
      %v1403 = vld [vmem:[%s1393 + $0x24] sm:$0xf]
      %v1404 = vld [vmem:[%s1393 + $0x28] sm:$0xf]
      %v1405 = vld [vmem:[%s1393 + $0x2c] sm:$0xf]
      %v1406 = vld [vmem:[%s1393 + $0x30] sm:$0xf]
      %v1407 = vld [vmem:[%s1393 + $0x34] sm:$0xf]
      %v1408 = vld [vmem:[%s1393 + $0x38] sm:$0xf]
      %v1409 = vld [vmem:[%s1393 + $0x3c] sm:$0xf]
      %v1426 = vunpack.c.l.b16 %v1394
      %v1427 = vunpack.c.l.b16 %v1395
      %v1428 = vunpack.c.l.b16 %v1396
      %v1429 = vunpack.c.l.b16 %v1397
      %v1430 = vunpack.c.l.b16 %v1398
      %v1431 = vunpack.c.l.b16 %v1399
      %v1432 = vunpack.c.l.b16 %v1400
      %v1433 = vunpack.c.l.b16 %v1401
      %v1434 = vunpack.c.l.b16 %v1402
      %v1435 = vunpack.c.l.b16 %v1403
      %v1436 = vunpack.c.l.b16 %v1404
      %v1437 = vunpack.c.l.b16 %v1405
      %v1438 = vunpack.c.l.b16 %v1406
      %v1439 = vunpack.c.l.b16 %v1407
      %v1440 = vunpack.c.l.b16 %v1408
      %v1441 = vunpack.c.l.b16 %v1409
      %v1442 = vpack.c.b16 %v1427, %v1426
      %v1443 = vpack.c.b16 %v1429, %v1428
      %v1444 = vpack.c.b16 %v1431, %v1430
      %v1445 = vpack.c.b16 %v1433, %v1432
      %v1446 = vpack.c.b16 %v1435, %v1434
      %v1447 = vpack.c.b16 %v1437, %v1436
      %v1448 = vpack.c.b16 %v1439, %v1438
      %v1449 = vpack.c.b16 %v1441, %v1440
      %1458 = vmatprep.subr.bf16.mxu0 0
      %1459 = vmatpush1.bf16.msra.mxu0 %v1442
      %1460 = vmatprep.subr.bf16.mxu0 0
      %1461 = vmatpush1.bf16.msra.mxu0 %v1443
      %1462 = vmatprep.subr.bf16.mxu0 0
      %1463 = vmatpush1.bf16.msra.mxu0 %v1444
      %1464 = vmatprep.subr.bf16.mxu0 0
      %1465 = vmatpush1.bf16.msra.mxu0 %v1445
      %1466 = vmatprep.subr.bf16.mxu0 0
      %1467 = vmatpush1.bf16.msra.mxu0 %v1446
      %1468 = vmatprep.subr.bf16.mxu0 0
      %1469 = vmatpush1.bf16.msra.mxu0 %v1447
      %1470 = vmatprep.subr.bf16.mxu0 0
      %1471 = vmatpush1.bf16.msra.mxu0 %v1448
      %1472 = vmatprep.subr.bf16.mxu0 0
      %1473 = vmatpush1.bf16.msra.mxu0 %v1449
      %1474 = vmatprep.subr.bf16.mxu0 0
      %1475 = vmatpush1.bf16.msra.mxu0 0
      %1476 = vmatprep.subr.bf16.mxu0 0
      %1477 = vmatpush1.bf16.msra.mxu0 0
      %1478 = vmatprep.subr.bf16.mxu0 0
      %1479 = vmatpush1.bf16.msra.mxu0 0
      %1480 = vmatprep.subr.bf16.mxu0 0
      %1481 = vmatpush1.bf16.msra.mxu0 0
      %1482 = vmatprep.subr.bf16.mxu0 0
      %1483 = vmatpush1.bf16.msra.mxu0 0
      %1484 = vmatprep.subr.bf16.mxu0 0
      %1485 = vmatpush1.bf16.msra.mxu0 0
      %1486 = vmatprep.subr.bf16.mxu0 0
      %1487 = vmatpush1.bf16.msra.mxu0 0
      %1488 = vmatprep.subr.bf16.mxu0 0
      %1489 = vmatpush1.bf16.msra.mxu0 0
      %1490 = vmatprep.mubr.bf16.mxu0 0
      %1491 = vmatmul.mubr.bf16.gmra.mrb[0].mxu0 %v1385
      %v1492 = vpop.f32.mrb[0].mxu0
      %v1493 = vadd.f32 0.0, %v1492
      %v1494 = vpop.f32.mrb[0].mxu0
      %v1495 = vpop.f32.mrb[0].mxu0
      %v1496 = vadd.f32 0.0, %v1495
      %v1497 = vpop.f32.mrb[0].mxu0
      %1498 = vmatprep.mubr.bf16.mxu0 0
      %1499 = vmatmul.mubr.bf16.gmra.mrb[0].mxu0 %v1386
      %v1500 = vpop.f32.mrb[0].mxu0
      %v1501 = vadd.f32 0.0, %v1500
      %v1502 = vpop.f32.mrb[0].mxu0
      %v1503 = vpop.f32.mrb[0].mxu0
      %v1504 = vadd.f32 0.0, %v1503
      %v1505 = vpop.f32.mrb[0].mxu0
      %1506 = vmatprep.mubr.bf16.mxu0 0
      %1507 = vmatmul.mubr.bf16.gmra.mrb[0].mxu0 %v1387
      %v1508 = vpop.f32.mrb[0].mxu0
      %v1509 = vadd.f32 0.0, %v1508
      %v1510 = vpop.f32.mrb[0].mxu0
      %v1511 = vpop.f32.mrb[0].mxu0
      %v1512 = vadd.f32 0.0, %v1511
      %v1513 = vpop.f32.mrb[0].mxu0
      %1514 = vmatprep.mubr.bf16.mxu0 0
      %1515 = vmatmul.mubr.bf16.gmra.mrb[0].mxu0 %v1388
      %v1516 = vpop.f32.mrb[0].mxu0
      %v1517 = vadd.f32 0.0, %v1516
      %v1518 = vpop.f32.mrb[0].mxu0
      %v1519 = vpop.f32.mrb[0].mxu0
      %v1520 = vadd.f32 0.0, %v1519
      %v1521 = vpop.f32.mrb[0].mxu0
      %1522 = vmatprep.mubr.bf16.mxu0 0
      %1523 = vmatmul.mubr.bf16.gmra.mrb[0].mxu0 %v1389
      %v1524 = vpop.f32.mrb[0].mxu0
      %v1525 = vadd.f32 0.0, %v1524
      %v1526 = vpop.f32.mrb[0].mxu0
      %v1527 = vpop.f32.mrb[0].mxu0
      %v1528 = vadd.f32 0.0, %v1527
      %v1529 = vpop.f32.mrb[0].mxu0
      %1530 = vmatprep.mubr.bf16.mxu0 0
      %1531 = vmatmul.mubr.bf16.gmra.mrb[0].mxu0 %v1390
      %v1532 = vpop.f32.mrb[0].mxu0
      %v1533 = vadd.f32 0.0, %v1532
      %v1534 = vpop.f32.mrb[0].mxu0
      %v1535 = vpop.f32.mrb[0].mxu0
      %v1536 = vadd.f32 0.0, %v1535
      %v1537 = vpop.f32.mrb[0].mxu0
      %1538 = vmatprep.mubr.bf16.mxu0 0
      %1539 = vmatmul.mubr.bf16.gmra.mrb[0].mxu0 %v1391
      %v1540 = vpop.f32.mrb[0].mxu0
      %v1541 = vadd.f32 0.0, %v1540
      %v1542 = vpop.f32.mrb[0].mxu0
      %v1543 = vpop.f32.mrb[0].mxu0
      %v1544 = vadd.f32 0.0, %v1543
      %v1545 = vpop.f32.mrb[0].mxu0
      %1546 = vmatprep.mubr.bf16.mxu0 0
      %1547 = vmatmul.mubr.bf16.gmra.mrb[0].mxu0 %v1392
      %v1548 = vpop.f32.mrb[0].mxu0
      %v1549 = vadd.f32 0.0, %v1548
      %v1550 = vpop.f32.mrb[0].mxu0
      %v1551 = vpop.f32.mrb[0].mxu0
      %v1552 = vadd.f32 0.0, %v1551
      %v1553 = vpop.f32.mrb[0].mxu0
      %1554 = vdwg.mxu0
      %v1555 = vadd.f32 %v1289, %v1493
      %v1556 = vadd.f32 %v1290, %v1496
      %v1557 = vadd.f32 %v1291, %v1501
      %v1558 = vadd.f32 %v1292, %v1504
      %v1559 = vadd.f32 %v1293, %v1509
      %v1560 = vadd.f32 %v1294, %v1512
      %v1561 = vadd.f32 %v1295, %v1517
      %v1562 = vadd.f32 %v1296, %v1520
      %v1563 = vadd.f32 %v1297, %v1525
      %v1564 = vadd.f32 %v1298, %v1528
      %v1565 = vadd.f32 %v1299, %v1533
      %v1566 = vadd.f32 %v1300, %v1536
      %v1567 = vadd.f32 %v1301, %v1541
      %v1568 = vadd.f32 %v1302, %v1544
      %v1569 = vadd.f32 %v1303, %v1549
      %v1570 = vadd.f32 %v1304, %v1552
      %v1571 = vrot.slane %v1095, 2
      %v1572 = vrot.slane %v1096, 2
      %v1573 = vsel %vm824, %v1571, %v1572
      %v1574 = vrot.slane %v1097, 2
      %v1575 = vsel %vm824, %v1572, %v1574
      %v1576 = vrot.slane %v1098, 2
      %v1577 = vrot.slane %v1099, 2
      %v1578 = vsel %vm824, %v1576, %v1577
      %v1579 = vrot.slane %v1100, 2
      %v1580 = vsel %vm824, %v1577, %v1579
      %v1581 = vrot.slane %v1101, 2
      %v1582 = vrot.slane %v1102, 2
      %v1583 = vsel %vm824, %v1581, %v1582
      %v1584 = vrot.slane %v1103, 2
      %v1585 = vsel %vm824, %v1582, %v1584
      %v1586 = vrot.slane %v1104, 2
      %v1587 = vrot.slane %v1105, 2
      %v1588 = vsel %vm824, %v1586, %v1587
      %v1589 = vrot.slane %v1106, 2
      %v1590 = vsel %vm824, %v1587, %v1589
      %v1591 = vrot.slane %v1107, 2
      %v1592 = vrot.slane %v1108, 2
      %v1593 = vsel %vm824, %v1591, %v1592
      %v1594 = vrot.slane %v1109, 2
      %v1595 = vsel %vm824, %v1592, %v1594
      %v1596 = vrot.slane %v1110, 2
      %v1597 = vrot.slane %v1111, 2
      %v1598 = vsel %vm824, %v1596, %v1597
      %v1599 = vrot.slane %v1112, 2
      %v1600 = vsel %vm824, %v1597, %v1599
      %v1601 = vrot.slane %v1113, 2
      %v1602 = vrot.slane %v1114, 2
      %v1603 = vsel %vm824, %v1601, %v1602
      %v1604 = vrot.slane %v1115, 2
      %v1605 = vsel %vm824, %v1602, %v1604
      %v1606 = vrot.slane %v1116, 2
      %v1607 = vrot.slane %v1117, 2
      %v1608 = vsel %vm824, %v1606, %v1607
      %v1609 = vrot.slane %v1118, 2
      %v1610 = vsel %vm824, %v1607, %v1609
      %v1627 = vpack.c.bf16 %v1575, %v1573
      %v1628 = vpack.c.bf16 %v1580, %v1578
      %v1629 = vpack.c.bf16 %v1585, %v1583
      %v1630 = vpack.c.bf16 %v1590, %v1588
      %v1631 = vpack.c.bf16 %v1595, %v1593
      %v1632 = vpack.c.bf16 %v1600, %v1598
      %v1633 = vpack.c.bf16 %v1605, %v1603
      %v1634 = vpack.c.bf16 %v1610, %v1608
      %s1635 = scalar_lea.vmem %s2, 320
      %v1636 = vld [vmem:[%s1635] sm:$0xf]
      %v1637 = vld [vmem:[%s1635 + $0x4] sm:$0xf]
      %v1638 = vld [vmem:[%s1635 + $0x8] sm:$0xf]
      %v1639 = vld [vmem:[%s1635 + $0xc] sm:$0xf]
      %v1640 = vld [vmem:[%s1635 + $0x10] sm:$0xf]
      %v1641 = vld [vmem:[%s1635 + $0x14] sm:$0xf]
      %v1642 = vld [vmem:[%s1635 + $0x18] sm:$0xf]
      %v1643 = vld [vmem:[%s1635 + $0x1c] sm:$0xf]
      %v1644 = vld [vmem:[%s1635 + $0x20] sm:$0xf]
      %v1645 = vld [vmem:[%s1635 + $0x24] sm:$0xf]
      %v1646 = vld [vmem:[%s1635 + $0x28] sm:$0xf]
      %v1647 = vld [vmem:[%s1635 + $0x2c] sm:$0xf]
      %v1648 = vld [vmem:[%s1635 + $0x30] sm:$0xf]
      %v1649 = vld [vmem:[%s1635 + $0x34] sm:$0xf]
      %v1650 = vld [vmem:[%s1635 + $0x38] sm:$0xf]
      %v1651 = vld [vmem:[%s1635 + $0x3c] sm:$0xf]
      %v1668 = vunpack.c.l.b16 %v1636
      %v1669 = vunpack.c.l.b16 %v1637
      %v1670 = vunpack.c.l.b16 %v1638
      %v1671 = vunpack.c.l.b16 %v1639
      %v1672 = vunpack.c.l.b16 %v1640
      %v1673 = vunpack.c.l.b16 %v1641
      %v1674 = vunpack.c.l.b16 %v1642
      %v1675 = vunpack.c.l.b16 %v1643
      %v1676 = vunpack.c.l.b16 %v1644
      %v1677 = vunpack.c.l.b16 %v1645
      %v1678 = vunpack.c.l.b16 %v1646
      %v1679 = vunpack.c.l.b16 %v1647
      %v1680 = vunpack.c.l.b16 %v1648
      %v1681 = vunpack.c.l.b16 %v1649
      %v1682 = vunpack.c.l.b16 %v1650
      %v1683 = vunpack.c.l.b16 %v1651
      %v1684 = vpack.c.b16 %v1669, %v1668
      %v1685 = vpack.c.b16 %v1671, %v1670
      %v1686 = vpack.c.b16 %v1673, %v1672
      %v1687 = vpack.c.b16 %v1675, %v1674
      %v1688 = vpack.c.b16 %v1677, %v1676
      %v1689 = vpack.c.b16 %v1679, %v1678
      %v1690 = vpack.c.b16 %v1681, %v1680
      %v1691 = vpack.c.b16 %v1683, %v1682
      %1700 = vmatprep.subr.bf16.mxu0 0
      %1701 = vmatpush1.bf16.msra.mxu0 %v1684
      %1702 = vmatprep.subr.bf16.mxu0 0
      %1703 = vmatpush1.bf16.msra.mxu0 %v1685
      %1704 = vmatprep.subr.bf16.mxu0 0
      %1705 = vmatpush1.bf16.msra.mxu0 %v1686
      %1706 = vmatprep.subr.bf16.mxu0 0
      %1707 = vmatpush1.bf16.msra.mxu0 %v1687
      %1708 = vmatprep.subr.bf16.mxu0 0
      %1709 = vmatpush1.bf16.msra.mxu0 %v1688
      %1710 = vmatprep.subr.bf16.mxu0 0
      %1711 = vmatpush1.bf16.msra.mxu0 %v1689
      %1712 = vmatprep.subr.bf16.mxu0 0
      %1713 = vmatpush1.bf16.msra.mxu0 %v1690
      %1714 = vmatprep.subr.bf16.mxu0 0
      %1715 = vmatpush1.bf16.msra.mxu0 %v1691
      %1716 = vmatprep.subr.bf16.mxu0 0
      %1717 = vmatpush1.bf16.msra.mxu0 0
      %1718 = vmatprep.subr.bf16.mxu0 0
      %1719 = vmatpush1.bf16.msra.mxu0 0
      %1720 = vmatprep.subr.bf16.mxu0 0
      %1721 = vmatpush1.bf16.msra.mxu0 0
      %1722 = vmatprep.subr.bf16.mxu0 0
      %1723 = vmatpush1.bf16.msra.mxu0 0
      %1724 = vmatprep.subr.bf16.mxu0 0
      %1725 = vmatpush1.bf16.msra.mxu0 0
      %1726 = vmatprep.subr.bf16.mxu0 0
      %1727 = vmatpush1.bf16.msra.mxu0 0
      %1728 = vmatprep.subr.bf16.mxu0 0
      %1729 = vmatpush1.bf16.msra.mxu0 0
      %1730 = vmatprep.subr.bf16.mxu0 0
      %1731 = vmatpush1.bf16.msra.mxu0 0
      %1732 = vmatprep.mubr.bf16.mxu0 0
      %1733 = vmatmul.mubr.bf16.gmra.mrb[0].mxu0 %v1627
      %v1734 = vpop.f32.mrb[0].mxu0
      %v1735 = vadd.f32 0.0, %v1734
      %v1736 = vpop.f32.mrb[0].mxu0
      %v1737 = vpop.f32.mrb[0].mxu0
      %v1738 = vadd.f32 0.0, %v1737
      %v1739 = vpop.f32.mrb[0].mxu0
      %1740 = vmatprep.mubr.bf16.mxu0 0
      %1741 = vmatmul.mubr.bf16.gmra.mrb[0].mxu0 %v1628
      %v1742 = vpop.f32.mrb[0].mxu0
      %v1743 = vadd.f32 0.0, %v1742
      %v1744 = vpop.f32.mrb[0].mxu0
      %v1745 = vpop.f32.mrb[0].mxu0
      %v1746 = vadd.f32 0.0, %v1745
      %v1747 = vpop.f32.mrb[0].mxu0
      %1748 = vmatprep.mubr.bf16.mxu0 0
      %1749 = vmatmul.mubr.bf16.gmra.mrb[0].mxu0 %v1629
      %v1750 = vpop.f32.mrb[0].mxu0
      %v1751 = vadd.f32 0.0, %v1750
      %v1752 = vpop.f32.mrb[0].mxu0
      %v1753 = vpop.f32.mrb[0].mxu0
      %v1754 = vadd.f32 0.0, %v1753
      %v1755 = vpop.f32.mrb[0].mxu0
      %1756 = vmatprep.mubr.bf16.mxu0 0
      %1757 = vmatmul.mubr.bf16.gmra.mrb[0].mxu0 %v1630
      %v1758 = vpop.f32.mrb[0].mxu0
      %v1759 = vadd.f32 0.0, %v1758
      %v1760 = vpop.f32.mrb[0].mxu0
      %v1761 = vpop.f32.mrb[0].mxu0
      %v1762 = vadd.f32 0.0, %v1761
      %v1763 = vpop.f32.mrb[0].mxu0
      %1764 = vmatprep.mubr.bf16.mxu0 0
      %1765 = vmatmul.mubr.bf16.gmra.mrb[0].mxu0 %v1631
      %v1766 = vpop.f32.mrb[0].mxu0
      %v1767 = vadd.f32 0.0, %v1766
      %v1768 = vpop.f32.mrb[0].mxu0
      %v1769 = vpop.f32.mrb[0].mxu0
      %v1770 = vadd.f32 0.0, %v1769
      %v1771 = vpop.f32.mrb[0].mxu0
      %1772 = vmatprep.mubr.bf16.mxu0 0
      %1773 = vmatmul.mubr.bf16.gmra.mrb[0].mxu0 %v1632
      %v1774 = vpop.f32.mrb[0].mxu0
      %v1775 = vadd.f32 0.0, %v1774
      %v1776 = vpop.f32.mrb[0].mxu0
      %v1777 = vpop.f32.mrb[0].mxu0
      %v1778 = vadd.f32 0.0, %v1777
      %v1779 = vpop.f32.mrb[0].mxu0
      %1780 = vmatprep.mubr.bf16.mxu0 0
      %1781 = vmatmul.mubr.bf16.gmra.mrb[0].mxu0 %v1633
      %v1782 = vpop.f32.mrb[0].mxu0
      %v1783 = vadd.f32 0.0, %v1782
      %v1784 = vpop.f32.mrb[0].mxu0
      %v1785 = vpop.f32.mrb[0].mxu0
      %v1786 = vadd.f32 0.0, %v1785
      %v1787 = vpop.f32.mrb[0].mxu0
      %1788 = vmatprep.mubr.bf16.mxu0 0
      %1789 = vmatmul.mubr.bf16.gmra.mrb[0].mxu0 %v1634
      %v1790 = vpop.f32.mrb[0].mxu0
      %v1791 = vadd.f32 0.0, %v1790
      %v1792 = vpop.f32.mrb[0].mxu0
      %v1793 = vpop.f32.mrb[0].mxu0
      %v1794 = vadd.f32 0.0, %v1793
      %v1795 = vpop.f32.mrb[0].mxu0
      %1796 = vdwg.mxu0
      %v1797 = vadd.f32 %v1555, %v1735
      %v1798 = vadd.f32 %v1556, %v1738
      %v1799 = vadd.f32 %v1557, %v1743
      %v1800 = vadd.f32 %v1558, %v1746
      %v1801 = vadd.f32 %v1559, %v1751
      %v1802 = vadd.f32 %v1560, %v1754
      %v1803 = vadd.f32 %v1561, %v1759
      %v1804 = vadd.f32 %v1562, %v1762
      %v1805 = vadd.f32 %v1563, %v1767
      %v1806 = vadd.f32 %v1564, %v1770
      %v1807 = vadd.f32 %v1565, %v1775
      %v1808 = vadd.f32 %v1566, %v1778
      %v1809 = vadd.f32 %v1567, %v1783
      %v1810 = vadd.f32 %v1568, %v1786
      %v1811 = vadd.f32 %v1569, %v1791
      %v1812 = vadd.f32 %v1570, %v1794
      %s1813 = sadd.s32 %s352, 2
      %s1814 = smul.u32 %s1813, 3
      %s1815 = smul.addr %s1814, 4
      %s1816 = scalar_lea.vmem %s334, %s1815
      %v1817 = vld [vmem:[%s1816] sm:$0xf]
      %v1818 = vld [vmem:[%s1816 + $0x4] sm:$0xf]
      %v1819 = vld [vmem:[%s1816 + $0x8] sm:$0x1]
      %v1820 = vld [vmem:[%s1816 + $0xc] sm:$0xf]
      %v1821 = vld [vmem:[%s1816 + $0x10] sm:$0xf]
      %v1822 = vld [vmem:[%s1816 + $0x14] sm:$0x1]
      %v1823 = vld [vmem:[%s1816 + $0x18] sm:$0xf]
      %v1824 = vld [vmem:[%s1816 + $0x1c] sm:$0xf]
      %v1825 = vld [vmem:[%s1816 + $0x20] sm:$0x1]
      %v1826 = vld [vmem:[%s1816 + $0x24] sm:$0xf]
      %v1827 = vld [vmem:[%s1816 + $0x28] sm:$0xf]
      %v1828 = vld [vmem:[%s1816 + $0x2c] sm:$0x1]
      %v1829 = vld [vmem:[%s1816 + $0x30] sm:$0xf]
      %v1830 = vld [vmem:[%s1816 + $0x34] sm:$0xf]
      %v1831 = vld [vmem:[%s1816 + $0x38] sm:$0x1]
      %v1832 = vld [vmem:[%s1816 + $0x3c] sm:$0xf]
      %v1833 = vld [vmem:[%s1816 + $0x40] sm:$0xf]
      %v1834 = vld [vmem:[%s1816 + $0x44] sm:$0x1]
      %v1835 = vld [vmem:[%s1816 + $0x48] sm:$0xf]
      %v1836 = vld [vmem:[%s1816 + $0x4c] sm:$0xf]
      %v1837 = vld [vmem:[%s1816 + $0x50] sm:$0x1]
      %v1838 = vld [vmem:[%s1816 + $0x54] sm:$0xf]
      %v1839 = vld [vmem:[%s1816 + $0x58] sm:$0xf]
      %v1840 = vld [vmem:[%s1816 + $0x5c] sm:$0x1]
      %v1841 = vunpack.c.l.bf16 %v1817
      %v1842 = vunpack.c.l.bf16 %v1818
      %v1843 = vunpack.c.l.bf16 %v1819
      %v1844 = vunpack.c.l.bf16 %v1820
      %v1845 = vunpack.c.l.bf16 %v1821
      %v1846 = vunpack.c.l.bf16 %v1822
      %v1847 = vunpack.c.l.bf16 %v1823
      %v1848 = vunpack.c.l.bf16 %v1824
      %v1849 = vunpack.c.l.bf16 %v1825
      %v1850 = vunpack.c.l.bf16 %v1826
      %v1851 = vunpack.c.l.bf16 %v1827
      %v1852 = vunpack.c.l.bf16 %v1828
      %v1853 = vunpack.c.l.bf16 %v1829
      %v1854 = vunpack.c.l.bf16 %v1830
      %v1855 = vunpack.c.l.bf16 %v1831
      %v1856 = vunpack.c.l.bf16 %v1832
      %v1857 = vunpack.c.l.bf16 %v1833
      %v1858 = vunpack.c.l.bf16 %v1834
      %v1859 = vunpack.c.l.bf16 %v1835
      %v1860 = vunpack.c.l.bf16 %v1836
      %v1861 = vunpack.c.l.bf16 %v1837
      %v1862 = vunpack.c.l.bf16 %v1838
      %v1863 = vunpack.c.l.bf16 %v1839
      %v1864 = vunpack.c.l.bf16 %v1840
      %v1865 = vpack.c.bf16 %v1842, %v1841
      %v1866 = vpack.c.bf16 %v1845, %v1844
      %v1867 = vpack.c.bf16 %v1848, %v1847
      %v1868 = vpack.c.bf16 %v1851, %v1850
      %v1869 = vpack.c.bf16 %v1854, %v1853
      %v1870 = vpack.c.bf16 %v1857, %v1856
      %v1871 = vpack.c.bf16 %v1860, %v1859
      %v1872 = vpack.c.bf16 %v1863, %v1862
      %s1873 = scalar_lea.vmem %s2, 384
      %v1874 = vld [vmem:[%s1873] sm:$0xf]
      %v1875 = vld [vmem:[%s1873 + $0x4] sm:$0xf]
      %v1876 = vld [vmem:[%s1873 + $0x8] sm:$0xf]
      %v1877 = vld [vmem:[%s1873 + $0xc] sm:$0xf]
      %v1878 = vld [vmem:[%s1873 + $0x10] sm:$0xf]
      %v1879 = vld [vmem:[%s1873 + $0x14] sm:$0xf]
      %v1880 = vld [vmem:[%s1873 + $0x18] sm:$0xf]
      %v1881 = vld [vmem:[%s1873 + $0x1c] sm:$0xf]
      %v1882 = vld [vmem:[%s1873 + $0x20] sm:$0xf]
      %v1883 = vld [vmem:[%s1873 + $0x24] sm:$0xf]
      %v1884 = vld [vmem:[%s1873 + $0x28] sm:$0xf]
      %v1885 = vld [vmem:[%s1873 + $0x2c] sm:$0xf]
      %v1886 = vld [vmem:[%s1873 + $0x30] sm:$0xf]
      %v1887 = vld [vmem:[%s1873 + $0x34] sm:$0xf]
      %v1888 = vld [vmem:[%s1873 + $0x38] sm:$0xf]
      %v1889 = vld [vmem:[%s1873 + $0x3c] sm:$0xf]
      %v1906 = vunpack.c.l.b16 %v1874
      %v1907 = vunpack.c.l.b16 %v1875
      %v1908 = vunpack.c.l.b16 %v1876
      %v1909 = vunpack.c.l.b16 %v1877
      %v1910 = vunpack.c.l.b16 %v1878
      %v1911 = vunpack.c.l.b16 %v1879
      %v1912 = vunpack.c.l.b16 %v1880
      %v1913 = vunpack.c.l.b16 %v1881
      %v1914 = vunpack.c.l.b16 %v1882
      %v1915 = vunpack.c.l.b16 %v1883
      %v1916 = vunpack.c.l.b16 %v1884
      %v1917 = vunpack.c.l.b16 %v1885
      %v1918 = vunpack.c.l.b16 %v1886
      %v1919 = vunpack.c.l.b16 %v1887
      %v1920 = vunpack.c.l.b16 %v1888
      %v1921 = vunpack.c.l.b16 %v1889
      %v1922 = vpack.c.b16 %v1907, %v1906
      %v1923 = vpack.c.b16 %v1909, %v1908
      %v1924 = vpack.c.b16 %v1911, %v1910
      %v1925 = vpack.c.b16 %v1913, %v1912
      %v1926 = vpack.c.b16 %v1915, %v1914
      %v1927 = vpack.c.b16 %v1917, %v1916
      %v1928 = vpack.c.b16 %v1919, %v1918
      %v1929 = vpack.c.b16 %v1921, %v1920
      %1938 = vmatprep.subr.bf16.mxu0 0
      %1939 = vmatpush1.bf16.msra.mxu0 %v1922
      %1940 = vmatprep.subr.bf16.mxu0 0
      %1941 = vmatpush1.bf16.msra.mxu0 %v1923
      %1942 = vmatprep.subr.bf16.mxu0 0
      %1943 = vmatpush1.bf16.msra.mxu0 %v1924
      %1944 = vmatprep.subr.bf16.mxu0 0
      %1945 = vmatpush1.bf16.msra.mxu0 %v1925
      %1946 = vmatprep.subr.bf16.mxu0 0
      %1947 = vmatpush1.bf16.msra.mxu0 %v1926
      %1948 = vmatprep.subr.bf16.mxu0 0
      %1949 = vmatpush1.bf16.msra.mxu0 %v1927
      %1950 = vmatprep.subr.bf16.mxu0 0
      %1951 = vmatpush1.bf16.msra.mxu0 %v1928
      %1952 = vmatprep.subr.bf16.mxu0 0
      %1953 = vmatpush1.bf16.msra.mxu0 %v1929
      %1954 = vmatprep.subr.bf16.mxu0 0
      %1955 = vmatpush1.bf16.msra.mxu0 0
      %1956 = vmatprep.subr.bf16.mxu0 0
      %1957 = vmatpush1.bf16.msra.mxu0 0
      %1958 = vmatprep.subr.bf16.mxu0 0
      %1959 = vmatpush1.bf16.msra.mxu0 0
      %1960 = vmatprep.subr.bf16.mxu0 0
      %1961 = vmatpush1.bf16.msra.mxu0 0
      %1962 = vmatprep.subr.bf16.mxu0 0
      %1963 = vmatpush1.bf16.msra.mxu0 0
      %1964 = vmatprep.subr.bf16.mxu0 0
      %1965 = vmatpush1.bf16.msra.mxu0 0
      %1966 = vmatprep.subr.bf16.mxu0 0
      %1967 = vmatpush1.bf16.msra.mxu0 0
      %1968 = vmatprep.subr.bf16.mxu0 0
      %1969 = vmatpush1.bf16.msra.mxu0 0
      %1970 = vmatprep.mubr.bf16.mxu0 0
      %1971 = vmatmul.mubr.bf16.gmra.mrb[0].mxu0 %v1865
      %v1972 = vpop.f32.mrb[0].mxu0
      %v1973 = vadd.f32 0.0, %v1972
      %v1974 = vpop.f32.mrb[0].mxu0
      %v1975 = vpop.f32.mrb[0].mxu0
      %v1976 = vadd.f32 0.0, %v1975
      %v1977 = vpop.f32.mrb[0].mxu0
      %1978 = vmatprep.mubr.bf16.mxu0 0
      %1979 = vmatmul.mubr.bf16.gmra.mrb[0].mxu0 %v1866
      %v1980 = vpop.f32.mrb[0].mxu0
      %v1981 = vadd.f32 0.0, %v1980
      %v1982 = vpop.f32.mrb[0].mxu0
      %v1983 = vpop.f32.mrb[0].mxu0
      %v1984 = vadd.f32 0.0, %v1983
      %v1985 = vpop.f32.mrb[0].mxu0
      %1986 = vmatprep.mubr.bf16.mxu0 0
      %1987 = vmatmul.mubr.bf16.gmra.mrb[0].mxu0 %v1867
      %v1988 = vpop.f32.mrb[0].mxu0
      %v1989 = vadd.f32 0.0, %v1988
      %v1990 = vpop.f32.mrb[0].mxu0
      %v1991 = vpop.f32.mrb[0].mxu0
      %v1992 = vadd.f32 0.0, %v1991
      %v1993 = vpop.f32.mrb[0].mxu0
      %1994 = vmatprep.mubr.bf16.mxu0 0
      %1995 = vmatmul.mubr.bf16.gmra.mrb[0].mxu0 %v1868
      %v1996 = vpop.f32.mrb[0].mxu0
      %v1997 = vadd.f32 0.0, %v1996
      %v1998 = vpop.f32.mrb[0].mxu0
      %v1999 = vpop.f32.mrb[0].mxu0
      %v2000 = vadd.f32 0.0, %v1999
      %v2001 = vpop.f32.mrb[0].mxu0
      %2002 = vmatprep.mubr.bf16.mxu0 0
      %2003 = vmatmul.mubr.bf16.gmra.mrb[0].mxu0 %v1869
      %v2004 = vpop.f32.mrb[0].mxu0
      %v2005 = vadd.f32 0.0, %v2004
      %v2006 = vpop.f32.mrb[0].mxu0
      %v2007 = vpop.f32.mrb[0].mxu0
      %v2008 = vadd.f32 0.0, %v2007
      %v2009 = vpop.f32.mrb[0].mxu0
      %2010 = vmatprep.mubr.bf16.mxu0 0
      %2011 = vmatmul.mubr.bf16.gmra.mrb[0].mxu0 %v1870
      %v2012 = vpop.f32.mrb[0].mxu0
      %v2013 = vadd.f32 0.0, %v2012
      %v2014 = vpop.f32.mrb[0].mxu0
      %v2015 = vpop.f32.mrb[0].mxu0
      %v2016 = vadd.f32 0.0, %v2015
      %v2017 = vpop.f32.mrb[0].mxu0
      %2018 = vmatprep.mubr.bf16.mxu0 0
      %2019 = vmatmul.mubr.bf16.gmra.mrb[0].mxu0 %v1871
      %v2020 = vpop.f32.mrb[0].mxu0
      %v2021 = vadd.f32 0.0, %v2020
      %v2022 = vpop.f32.mrb[0].mxu0
      %v2023 = vpop.f32.mrb[0].mxu0
      %v2024 = vadd.f32 0.0, %v2023
      %v2025 = vpop.f32.mrb[0].mxu0
      %2026 = vmatprep.mubr.bf16.mxu0 0
      %2027 = vmatmul.mubr.bf16.gmra.mrb[0].mxu0 %v1872
      %v2028 = vpop.f32.mrb[0].mxu0
      %v2029 = vadd.f32 0.0, %v2028
      %v2030 = vpop.f32.mrb[0].mxu0
      %v2031 = vpop.f32.mrb[0].mxu0
      %v2032 = vadd.f32 0.0, %v2031
      %v2033 = vpop.f32.mrb[0].mxu0
      %2034 = vdwg.mxu0
      %v2035 = vadd.f32 %v1797, %v1973
      %v2036 = vadd.f32 %v1798, %v1976
      %v2037 = vadd.f32 %v1799, %v1981
      %v2038 = vadd.f32 %v1800, %v1984
      %v2039 = vadd.f32 %v1801, %v1989
      %v2040 = vadd.f32 %v1802, %v1992
      %v2041 = vadd.f32 %v1803, %v1997
      %v2042 = vadd.f32 %v1804, %v2000
      %v2043 = vadd.f32 %v1805, %v2005
      %v2044 = vadd.f32 %v1806, %v2008
      %v2045 = vadd.f32 %v1807, %v2013
      %v2046 = vadd.f32 %v1808, %v2016
      %v2047 = vadd.f32 %v1809, %v2021
      %v2048 = vadd.f32 %v1810, %v2024
      %v2049 = vadd.f32 %v1811, %v2029
      %v2050 = vadd.f32 %v1812, %v2032
      %v2075 = vrot.slane %v1841, 1
      %v2076 = vrot.slane %v1842, 1
      %v2077 = vsel %vm452, %v2075, %v2076
      %v2078 = vrot.slane %v1843, 1
      %v2079 = vsel %vm452, %v2076, %v2078
      %v2080 = vrot.slane %v1844, 1
      %v2081 = vrot.slane %v1845, 1
      %v2082 = vsel %vm452, %v2080, %v2081
      %v2083 = vrot.slane %v1846, 1
      %v2084 = vsel %vm452, %v2081, %v2083
      %v2085 = vrot.slane %v1847, 1
      %v2086 = vrot.slane %v1848, 1
      %v2087 = vsel %vm452, %v2085, %v2086
      %v2088 = vrot.slane %v1849, 1
      %v2089 = vsel %vm452, %v2086, %v2088
      %v2090 = vrot.slane %v1850, 1
      %v2091 = vrot.slane %v1851, 1
      %v2092 = vsel %vm452, %v2090, %v2091
      %v2093 = vrot.slane %v1852, 1
      %v2094 = vsel %vm452, %v2091, %v2093
      %v2095 = vrot.slane %v1853, 1
      %v2096 = vrot.slane %v1854, 1
      %v2097 = vsel %vm452, %v2095, %v2096
      %v2098 = vrot.slane %v1855, 1
      %v2099 = vsel %vm452, %v2096, %v2098
      %v2100 = vrot.slane %v1856, 1
      %v2101 = vrot.slane %v1857, 1
      %v2102 = vsel %vm452, %v2100, %v2101
      %v2103 = vrot.slane %v1858, 1
      %v2104 = vsel %vm452, %v2101, %v2103
      %v2105 = vrot.slane %v1859, 1
      %v2106 = vrot.slane %v1860, 1
      %v2107 = vsel %vm452, %v2105, %v2106
      %v2108 = vrot.slane %v1861, 1
      %v2109 = vsel %vm452, %v2106, %v2108
      %v2110 = vrot.slane %v1862, 1
      %v2111 = vrot.slane %v1863, 1
      %v2112 = vsel %vm452, %v2110, %v2111
      %v2113 = vrot.slane %v1864, 1
      %v2114 = vsel %vm452, %v2111, %v2113
      %v2131 = vpack.c.bf16 %v2079, %v2077
      %v2132 = vpack.c.bf16 %v2084, %v2082
      %v2133 = vpack.c.bf16 %v2089, %v2087
      %v2134 = vpack.c.bf16 %v2094, %v2092
      %v2135 = vpack.c.bf16 %v2099, %v2097
      %v2136 = vpack.c.bf16 %v2104, %v2102
      %v2137 = vpack.c.bf16 %v2109, %v2107
      %v2138 = vpack.c.bf16 %v2114, %v2112
      %s2139 = scalar_lea.vmem %s2, 448
      %v2140 = vld [vmem:[%s2139] sm:$0xf]
      %v2141 = vld [vmem:[%s2139 + $0x4] sm:$0xf]
      %v2142 = vld [vmem:[%s2139 + $0x8] sm:$0xf]
      %v2143 = vld [vmem:[%s2139 + $0xc] sm:$0xf]
      %v2144 = vld [vmem:[%s2139 + $0x10] sm:$0xf]
      %v2145 = vld [vmem:[%s2139 + $0x14] sm:$0xf]
      %v2146 = vld [vmem:[%s2139 + $0x18] sm:$0xf]
      %v2147 = vld [vmem:[%s2139 + $0x1c] sm:$0xf]
      %v2148 = vld [vmem:[%s2139 + $0x20] sm:$0xf]
      %v2149 = vld [vmem:[%s2139 + $0x24] sm:$0xf]
      %v2150 = vld [vmem:[%s2139 + $0x28] sm:$0xf]
      %v2151 = vld [vmem:[%s2139 + $0x2c] sm:$0xf]
      %v2152 = vld [vmem:[%s2139 + $0x30] sm:$0xf]
      %v2153 = vld [vmem:[%s2139 + $0x34] sm:$0xf]
      %v2154 = vld [vmem:[%s2139 + $0x38] sm:$0xf]
      %v2155 = vld [vmem:[%s2139 + $0x3c] sm:$0xf]
      %v2172 = vunpack.c.l.b16 %v2140
      %v2173 = vunpack.c.l.b16 %v2141
      %v2174 = vunpack.c.l.b16 %v2142
      %v2175 = vunpack.c.l.b16 %v2143
      %v2176 = vunpack.c.l.b16 %v2144
      %v2177 = vunpack.c.l.b16 %v2145
      %v2178 = vunpack.c.l.b16 %v2146
      %v2179 = vunpack.c.l.b16 %v2147
      %v2180 = vunpack.c.l.b16 %v2148
      %v2181 = vunpack.c.l.b16 %v2149
      %v2182 = vunpack.c.l.b16 %v2150
      %v2183 = vunpack.c.l.b16 %v2151
      %v2184 = vunpack.c.l.b16 %v2152
      %v2185 = vunpack.c.l.b16 %v2153
      %v2186 = vunpack.c.l.b16 %v2154
      %v2187 = vunpack.c.l.b16 %v2155
      %v2188 = vpack.c.b16 %v2173, %v2172
      %v2189 = vpack.c.b16 %v2175, %v2174
      %v2190 = vpack.c.b16 %v2177, %v2176
      %v2191 = vpack.c.b16 %v2179, %v2178
      %v2192 = vpack.c.b16 %v2181, %v2180
      %v2193 = vpack.c.b16 %v2183, %v2182
      %v2194 = vpack.c.b16 %v2185, %v2184
      %v2195 = vpack.c.b16 %v2187, %v2186
      %2204 = vmatprep.subr.bf16.mxu0 0
      %2205 = vmatpush1.bf16.msra.mxu0 %v2188
      %2206 = vmatprep.subr.bf16.mxu0 0
      %2207 = vmatpush1.bf16.msra.mxu0 %v2189
      %2208 = vmatprep.subr.bf16.mxu0 0
      %2209 = vmatpush1.bf16.msra.mxu0 %v2190
      %2210 = vmatprep.subr.bf16.mxu0 0
      %2211 = vmatpush1.bf16.msra.mxu0 %v2191
      %2212 = vmatprep.subr.bf16.mxu0 0
      %2213 = vmatpush1.bf16.msra.mxu0 %v2192
      %2214 = vmatprep.subr.bf16.mxu0 0
      %2215 = vmatpush1.bf16.msra.mxu0 %v2193
      %2216 = vmatprep.subr.bf16.mxu0 0
      %2217 = vmatpush1.bf16.msra.mxu0 %v2194
      %2218 = vmatprep.subr.bf16.mxu0 0
      %2219 = vmatpush1.bf16.msra.mxu0 %v2195
      %2220 = vmatprep.subr.bf16.mxu0 0
      %2221 = vmatpush1.bf16.msra.mxu0 0
      %2222 = vmatprep.subr.bf16.mxu0 0
      %2223 = vmatpush1.bf16.msra.mxu0 0
      %2224 = vmatprep.subr.bf16.mxu0 0
      %2225 = vmatpush1.bf16.msra.mxu0 0
      %2226 = vmatprep.subr.bf16.mxu0 0
      %2227 = vmatpush1.bf16.msra.mxu0 0
      %2228 = vmatprep.subr.bf16.mxu0 0
      %2229 = vmatpush1.bf16.msra.mxu0 0
      %2230 = vmatprep.subr.bf16.mxu0 0
      %2231 = vmatpush1.bf16.msra.mxu0 0
      %2232 = vmatprep.subr.bf16.mxu0 0
      %2233 = vmatpush1.bf16.msra.mxu0 0
      %2234 = vmatprep.subr.bf16.mxu0 0
      %2235 = vmatpush1.bf16.msra.mxu0 0
      %2236 = vmatprep.mubr.bf16.mxu0 0
      %2237 = vmatmul.mubr.bf16.gmra.mrb[0].mxu0 %v2131
      %v2238 = vpop.f32.mrb[0].mxu0
      %v2239 = vadd.f32 0.0, %v2238
      %v2240 = vpop.f32.mrb[0].mxu0
      %v2241 = vpop.f32.mrb[0].mxu0
      %v2242 = vadd.f32 0.0, %v2241
      %v2243 = vpop.f32.mrb[0].mxu0
      %2244 = vmatprep.mubr.bf16.mxu0 0
      %2245 = vmatmul.mubr.bf16.gmra.mrb[0].mxu0 %v2132
      %v2246 = vpop.f32.mrb[0].mxu0
      %v2247 = vadd.f32 0.0, %v2246
      %v2248 = vpop.f32.mrb[0].mxu0
      %v2249 = vpop.f32.mrb[0].mxu0
      %v2250 = vadd.f32 0.0, %v2249
      %v2251 = vpop.f32.mrb[0].mxu0
      %2252 = vmatprep.mubr.bf16.mxu0 0
      %2253 = vmatmul.mubr.bf16.gmra.mrb[0].mxu0 %v2133
      %v2254 = vpop.f32.mrb[0].mxu0
      %v2255 = vadd.f32 0.0, %v2254
      %v2256 = vpop.f32.mrb[0].mxu0
      %v2257 = vpop.f32.mrb[0].mxu0
      %v2258 = vadd.f32 0.0, %v2257
      %v2259 = vpop.f32.mrb[0].mxu0
      %2260 = vmatprep.mubr.bf16.mxu0 0
      %2261 = vmatmul.mubr.bf16.gmra.mrb[0].mxu0 %v2134
      %v2262 = vpop.f32.mrb[0].mxu0
      %v2263 = vadd.f32 0.0, %v2262
      %v2264 = vpop.f32.mrb[0].mxu0
      %v2265 = vpop.f32.mrb[0].mxu0
      %v2266 = vadd.f32 0.0, %v2265
      %v2267 = vpop.f32.mrb[0].mxu0
      %2268 = vmatprep.mubr.bf16.mxu0 0
      %2269 = vmatmul.mubr.bf16.gmra.mrb[0].mxu0 %v2135
      %v2270 = vpop.f32.mrb[0].mxu0
      %v2271 = vadd.f32 0.0, %v2270
      %v2272 = vpop.f32.mrb[0].mxu0
      %v2273 = vpop.f32.mrb[0].mxu0
      %v2274 = vadd.f32 0.0, %v2273
      %v2275 = vpop.f32.mrb[0].mxu0
      %2276 = vmatprep.mubr.bf16.mxu0 0
      %2277 = vmatmul.mubr.bf16.gmra.mrb[0].mxu0 %v2136
      %v2278 = vpop.f32.mrb[0].mxu0
      %v2279 = vadd.f32 0.0, %v2278
      %v2280 = vpop.f32.mrb[0].mxu0
      %v2281 = vpop.f32.mrb[0].mxu0
      %v2282 = vadd.f32 0.0, %v2281
      %v2283 = vpop.f32.mrb[0].mxu0
      %2284 = vmatprep.mubr.bf16.mxu0 0
      %2285 = vmatmul.mubr.bf16.gmra.mrb[0].mxu0 %v2137
      %v2286 = vpop.f32.mrb[0].mxu0
      %v2287 = vadd.f32 0.0, %v2286
      %v2288 = vpop.f32.mrb[0].mxu0
      %v2289 = vpop.f32.mrb[0].mxu0
      %v2290 = vadd.f32 0.0, %v2289
      %v2291 = vpop.f32.mrb[0].mxu0
      %2292 = vmatprep.mubr.bf16.mxu0 0
      %2293 = vmatmul.mubr.bf16.gmra.mrb[0].mxu0 %v2138
      %v2294 = vpop.f32.mrb[0].mxu0
      %v2295 = vadd.f32 0.0, %v2294
      %v2296 = vpop.f32.mrb[0].mxu0
      %v2297 = vpop.f32.mrb[0].mxu0
      %v2298 = vadd.f32 0.0, %v2297
      %v2299 = vpop.f32.mrb[0].mxu0
      %2300 = vdwg.mxu0
      %v2301 = vadd.f32 %v2035, %v2239
      %v2302 = vadd.f32 %v2036, %v2242
      %v2303 = vadd.f32 %v2037, %v2247
      %v2304 = vadd.f32 %v2038, %v2250
      %v2305 = vadd.f32 %v2039, %v2255
      %v2306 = vadd.f32 %v2040, %v2258
      %v2307 = vadd.f32 %v2041, %v2263
      %v2308 = vadd.f32 %v2042, %v2266
      %v2309 = vadd.f32 %v2043, %v2271
      %v2310 = vadd.f32 %v2044, %v2274
      %v2311 = vadd.f32 %v2045, %v2279
      %v2312 = vadd.f32 %v2046, %v2282
      %v2313 = vadd.f32 %v2047, %v2287
      %v2314 = vadd.f32 %v2048, %v2290
      %v2315 = vadd.f32 %v2049, %v2295
      %v2316 = vadd.f32 %v2050, %v2298
      %v2317 = vrot.slane %v1841, 2
      %v2318 = vrot.slane %v1842, 2
      %v2319 = vsel %vm824, %v2317, %v2318
      %v2320 = vrot.slane %v1843, 2
      %v2321 = vsel %vm824, %v2318, %v2320
      %v2322 = vrot.slane %v1844, 2
      %v2323 = vrot.slane %v1845, 2
      %v2324 = vsel %vm824, %v2322, %v2323
      %v2325 = vrot.slane %v1846, 2
      %v2326 = vsel %vm824, %v2323, %v2325
      %v2327 = vrot.slane %v1847, 2
      %v2328 = vrot.slane %v1848, 2
      %v2329 = vsel %vm824, %v2327, %v2328
      %v2330 = vrot.slane %v1849, 2
      %v2331 = vsel %vm824, %v2328, %v2330
      %v2332 = vrot.slane %v1850, 2
      %v2333 = vrot.slane %v1851, 2
      %v2334 = vsel %vm824, %v2332, %v2333
      %v2335 = vrot.slane %v1852, 2
      %v2336 = vsel %vm824, %v2333, %v2335
      %v2337 = vrot.slane %v1853, 2
      %v2338 = vrot.slane %v1854, 2
      %v2339 = vsel %vm824, %v2337, %v2338
      %v2340 = vrot.slane %v1855, 2
      %v2341 = vsel %vm824, %v2338, %v2340
      %v2342 = vrot.slane %v1856, 2
      %v2343 = vrot.slane %v1857, 2
      %v2344 = vsel %vm824, %v2342, %v2343
      %v2345 = vrot.slane %v1858, 2
      %v2346 = vsel %vm824, %v2343, %v2345
      %v2347 = vrot.slane %v1859, 2
      %v2348 = vrot.slane %v1860, 2
      %v2349 = vsel %vm824, %v2347, %v2348
      %v2350 = vrot.slane %v1861, 2
      %v2351 = vsel %vm824, %v2348, %v2350
      %v2352 = vrot.slane %v1862, 2
      %v2353 = vrot.slane %v1863, 2
      %v2354 = vsel %vm824, %v2352, %v2353
      %v2355 = vrot.slane %v1864, 2
      %v2356 = vsel %vm824, %v2353, %v2355
      %v2373 = vpack.c.bf16 %v2321, %v2319
      %v2374 = vpack.c.bf16 %v2326, %v2324
      %v2375 = vpack.c.bf16 %v2331, %v2329
      %v2376 = vpack.c.bf16 %v2336, %v2334
      %v2377 = vpack.c.bf16 %v2341, %v2339
      %v2378 = vpack.c.bf16 %v2346, %v2344
      %v2379 = vpack.c.bf16 %v2351, %v2349
      %v2380 = vpack.c.bf16 %v2356, %v2354
      %s2381 = scalar_lea.vmem %s2, 512
      %v2382 = vld [vmem:[%s2381] sm:$0xf]
      %v2383 = vld [vmem:[%s2381 + $0x4] sm:$0xf]
      %v2384 = vld [vmem:[%s2381 + $0x8] sm:$0xf]
      %v2385 = vld [vmem:[%s2381 + $0xc] sm:$0xf]
      %v2386 = vld [vmem:[%s2381 + $0x10] sm:$0xf]
      %v2387 = vld [vmem:[%s2381 + $0x14] sm:$0xf]
      %v2388 = vld [vmem:[%s2381 + $0x18] sm:$0xf]
      %v2389 = vld [vmem:[%s2381 + $0x1c] sm:$0xf]
      %v2390 = vld [vmem:[%s2381 + $0x20] sm:$0xf]
      %v2391 = vld [vmem:[%s2381 + $0x24] sm:$0xf]
      %v2392 = vld [vmem:[%s2381 + $0x28] sm:$0xf]
      %v2393 = vld [vmem:[%s2381 + $0x2c] sm:$0xf]
      %v2394 = vld [vmem:[%s2381 + $0x30] sm:$0xf]
      %v2395 = vld [vmem:[%s2381 + $0x34] sm:$0xf]
      %v2396 = vld [vmem:[%s2381 + $0x38] sm:$0xf]
      %v2397 = vld [vmem:[%s2381 + $0x3c] sm:$0xf]
      %v2414 = vunpack.c.l.b16 %v2382
      %v2415 = vunpack.c.l.b16 %v2383
      %v2416 = vunpack.c.l.b16 %v2384
      %v2417 = vunpack.c.l.b16 %v2385
      %v2418 = vunpack.c.l.b16 %v2386
      %v2419 = vunpack.c.l.b16 %v2387
      %v2420 = vunpack.c.l.b16 %v2388
      %v2421 = vunpack.c.l.b16 %v2389
      %v2422 = vunpack.c.l.b16 %v2390
      %v2423 = vunpack.c.l.b16 %v2391
      %v2424 = vunpack.c.l.b16 %v2392
      %v2425 = vunpack.c.l.b16 %v2393
      %v2426 = vunpack.c.l.b16 %v2394
      %v2427 = vunpack.c.l.b16 %v2395
      %v2428 = vunpack.c.l.b16 %v2396
      %v2429 = vunpack.c.l.b16 %v2397
      %v2430 = vpack.c.b16 %v2415, %v2414
      %v2431 = vpack.c.b16 %v2417, %v2416
      %v2432 = vpack.c.b16 %v2419, %v2418
      %v2433 = vpack.c.b16 %v2421, %v2420
      %v2434 = vpack.c.b16 %v2423, %v2422
      %v2435 = vpack.c.b16 %v2425, %v2424
      %v2436 = vpack.c.b16 %v2427, %v2426
      %v2437 = vpack.c.b16 %v2429, %v2428
      %2446 = vmatprep.subr.bf16.mxu0 0
      %2447 = vmatpush1.bf16.msra.mxu0 %v2430
      %2448 = vmatprep.subr.bf16.mxu0 0
      %2449 = vmatpush1.bf16.msra.mxu0 %v2431
      %2450 = vmatprep.subr.bf16.mxu0 0
      %2451 = vmatpush1.bf16.msra.mxu0 %v2432
      %2452 = vmatprep.subr.bf16.mxu0 0
      %2453 = vmatpush1.bf16.msra.mxu0 %v2433
      %2454 = vmatprep.subr.bf16.mxu0 0
      %2455 = vmatpush1.bf16.msra.mxu0 %v2434
      %2456 = vmatprep.subr.bf16.mxu0 0
      %2457 = vmatpush1.bf16.msra.mxu0 %v2435
      %2458 = vmatprep.subr.bf16.mxu0 0
      %2459 = vmatpush1.bf16.msra.mxu0 %v2436
      %2460 = vmatprep.subr.bf16.mxu0 0
      %2461 = vmatpush1.bf16.msra.mxu0 %v2437
      %2462 = vmatprep.subr.bf16.mxu0 0
      %2463 = vmatpush1.bf16.msra.mxu0 0
      %2464 = vmatprep.subr.bf16.mxu0 0
      %2465 = vmatpush1.bf16.msra.mxu0 0
      %2466 = vmatprep.subr.bf16.mxu0 0
      %2467 = vmatpush1.bf16.msra.mxu0 0
      %2468 = vmatprep.subr.bf16.mxu0 0
      %2469 = vmatpush1.bf16.msra.mxu0 0
      %2470 = vmatprep.subr.bf16.mxu0 0
      %2471 = vmatpush1.bf16.msra.mxu0 0
      %2472 = vmatprep.subr.bf16.mxu0 0
      %2473 = vmatpush1.bf16.msra.mxu0 0
      %2474 = vmatprep.subr.bf16.mxu0 0
      %2475 = vmatpush1.bf16.msra.mxu0 0
      %2476 = vmatprep.subr.bf16.mxu0 0
      %2477 = vmatpush1.bf16.msra.mxu0 0
      %2478 = vmatprep.mubr.bf16.mxu0 0
      %2479 = vmatmul.mubr.bf16.gmra.mrb[0].mxu0 %v2373
      %v2480 = vpop.f32.mrb[0].mxu0
      %v2481 = vadd.f32 0.0, %v2480
      %v2482 = vpop.f32.mrb[0].mxu0
      %v2483 = vpop.f32.mrb[0].mxu0
      %v2484 = vadd.f32 0.0, %v2483
      %v2485 = vpop.f32.mrb[0].mxu0
      %2486 = vmatprep.mubr.bf16.mxu0 0
      %2487 = vmatmul.mubr.bf16.gmra.mrb[0].mxu0 %v2374
      %v2488 = vpop.f32.mrb[0].mxu0
      %v2489 = vadd.f32 0.0, %v2488
      %v2490 = vpop.f32.mrb[0].mxu0
      %v2491 = vpop.f32.mrb[0].mxu0
      %v2492 = vadd.f32 0.0, %v2491
      %v2493 = vpop.f32.mrb[0].mxu0
      %2494 = vmatprep.mubr.bf16.mxu0 0
      %2495 = vmatmul.mubr.bf16.gmra.mrb[0].mxu0 %v2375
      %v2496 = vpop.f32.mrb[0].mxu0
      %v2497 = vadd.f32 0.0, %v2496
      %v2498 = vpop.f32.mrb[0].mxu0
      %v2499 = vpop.f32.mrb[0].mxu0
      %v2500 = vadd.f32 0.0, %v2499
      %v2501 = vpop.f32.mrb[0].mxu0
      %2502 = vmatprep.mubr.bf16.mxu0 0
      %2503 = vmatmul.mubr.bf16.gmra.mrb[0].mxu0 %v2376
      %v2504 = vpop.f32.mrb[0].mxu0
      %v2505 = vadd.f32 0.0, %v2504
      %v2506 = vpop.f32.mrb[0].mxu0
      %v2507 = vpop.f32.mrb[0].mxu0
      %v2508 = vadd.f32 0.0, %v2507
      %v2509 = vpop.f32.mrb[0].mxu0
      %2510 = vmatprep.mubr.bf16.mxu0 0
      %2511 = vmatmul.mubr.bf16.gmra.mrb[0].mxu0 %v2377
      %v2512 = vpop.f32.mrb[0].mxu0
      %v2513 = vadd.f32 0.0, %v2512
      %v2514 = vpop.f32.mrb[0].mxu0
      %v2515 = vpop.f32.mrb[0].mxu0
      %v2516 = vadd.f32 0.0, %v2515
      %v2517 = vpop.f32.mrb[0].mxu0
      %2518 = vmatprep.mubr.bf16.mxu0 0
      %2519 = vmatmul.mubr.bf16.gmra.mrb[0].mxu0 %v2378
      %v2520 = vpop.f32.mrb[0].mxu0
      %v2521 = vadd.f32 0.0, %v2520
      %v2522 = vpop.f32.mrb[0].mxu0
      %v2523 = vpop.f32.mrb[0].mxu0
      %v2524 = vadd.f32 0.0, %v2523
      %v2525 = vpop.f32.mrb[0].mxu0
      %2526 = vmatprep.mubr.bf16.mxu0 0
      %2527 = vmatmul.mubr.bf16.gmra.mrb[0].mxu0 %v2379
      %v2528 = vpop.f32.mrb[0].mxu0
      %v2529 = vadd.f32 0.0, %v2528
      %v2530 = vpop.f32.mrb[0].mxu0
      %v2531 = vpop.f32.mrb[0].mxu0
      %v2532 = vadd.f32 0.0, %v2531
      %v2533 = vpop.f32.mrb[0].mxu0
      %2534 = vmatprep.mubr.bf16.mxu0 0
      %2535 = vmatmul.mubr.bf16.gmra.mrb[0].mxu0 %v2380
      %v2536 = vpop.f32.mrb[0].mxu0
      %v2537 = vadd.f32 0.0, %v2536
      %v2538 = vpop.f32.mrb[0].mxu0
      %v2539 = vpop.f32.mrb[0].mxu0
      %v2540 = vadd.f32 0.0, %v2539
      %v2541 = vpop.f32.mrb[0].mxu0
      %2542 = vdwg.mxu0
      %v2543 = vadd.f32 %v2301, %v2481
      %v2544 = vadd.f32 %v2302, %v2484
      %v2545 = vadd.f32 %v2303, %v2489
      %v2546 = vadd.f32 %v2304, %v2492
      %v2547 = vadd.f32 %v2305, %v2497
      %v2548 = vadd.f32 %v2306, %v2500
      %v2549 = vadd.f32 %v2307, %v2505
      %v2550 = vadd.f32 %v2308, %v2508
      %v2551 = vadd.f32 %v2309, %v2513
      %v2552 = vadd.f32 %v2310, %v2516
      %v2553 = vadd.f32 %v2311, %v2521
      %v2554 = vadd.f32 %v2312, %v2524
      %v2555 = vadd.f32 %v2313, %v2529
      %v2556 = vadd.f32 %v2314, %v2532
      %v2557 = vadd.f32 %v2315, %v2537
      %v2558 = vadd.f32 %v2316, %v2540
      %v2559 = vld [vmem:[%s6] sm:$0x1]
      %v2561 = vlaneseq
      %v2562 = vshrl.u32 %v2561, 7
      %v2563 = vsub.s32 0, %v2562
      %v2564 = vrot.slane %v2559, %v2563
      %v2566 = vadd.f32 %v2543, %v2564
      %v2567 = vadd.f32 %v2544, %v2564
      %v2568 = vadd.f32 %v2545, %v2564
      %v2569 = vadd.f32 %v2546, %v2564
      %v2570 = vadd.f32 %v2547, %v2564
      %v2571 = vadd.f32 %v2548, %v2564
      %v2572 = vadd.f32 %v2549, %v2564
      %v2573 = vadd.f32 %v2550, %v2564
      %v2574 = vadd.f32 %v2551, %v2564
      %v2575 = vadd.f32 %v2552, %v2564
      %v2576 = vadd.f32 %v2553, %v2564
      %v2577 = vadd.f32 %v2554, %v2564
      %v2578 = vadd.f32 %v2555, %v2564
      %v2579 = vadd.f32 %v2556, %v2564
      %v2580 = vadd.f32 %v2557, %v2564
      %v2581 = vadd.f32 %v2558, %v2564
      %v2582 = vmax.f32 %v2566, 0.0
      %v2583 = vmax.f32 %v2567, 0.0
      %v2584 = vmax.f32 %v2568, 0.0
      %v2585 = vmax.f32 %v2569, 0.0
      %v2586 = vmax.f32 %v2570, 0.0
      %v2587 = vmax.f32 %v2571, 0.0
      %v2588 = vmax.f32 %v2572, 0.0
      %v2589 = vmax.f32 %v2573, 0.0
      %v2590 = vmax.f32 %v2574, 0.0
      %v2591 = vmax.f32 %v2575, 0.0
      %v2592 = vmax.f32 %v2576, 0.0
      %v2593 = vmax.f32 %v2577, 0.0
      %v2594 = vmax.f32 %v2578, 0.0
      %v2595 = vmax.f32 %v2579, 0.0
      %v2596 = vmax.f32 %v2580, 0.0
      %v2597 = vmax.f32 %v2581, 0.0
      %s2598 = smul.addr %s353, 4
      %s2599 = scalar_lea.vmem %s339, %s2598
      %v2600 = vld [vmem:[%s2599] sm:$0xf]
      %v2601 = vld [vmem:[%s2599 + $0x4] sm:$0xf]
      %v2602 = vld [vmem:[%s2599 + $0x8] sm:$0x1]
      %v2603 = vld [vmem:[%s2599 + $0xc] sm:$0xf]
      %v2604 = vld [vmem:[%s2599 + $0x10] sm:$0xf]
      %v2605 = vld [vmem:[%s2599 + $0x14] sm:$0x1]
      %v2606 = vld [vmem:[%s2599 + $0x18] sm:$0xf]
      %v2607 = vld [vmem:[%s2599 + $0x1c] sm:$0xf]
      %v2608 = vld [vmem:[%s2599 + $0x20] sm:$0x1]
      %v2609 = vld [vmem:[%s2599 + $0x24] sm:$0xf]
      %v2610 = vld [vmem:[%s2599 + $0x28] sm:$0xf]
      %v2611 = vld [vmem:[%s2599 + $0x2c] sm:$0x1]
      %v2612 = vld [vmem:[%s2599 + $0x30] sm:$0xf]
      %v2613 = vld [vmem:[%s2599 + $0x34] sm:$0xf]
      %v2614 = vld [vmem:[%s2599 + $0x38] sm:$0x1]
      %v2615 = vld [vmem:[%s2599 + $0x3c] sm:$0xf]
      %v2616 = vld [vmem:[%s2599 + $0x40] sm:$0xf]
      %v2617 = vld [vmem:[%s2599 + $0x44] sm:$0x1]
      %v2618 = vld [vmem:[%s2599 + $0x48] sm:$0xf]
      %v2619 = vld [vmem:[%s2599 + $0x4c] sm:$0xf]
      %v2620 = vld [vmem:[%s2599 + $0x50] sm:$0x1]
      %v2621 = vld [vmem:[%s2599 + $0x54] sm:$0xf]
      %v2622 = vld [vmem:[%s2599 + $0x58] sm:$0xf]
      %v2623 = vld [vmem:[%s2599 + $0x5c] sm:$0x1]
      %v2624 = vunpack.c.l.bf16 %v2600
      %v2625 = vunpack.c.l.bf16 %v2601
      %v2626 = vunpack.c.l.bf16 %v2602
      %v2627 = vunpack.c.l.bf16 %v2603
      %v2628 = vunpack.c.l.bf16 %v2604
      %v2629 = vunpack.c.l.bf16 %v2605
      %v2630 = vunpack.c.l.bf16 %v2606
      %v2631 = vunpack.c.l.bf16 %v2607
      %v2632 = vunpack.c.l.bf16 %v2608
      %v2633 = vunpack.c.l.bf16 %v2609
      %v2634 = vunpack.c.l.bf16 %v2610
      %v2635 = vunpack.c.l.bf16 %v2611
      %v2636 = vunpack.c.l.bf16 %v2612
      %v2637 = vunpack.c.l.bf16 %v2613
      %v2638 = vunpack.c.l.bf16 %v2614
      %v2639 = vunpack.c.l.bf16 %v2615
      %v2640 = vunpack.c.l.bf16 %v2616
      %v2641 = vunpack.c.l.bf16 %v2617
      %v2642 = vunpack.c.l.bf16 %v2618
      %v2643 = vunpack.c.l.bf16 %v2619
      %v2644 = vunpack.c.l.bf16 %v2620
      %v2645 = vunpack.c.l.bf16 %v2621
      %v2646 = vunpack.c.l.bf16 %v2622
      %v2647 = vunpack.c.l.bf16 %v2623
      %v2648 = vpack.c.bf16 %v2625, %v2624
      %v2649 = vpack.c.bf16 %v2628, %v2627
      %v2650 = vpack.c.bf16 %v2631, %v2630
      %v2651 = vpack.c.bf16 %v2634, %v2633
      %v2652 = vpack.c.bf16 %v2637, %v2636
      %v2653 = vpack.c.bf16 %v2640, %v2639
      %v2654 = vpack.c.bf16 %v2643, %v2642
      %v2655 = vpack.c.bf16 %v2646, %v2645
      %v2656 = vld [vmem:[%s3] sm:$0xf]
      %v2657 = vld [vmem:[%s3 + $0x4] sm:$0xf]
      %v2658 = vld [vmem:[%s3 + $0x8] sm:$0xf]
      %v2659 = vld [vmem:[%s3 + $0xc] sm:$0xf]
      %v2660 = vld [vmem:[%s3 + $0x10] sm:$0xf]
      %v2661 = vld [vmem:[%s3 + $0x14] sm:$0xf]
      %v2662 = vld [vmem:[%s3 + $0x18] sm:$0xf]
      %v2663 = vld [vmem:[%s3 + $0x1c] sm:$0xf]
      %v2664 = vld [vmem:[%s3 + $0x20] sm:$0xf]
      %v2665 = vld [vmem:[%s3 + $0x24] sm:$0xf]
      %v2666 = vld [vmem:[%s3 + $0x28] sm:$0xf]
      %v2667 = vld [vmem:[%s3 + $0x2c] sm:$0xf]
      %v2668 = vld [vmem:[%s3 + $0x30] sm:$0xf]
      %v2669 = vld [vmem:[%s3 + $0x34] sm:$0xf]
      %v2670 = vld [vmem:[%s3 + $0x38] sm:$0xf]
      %v2671 = vld [vmem:[%s3 + $0x3c] sm:$0xf]
      %v2696 = vrot.slane %v2624, 1
      %v2697 = vrot.slane %v2625, 1
      %v2698 = vsel %vm452, %v2696, %v2697
      %v2699 = vrot.slane %v2626, 1
      %v2700 = vsel %vm452, %v2697, %v2699
      %v2701 = vrot.slane %v2627, 1
      %v2702 = vrot.slane %v2628, 1
      %v2703 = vsel %vm452, %v2701, %v2702
      %v2704 = vrot.slane %v2629, 1
      %v2705 = vsel %vm452, %v2702, %v2704
      %v2706 = vrot.slane %v2630, 1
      %v2707 = vrot.slane %v2631, 1
      %v2708 = vsel %vm452, %v2706, %v2707
      %v2709 = vrot.slane %v2632, 1
      %v2710 = vsel %vm452, %v2707, %v2709
      %v2711 = vrot.slane %v2633, 1
      %v2712 = vrot.slane %v2634, 1
      %v2713 = vsel %vm452, %v2711, %v2712
      %v2714 = vrot.slane %v2635, 1
      %v2715 = vsel %vm452, %v2712, %v2714
      %v2716 = vrot.slane %v2636, 1
      %v2717 = vrot.slane %v2637, 1
      %v2718 = vsel %vm452, %v2716, %v2717
      %v2719 = vrot.slane %v2638, 1
      %v2720 = vsel %vm452, %v2717, %v2719
      %v2721 = vrot.slane %v2639, 1
      %v2722 = vrot.slane %v2640, 1
      %v2723 = vsel %vm452, %v2721, %v2722
      %v2724 = vrot.slane %v2641, 1
      %v2725 = vsel %vm452, %v2722, %v2724
      %v2726 = vrot.slane %v2642, 1
      %v2727 = vrot.slane %v2643, 1
      %v2728 = vsel %vm452, %v2726, %v2727
      %v2729 = vrot.slane %v2644, 1
      %v2730 = vsel %vm452, %v2727, %v2729
      %v2731 = vrot.slane %v2645, 1
      %v2732 = vrot.slane %v2646, 1
      %v2733 = vsel %vm452, %v2731, %v2732
      %v2734 = vrot.slane %v2647, 1
      %v2735 = vsel %vm452, %v2732, %v2734
      %v2752 = vpack.c.bf16 %v2700, %v2698
      %v2753 = vpack.c.bf16 %v2705, %v2703
      %v2754 = vpack.c.bf16 %v2710, %v2708
      %v2755 = vpack.c.bf16 %v2715, %v2713
      %v2756 = vpack.c.bf16 %v2720, %v2718
      %v2757 = vpack.c.bf16 %v2725, %v2723
      %v2758 = vpack.c.bf16 %v2730, %v2728
      %v2759 = vpack.c.bf16 %v2735, %v2733
      %s2760 = scalar_lea.vmem %s3, 64
      %v2761 = vld [vmem:[%s2760] sm:$0xf]
      %v2762 = vld [vmem:[%s2760 + $0x4] sm:$0xf]
      %v2763 = vld [vmem:[%s2760 + $0x8] sm:$0xf]
      %v2764 = vld [vmem:[%s2760 + $0xc] sm:$0xf]
      %v2765 = vld [vmem:[%s2760 + $0x10] sm:$0xf]
      %v2766 = vld [vmem:[%s2760 + $0x14] sm:$0xf]
      %v2767 = vld [vmem:[%s2760 + $0x18] sm:$0xf]
      %v2768 = vld [vmem:[%s2760 + $0x1c] sm:$0xf]
      %v2769 = vld [vmem:[%s2760 + $0x20] sm:$0xf]
      %v2770 = vld [vmem:[%s2760 + $0x24] sm:$0xf]
      %v2771 = vld [vmem:[%s2760 + $0x28] sm:$0xf]
      %v2772 = vld [vmem:[%s2760 + $0x2c] sm:$0xf]
      %v2773 = vld [vmem:[%s2760 + $0x30] sm:$0xf]
      %v2774 = vld [vmem:[%s2760 + $0x34] sm:$0xf]
      %v2775 = vld [vmem:[%s2760 + $0x38] sm:$0xf]
      %v2776 = vld [vmem:[%s2760 + $0x3c] sm:$0xf]
      %v2793 = vunpack.c.l.b16 %v2761
      %v2794 = vunpack.c.l.b16 %v2762
      %v2795 = vunpack.c.l.b16 %v2763
      %v2796 = vunpack.c.l.b16 %v2764
      %v2797 = vunpack.c.l.b16 %v2765
      %v2798 = vunpack.c.l.b16 %v2766
      %v2799 = vunpack.c.l.b16 %v2767
      %v2800 = vunpack.c.l.b16 %v2768
      %v2801 = vunpack.c.l.b16 %v2769
      %v2802 = vunpack.c.l.b16 %v2770
      %v2803 = vunpack.c.l.b16 %v2771
      %v2804 = vunpack.c.l.b16 %v2772
      %v2805 = vunpack.c.l.b16 %v2773
      %v2806 = vunpack.c.l.b16 %v2774
      %v2807 = vunpack.c.l.b16 %v2775
      %v2808 = vunpack.c.l.b16 %v2776
      %v2809 = vpack.c.b16 %v2794, %v2793
      %v2810 = vpack.c.b16 %v2796, %v2795
      %v2811 = vpack.c.b16 %v2798, %v2797
      %v2812 = vpack.c.b16 %v2800, %v2799
      %v2813 = vpack.c.b16 %v2802, %v2801
      %v2814 = vpack.c.b16 %v2804, %v2803
      %v2815 = vpack.c.b16 %v2806, %v2805
      %v2816 = vpack.c.b16 %v2808, %v2807
      %2825 = vmatprep.subr.bf16.mxu0 0
      %2826 = vmatpush1.bf16.msra.mxu0 %v2809
      %2827 = vmatprep.subr.bf16.mxu0 0
      %2828 = vmatpush1.bf16.msra.mxu0 %v2810
      %2829 = vmatprep.subr.bf16.mxu0 0
      %2830 = vmatpush1.bf16.msra.mxu0 %v2811
      %2831 = vmatprep.subr.bf16.mxu0 0
      %2832 = vmatpush1.bf16.msra.mxu0 %v2812
      %2833 = vmatprep.subr.bf16.mxu0 0
      %2834 = vmatpush1.bf16.msra.mxu0 %v2813
      %2835 = vmatprep.subr.bf16.mxu0 0
      %2836 = vmatpush1.bf16.msra.mxu0 %v2814
      %2837 = vmatprep.subr.bf16.mxu0 0
      %2838 = vmatpush1.bf16.msra.mxu0 %v2815
      %2839 = vmatprep.subr.bf16.mxu0 0
      %2840 = vmatpush1.bf16.msra.mxu0 %v2816
      %2841 = vmatprep.subr.bf16.mxu0 0
      %2842 = vmatpush1.bf16.msra.mxu0 0
      %2843 = vmatprep.subr.bf16.mxu0 0
      %2844 = vmatpush1.bf16.msra.mxu0 0
      %2845 = vmatprep.subr.bf16.mxu0 0
      %2846 = vmatpush1.bf16.msra.mxu0 0
      %2847 = vmatprep.subr.bf16.mxu0 0
      %2848 = vmatpush1.bf16.msra.mxu0 0
      %2849 = vmatprep.subr.bf16.mxu0 0
      %2850 = vmatpush1.bf16.msra.mxu0 0
      %2851 = vmatprep.subr.bf16.mxu0 0
      %2852 = vmatpush1.bf16.msra.mxu0 0
      %2853 = vmatprep.subr.bf16.mxu0 0
      %2854 = vmatpush1.bf16.msra.mxu0 0
      %2855 = vmatprep.subr.bf16.mxu0 0
      %2856 = vmatpush1.bf16.msra.mxu0 0
      %2857 = vmatprep.mubr.bf16.mxu0 0
      %2858 = vmatmul.mubr.bf16.gmra.mrb[0].mxu0 %v2752
      %v2859 = vpop.f32.mrb[0].mxu0
      %v2860 = vadd.f32 0.0, %v2859
      %v2861 = vpop.f32.mrb[0].mxu0
      %v2862 = vpop.f32.mrb[0].mxu0
      %v2863 = vadd.f32 0.0, %v2862
      %v2864 = vpop.f32.mrb[0].mxu0
      %2865 = vmatprep.mubr.bf16.mxu0 0
      %2866 = vmatmul.mubr.bf16.gmra.mrb[0].mxu0 %v2753
      %v2867 = vpop.f32.mrb[0].mxu0
      %v2868 = vadd.f32 0.0, %v2867
      %v2869 = vpop.f32.mrb[0].mxu0
      %v2870 = vpop.f32.mrb[0].mxu0
      %v2871 = vadd.f32 0.0, %v2870
      %v2872 = vpop.f32.mrb[0].mxu0
      %2873 = vmatprep.mubr.bf16.mxu0 0
      %2874 = vmatmul.mubr.bf16.gmra.mrb[0].mxu0 %v2754
      %v2875 = vpop.f32.mrb[0].mxu0
      %v2876 = vadd.f32 0.0, %v2875
      %v2877 = vpop.f32.mrb[0].mxu0
      %v2878 = vpop.f32.mrb[0].mxu0
      %v2879 = vadd.f32 0.0, %v2878
      %v2880 = vpop.f32.mrb[0].mxu0
      %2881 = vmatprep.mubr.bf16.mxu0 0
      %2882 = vmatmul.mubr.bf16.gmra.mrb[0].mxu0 %v2755
      %v2883 = vpop.f32.mrb[0].mxu0
      %v2884 = vadd.f32 0.0, %v2883
      %v2885 = vpop.f32.mrb[0].mxu0
      %v2886 = vpop.f32.mrb[0].mxu0
      %v2887 = vadd.f32 0.0, %v2886
      %v2888 = vpop.f32.mrb[0].mxu0
      %2889 = vmatprep.mubr.bf16.mxu0 0
      %2890 = vmatmul.mubr.bf16.gmra.mrb[0].mxu0 %v2756
      %v2891 = vpop.f32.mrb[0].mxu0
      %v2892 = vadd.f32 0.0, %v2891
      %v2893 = vpop.f32.mrb[0].mxu0
      %v2894 = vpop.f32.mrb[0].mxu0
      %v2895 = vadd.f32 0.0, %v2894
      %v2896 = vpop.f32.mrb[0].mxu0
      %2897 = vmatprep.mubr.bf16.mxu0 0
      %2898 = vmatmul.mubr.bf16.gmra.mrb[0].mxu0 %v2757
      %v2899 = vpop.f32.mrb[0].mxu0
      %v2900 = vadd.f32 0.0, %v2899
      %v2901 = vpop.f32.mrb[0].mxu0
      %v2902 = vpop.f32.mrb[0].mxu0
      %v2903 = vadd.f32 0.0, %v2902
      %v2904 = vpop.f32.mrb[0].mxu0
      %2905 = vmatprep.mubr.bf16.mxu0 0
      %2906 = vmatmul.mubr.bf16.gmra.mrb[0].mxu0 %v2758
      %v2907 = vpop.f32.mrb[0].mxu0
      %v2908 = vadd.f32 0.0, %v2907
      %v2909 = vpop.f32.mrb[0].mxu0
      %v2910 = vpop.f32.mrb[0].mxu0
      %v2911 = vadd.f32 0.0, %v2910
      %v2912 = vpop.f32.mrb[0].mxu0
      %2913 = vmatprep.mubr.bf16.mxu0 0
      %2914 = vmatmul.mubr.bf16.gmra.mrb[0].mxu0 %v2759
      %v2915 = vpop.f32.mrb[0].mxu0
      %v2916 = vadd.f32 0.0, %v2915
      %v2917 = vpop.f32.mrb[0].mxu0
      %v2918 = vpop.f32.mrb[0].mxu0
      %v2919 = vadd.f32 0.0, %v2918
      %v2920 = vpop.f32.mrb[0].mxu0
      %2921 = vdwg.mxu0
      %v2938 = vunpack.c.l.b16 %v2656
      %v2939 = vunpack.c.l.b16 %v2657
      %v2940 = vunpack.c.l.b16 %v2658
      %v2941 = vunpack.c.l.b16 %v2659
      %v2942 = vunpack.c.l.b16 %v2660
      %v2943 = vunpack.c.l.b16 %v2661
      %v2944 = vunpack.c.l.b16 %v2662
      %v2945 = vunpack.c.l.b16 %v2663
      %v2946 = vunpack.c.l.b16 %v2664
      %v2947 = vunpack.c.l.b16 %v2665
      %v2948 = vunpack.c.l.b16 %v2666
      %v2949 = vunpack.c.l.b16 %v2667
      %v2950 = vunpack.c.l.b16 %v2668
      %v2951 = vunpack.c.l.b16 %v2669
      %v2952 = vunpack.c.l.b16 %v2670
      %v2953 = vunpack.c.l.b16 %v2671
      %v2954 = vpack.c.b16 %v2939, %v2938
      %v2955 = vpack.c.b16 %v2941, %v2940
      %v2956 = vpack.c.b16 %v2943, %v2942
      %v2957 = vpack.c.b16 %v2945, %v2944
      %v2958 = vpack.c.b16 %v2947, %v2946
      %v2959 = vpack.c.b16 %v2949, %v2948
      %v2960 = vpack.c.b16 %v2951, %v2950
      %v2961 = vpack.c.b16 %v2953, %v2952
      %2970 = vmatprep.subr.bf16.mxu0 0
      %2971 = vmatpush1.bf16.msra.mxu0 %v2954
      %2972 = vmatprep.subr.bf16.mxu0 0
      %2973 = vmatpush1.bf16.msra.mxu0 %v2955
      %2974 = vmatprep.subr.bf16.mxu0 0
      %2975 = vmatpush1.bf16.msra.mxu0 %v2956
      %2976 = vmatprep.subr.bf16.mxu0 0
      %2977 = vmatpush1.bf16.msra.mxu0 %v2957
      %2978 = vmatprep.subr.bf16.mxu0 0
      %2979 = vmatpush1.bf16.msra.mxu0 %v2958
      %2980 = vmatprep.subr.bf16.mxu0 0
      %2981 = vmatpush1.bf16.msra.mxu0 %v2959
      %2982 = vmatprep.subr.bf16.mxu0 0
      %2983 = vmatpush1.bf16.msra.mxu0 %v2960
      %2984 = vmatprep.subr.bf16.mxu0 0
      %2985 = vmatpush1.bf16.msra.mxu0 %v2961
      %2986 = vmatprep.subr.bf16.mxu0 0
      %2987 = vmatpush1.bf16.msra.mxu0 0
      %2988 = vmatprep.subr.bf16.mxu0 0
      %2989 = vmatpush1.bf16.msra.mxu0 0
      %2990 = vmatprep.subr.bf16.mxu0 0
      %2991 = vmatpush1.bf16.msra.mxu0 0
      %2992 = vmatprep.subr.bf16.mxu0 0
      %2993 = vmatpush1.bf16.msra.mxu0 0
      %2994 = vmatprep.subr.bf16.mxu0 0
      %2995 = vmatpush1.bf16.msra.mxu0 0
      %2996 = vmatprep.subr.bf16.mxu0 0
      %2997 = vmatpush1.bf16.msra.mxu0 0
      %2998 = vmatprep.subr.bf16.mxu0 0
      %2999 = vmatpush1.bf16.msra.mxu0 0
      %3000 = vmatprep.subr.bf16.mxu0 0
      %3001 = vmatpush1.bf16.msra.mxu0 0
      %3002 = vmatprep.mubr.bf16.mxu0 0
      %3003 = vmatmul.mubr.bf16.gmra.mrb[0].mxu0 %v2648
      %v3004 = vpop.f32.mrb[0].mxu0
      %v3005 = vadd.f32 %v2860, %v3004
      %v3006 = vpop.f32.mrb[0].mxu0
      %v3007 = vpop.f32.mrb[0].mxu0
      %v3008 = vadd.f32 %v2863, %v3007
      %v3009 = vpop.f32.mrb[0].mxu0
      %3010 = vmatprep.mubr.bf16.mxu0 0
      %3011 = vmatmul.mubr.bf16.gmra.mrb[0].mxu0 %v2649
      %v3012 = vpop.f32.mrb[0].mxu0
      %v3013 = vadd.f32 %v2868, %v3012
      %v3014 = vpop.f32.mrb[0].mxu0
      %v3015 = vpop.f32.mrb[0].mxu0
      %v3016 = vadd.f32 %v2871, %v3015
      %v3017 = vpop.f32.mrb[0].mxu0
      %3018 = vmatprep.mubr.bf16.mxu0 0
      %3019 = vmatmul.mubr.bf16.gmra.mrb[0].mxu0 %v2650
      %v3020 = vpop.f32.mrb[0].mxu0
      %v3021 = vadd.f32 %v2876, %v3020
      %v3022 = vpop.f32.mrb[0].mxu0
      %v3023 = vpop.f32.mrb[0].mxu0
      %v3024 = vadd.f32 %v2879, %v3023
      %v3025 = vpop.f32.mrb[0].mxu0
      %3026 = vmatprep.mubr.bf16.mxu0 0
      %3027 = vmatmul.mubr.bf16.gmra.mrb[0].mxu0 %v2651
      %v3028 = vpop.f32.mrb[0].mxu0
      %v3029 = vadd.f32 %v2884, %v3028
      %v3030 = vpop.f32.mrb[0].mxu0
      %v3031 = vpop.f32.mrb[0].mxu0
      %v3032 = vadd.f32 %v2887, %v3031
      %v3033 = vpop.f32.mrb[0].mxu0
      %3034 = vmatprep.mubr.bf16.mxu0 0
      %3035 = vmatmul.mubr.bf16.gmra.mrb[0].mxu0 %v2652
      %v3036 = vpop.f32.mrb[0].mxu0
      %v3037 = vadd.f32 %v2892, %v3036
      %v3038 = vpop.f32.mrb[0].mxu0
      %v3039 = vpop.f32.mrb[0].mxu0
      %v3040 = vadd.f32 %v2895, %v3039
      %v3041 = vpop.f32.mrb[0].mxu0
      %3042 = vmatprep.mubr.bf16.mxu0 0
      %3043 = vmatmul.mubr.bf16.gmra.mrb[0].mxu0 %v2653
      %v3044 = vpop.f32.mrb[0].mxu0
      %v3045 = vadd.f32 %v2900, %v3044
      %v3046 = vpop.f32.mrb[0].mxu0
      %v3047 = vpop.f32.mrb[0].mxu0
      %v3048 = vadd.f32 %v2903, %v3047
      %v3049 = vpop.f32.mrb[0].mxu0
      %3050 = vmatprep.mubr.bf16.mxu0 0
      %3051 = vmatmul.mubr.bf16.gmra.mrb[0].mxu0 %v2654
      %v3052 = vpop.f32.mrb[0].mxu0
      %v3053 = vadd.f32 %v2908, %v3052
      %v3054 = vpop.f32.mrb[0].mxu0
      %v3055 = vpop.f32.mrb[0].mxu0
      %v3056 = vadd.f32 %v2911, %v3055
      %v3057 = vpop.f32.mrb[0].mxu0
      %3058 = vmatprep.mubr.bf16.mxu0 0
      %3059 = vmatmul.mubr.bf16.gmra.mrb[0].mxu0 %v2655
      %v3060 = vpop.f32.mrb[0].mxu0
      %v3061 = vadd.f32 %v2916, %v3060
      %v3062 = vpop.f32.mrb[0].mxu0
      %v3063 = vpop.f32.mrb[0].mxu0
      %v3064 = vadd.f32 %v2919, %v3063
      %v3065 = vpop.f32.mrb[0].mxu0
      %3066 = vdwg.mxu0
      %v3067 = vrot.slane %v2624, 2
      %v3068 = vrot.slane %v2625, 2
      %v3069 = vsel %vm824, %v3067, %v3068
      %v3070 = vrot.slane %v2626, 2
      %v3071 = vsel %vm824, %v3068, %v3070
      %v3072 = vrot.slane %v2627, 2
      %v3073 = vrot.slane %v2628, 2
      %v3074 = vsel %vm824, %v3072, %v3073
      %v3075 = vrot.slane %v2629, 2
      %v3076 = vsel %vm824, %v3073, %v3075
      %v3077 = vrot.slane %v2630, 2
      %v3078 = vrot.slane %v2631, 2
      %v3079 = vsel %vm824, %v3077, %v3078
      %v3080 = vrot.slane %v2632, 2
      %v3081 = vsel %vm824, %v3078, %v3080
      %v3082 = vrot.slane %v2633, 2
      %v3083 = vrot.slane %v2634, 2
      %v3084 = vsel %vm824, %v3082, %v3083
      %v3085 = vrot.slane %v2635, 2
      %v3086 = vsel %vm824, %v3083, %v3085
      %v3087 = vrot.slane %v2636, 2
      %v3088 = vrot.slane %v2637, 2
      %v3089 = vsel %vm824, %v3087, %v3088
      %v3090 = vrot.slane %v2638, 2
      %v3091 = vsel %vm824, %v3088, %v3090
      %v3092 = vrot.slane %v2639, 2
      %v3093 = vrot.slane %v2640, 2
      %v3094 = vsel %vm824, %v3092, %v3093
      %v3095 = vrot.slane %v2641, 2
      %v3096 = vsel %vm824, %v3093, %v3095
      %v3097 = vrot.slane %v2642, 2
      %v3098 = vrot.slane %v2643, 2
      %v3099 = vsel %vm824, %v3097, %v3098
      %v3100 = vrot.slane %v2644, 2
      %v3101 = vsel %vm824, %v3098, %v3100
      %v3102 = vrot.slane %v2645, 2
      %v3103 = vrot.slane %v2646, 2
      %v3104 = vsel %vm824, %v3102, %v3103
      %v3105 = vrot.slane %v2647, 2
      %v3106 = vsel %vm824, %v3103, %v3105
      %v3123 = vpack.c.bf16 %v3071, %v3069
      %v3124 = vpack.c.bf16 %v3076, %v3074
      %v3125 = vpack.c.bf16 %v3081, %v3079
      %v3126 = vpack.c.bf16 %v3086, %v3084
      %v3127 = vpack.c.bf16 %v3091, %v3089
      %v3128 = vpack.c.bf16 %v3096, %v3094
      %v3129 = vpack.c.bf16 %v3101, %v3099
      %v3130 = vpack.c.bf16 %v3106, %v3104
      %s3131 = scalar_lea.vmem %s3, 128
      %v3132 = vld [vmem:[%s3131] sm:$0xf]
      %v3133 = vld [vmem:[%s3131 + $0x4] sm:$0xf]
      %v3134 = vld [vmem:[%s3131 + $0x8] sm:$0xf]
      %v3135 = vld [vmem:[%s3131 + $0xc] sm:$0xf]
      %v3136 = vld [vmem:[%s3131 + $0x10] sm:$0xf]
      %v3137 = vld [vmem:[%s3131 + $0x14] sm:$0xf]
      %v3138 = vld [vmem:[%s3131 + $0x18] sm:$0xf]
      %v3139 = vld [vmem:[%s3131 + $0x1c] sm:$0xf]
      %v3140 = vld [vmem:[%s3131 + $0x20] sm:$0xf]
      %v3141 = vld [vmem:[%s3131 + $0x24] sm:$0xf]
      %v3142 = vld [vmem:[%s3131 + $0x28] sm:$0xf]
      %v3143 = vld [vmem:[%s3131 + $0x2c] sm:$0xf]
      %v3144 = vld [vmem:[%s3131 + $0x30] sm:$0xf]
      %v3145 = vld [vmem:[%s3131 + $0x34] sm:$0xf]
      %v3146 = vld [vmem:[%s3131 + $0x38] sm:$0xf]
      %v3147 = vld [vmem:[%s3131 + $0x3c] sm:$0xf]
      %v3164 = vunpack.c.l.b16 %v3132
      %v3165 = vunpack.c.l.b16 %v3133
      %v3166 = vunpack.c.l.b16 %v3134
      %v3167 = vunpack.c.l.b16 %v3135
      %v3168 = vunpack.c.l.b16 %v3136
      %v3169 = vunpack.c.l.b16 %v3137
      %v3170 = vunpack.c.l.b16 %v3138
      %v3171 = vunpack.c.l.b16 %v3139
      %v3172 = vunpack.c.l.b16 %v3140
      %v3173 = vunpack.c.l.b16 %v3141
      %v3174 = vunpack.c.l.b16 %v3142
      %v3175 = vunpack.c.l.b16 %v3143
      %v3176 = vunpack.c.l.b16 %v3144
      %v3177 = vunpack.c.l.b16 %v3145
      %v3178 = vunpack.c.l.b16 %v3146
      %v3179 = vunpack.c.l.b16 %v3147
      %v3180 = vpack.c.b16 %v3165, %v3164
      %v3181 = vpack.c.b16 %v3167, %v3166
      %v3182 = vpack.c.b16 %v3169, %v3168
      %v3183 = vpack.c.b16 %v3171, %v3170
      %v3184 = vpack.c.b16 %v3173, %v3172
      %v3185 = vpack.c.b16 %v3175, %v3174
      %v3186 = vpack.c.b16 %v3177, %v3176
      %v3187 = vpack.c.b16 %v3179, %v3178
      %3196 = vmatprep.subr.bf16.mxu0 0
      %3197 = vmatpush1.bf16.msra.mxu0 %v3180
      %3198 = vmatprep.subr.bf16.mxu0 0
      %3199 = vmatpush1.bf16.msra.mxu0 %v3181
      %3200 = vmatprep.subr.bf16.mxu0 0
      %3201 = vmatpush1.bf16.msra.mxu0 %v3182
      %3202 = vmatprep.subr.bf16.mxu0 0
      %3203 = vmatpush1.bf16.msra.mxu0 %v3183
      %3204 = vmatprep.subr.bf16.mxu0 0
      %3205 = vmatpush1.bf16.msra.mxu0 %v3184
      %3206 = vmatprep.subr.bf16.mxu0 0
      %3207 = vmatpush1.bf16.msra.mxu0 %v3185
      %3208 = vmatprep.subr.bf16.mxu0 0
      %3209 = vmatpush1.bf16.msra.mxu0 %v3186
      %3210 = vmatprep.subr.bf16.mxu0 0
      %3211 = vmatpush1.bf16.msra.mxu0 %v3187
      %3212 = vmatprep.subr.bf16.mxu0 0
      %3213 = vmatpush1.bf16.msra.mxu0 0
      %3214 = vmatprep.subr.bf16.mxu0 0
      %3215 = vmatpush1.bf16.msra.mxu0 0
      %3216 = vmatprep.subr.bf16.mxu0 0
      %3217 = vmatpush1.bf16.msra.mxu0 0
      %3218 = vmatprep.subr.bf16.mxu0 0
      %3219 = vmatpush1.bf16.msra.mxu0 0
      %3220 = vmatprep.subr.bf16.mxu0 0
      %3221 = vmatpush1.bf16.msra.mxu0 0
      %3222 = vmatprep.subr.bf16.mxu0 0
      %3223 = vmatpush1.bf16.msra.mxu0 0
      %3224 = vmatprep.subr.bf16.mxu0 0
      %3225 = vmatpush1.bf16.msra.mxu0 0
      %3226 = vmatprep.subr.bf16.mxu0 0
      %3227 = vmatpush1.bf16.msra.mxu0 0
      %3228 = vmatprep.mubr.bf16.mxu0 0
      %3229 = vmatmul.mubr.bf16.gmra.mrb[0].mxu0 %v3123
      %v3230 = vpop.f32.mrb[0].mxu0
      %v3231 = vadd.f32 0.0, %v3230
      %v3232 = vpop.f32.mrb[0].mxu0
      %v3233 = vpop.f32.mrb[0].mxu0
      %v3234 = vadd.f32 0.0, %v3233
      %v3235 = vpop.f32.mrb[0].mxu0
      %3236 = vmatprep.mubr.bf16.mxu0 0
      %3237 = vmatmul.mubr.bf16.gmra.mrb[0].mxu0 %v3124
      %v3238 = vpop.f32.mrb[0].mxu0
      %v3239 = vadd.f32 0.0, %v3238
      %v3240 = vpop.f32.mrb[0].mxu0
      %v3241 = vpop.f32.mrb[0].mxu0
      %v3242 = vadd.f32 0.0, %v3241
      %v3243 = vpop.f32.mrb[0].mxu0
      %3244 = vmatprep.mubr.bf16.mxu0 0
      %3245 = vmatmul.mubr.bf16.gmra.mrb[0].mxu0 %v3125
      %v3246 = vpop.f32.mrb[0].mxu0
      %v3247 = vadd.f32 0.0, %v3246
      %v3248 = vpop.f32.mrb[0].mxu0
      %v3249 = vpop.f32.mrb[0].mxu0
      %v3250 = vadd.f32 0.0, %v3249
      %v3251 = vpop.f32.mrb[0].mxu0
      %3252 = vmatprep.mubr.bf16.mxu0 0
      %3253 = vmatmul.mubr.bf16.gmra.mrb[0].mxu0 %v3126
      %v3254 = vpop.f32.mrb[0].mxu0
      %v3255 = vadd.f32 0.0, %v3254
      %v3256 = vpop.f32.mrb[0].mxu0
      %v3257 = vpop.f32.mrb[0].mxu0
      %v3258 = vadd.f32 0.0, %v3257
      %v3259 = vpop.f32.mrb[0].mxu0
      %3260 = vmatprep.mubr.bf16.mxu0 0
      %3261 = vmatmul.mubr.bf16.gmra.mrb[0].mxu0 %v3127
      %v3262 = vpop.f32.mrb[0].mxu0
      %v3263 = vadd.f32 0.0, %v3262
      %v3264 = vpop.f32.mrb[0].mxu0
      %v3265 = vpop.f32.mrb[0].mxu0
      %v3266 = vadd.f32 0.0, %v3265
      %v3267 = vpop.f32.mrb[0].mxu0
      %3268 = vmatprep.mubr.bf16.mxu0 0
      %3269 = vmatmul.mubr.bf16.gmra.mrb[0].mxu0 %v3128
      %v3270 = vpop.f32.mrb[0].mxu0
      %v3271 = vadd.f32 0.0, %v3270
      %v3272 = vpop.f32.mrb[0].mxu0
      %v3273 = vpop.f32.mrb[0].mxu0
      %v3274 = vadd.f32 0.0, %v3273
      %v3275 = vpop.f32.mrb[0].mxu0
      %3276 = vmatprep.mubr.bf16.mxu0 0
      %3277 = vmatmul.mubr.bf16.gmra.mrb[0].mxu0 %v3129
      %v3278 = vpop.f32.mrb[0].mxu0
      %v3279 = vadd.f32 0.0, %v3278
      %v3280 = vpop.f32.mrb[0].mxu0
      %v3281 = vpop.f32.mrb[0].mxu0
      %v3282 = vadd.f32 0.0, %v3281
      %v3283 = vpop.f32.mrb[0].mxu0
      %3284 = vmatprep.mubr.bf16.mxu0 0
      %3285 = vmatmul.mubr.bf16.gmra.mrb[0].mxu0 %v3130
      %v3286 = vpop.f32.mrb[0].mxu0
      %v3287 = vadd.f32 0.0, %v3286
      %v3288 = vpop.f32.mrb[0].mxu0
      %v3289 = vpop.f32.mrb[0].mxu0
      %v3290 = vadd.f32 0.0, %v3289
      %v3291 = vpop.f32.mrb[0].mxu0
      %3292 = vdwg.mxu0
      %v3293 = vadd.f32 %v3005, %v3231
      %v3294 = vadd.f32 %v3008, %v3234
      %v3295 = vadd.f32 %v3013, %v3239
      %v3296 = vadd.f32 %v3016, %v3242
      %v3297 = vadd.f32 %v3021, %v3247
      %v3298 = vadd.f32 %v3024, %v3250
      %v3299 = vadd.f32 %v3029, %v3255
      %v3300 = vadd.f32 %v3032, %v3258
      %v3301 = vadd.f32 %v3037, %v3263
      %v3302 = vadd.f32 %v3040, %v3266
      %v3303 = vadd.f32 %v3045, %v3271
      %v3304 = vadd.f32 %v3048, %v3274
      %v3305 = vadd.f32 %v3053, %v3279
      %v3306 = vadd.f32 %v3056, %v3282
      %v3307 = vadd.f32 %v3061, %v3287
      %v3308 = vadd.f32 %v3064, %v3290
      %s3309 = smul.addr %s1068, 4
      %s3310 = scalar_lea.vmem %s339, %s3309
      %v3311 = vld [vmem:[%s3310] sm:$0xf]
      %v3312 = vld [vmem:[%s3310 + $0x4] sm:$0xf]
      %v3313 = vld [vmem:[%s3310 + $0x8] sm:$0x1]
      %v3314 = vld [vmem:[%s3310 + $0xc] sm:$0xf]
      %v3315 = vld [vmem:[%s3310 + $0x10] sm:$0xf]
      %v3316 = vld [vmem:[%s3310 + $0x14] sm:$0x1]
      %v3317 = vld [vmem:[%s3310 + $0x18] sm:$0xf]
      %v3318 = vld [vmem:[%s3310 + $0x1c] sm:$0xf]
      %v3319 = vld [vmem:[%s3310 + $0x20] sm:$0x1]
      %v3320 = vld [vmem:[%s3310 + $0x24] sm:$0xf]
      %v3321 = vld [vmem:[%s3310 + $0x28] sm:$0xf]
      %v3322 = vld [vmem:[%s3310 + $0x2c] sm:$0x1]
      %v3323 = vld [vmem:[%s3310 + $0x30] sm:$0xf]
      %v3324 = vld [vmem:[%s3310 + $0x34] sm:$0xf]
      %v3325 = vld [vmem:[%s3310 + $0x38] sm:$0x1]
      %v3326 = vld [vmem:[%s3310 + $0x3c] sm:$0xf]
      %v3327 = vld [vmem:[%s3310 + $0x40] sm:$0xf]
      %v3328 = vld [vmem:[%s3310 + $0x44] sm:$0x1]
      %v3329 = vld [vmem:[%s3310 + $0x48] sm:$0xf]
      %v3330 = vld [vmem:[%s3310 + $0x4c] sm:$0xf]
      %v3331 = vld [vmem:[%s3310 + $0x50] sm:$0x1]
      %v3332 = vld [vmem:[%s3310 + $0x54] sm:$0xf]
      %v3333 = vld [vmem:[%s3310 + $0x58] sm:$0xf]
      %v3334 = vld [vmem:[%s3310 + $0x5c] sm:$0x1]
      %v3335 = vunpack.c.l.bf16 %v3311
      %v3336 = vunpack.c.l.bf16 %v3312
      %v3337 = vunpack.c.l.bf16 %v3313
      %v3338 = vunpack.c.l.bf16 %v3314
      %v3339 = vunpack.c.l.bf16 %v3315
      %v3340 = vunpack.c.l.bf16 %v3316
      %v3341 = vunpack.c.l.bf16 %v3317
      %v3342 = vunpack.c.l.bf16 %v3318
      %v3343 = vunpack.c.l.bf16 %v3319
      %v3344 = vunpack.c.l.bf16 %v3320
      %v3345 = vunpack.c.l.bf16 %v3321
      %v3346 = vunpack.c.l.bf16 %v3322
      %v3347 = vunpack.c.l.bf16 %v3323
      %v3348 = vunpack.c.l.bf16 %v3324
      %v3349 = vunpack.c.l.bf16 %v3325
      %v3350 = vunpack.c.l.bf16 %v3326
      %v3351 = vunpack.c.l.bf16 %v3327
      %v3352 = vunpack.c.l.bf16 %v3328
      %v3353 = vunpack.c.l.bf16 %v3329
      %v3354 = vunpack.c.l.bf16 %v3330
      %v3355 = vunpack.c.l.bf16 %v3331
      %v3356 = vunpack.c.l.bf16 %v3332
      %v3357 = vunpack.c.l.bf16 %v3333
      %v3358 = vunpack.c.l.bf16 %v3334
      %v3359 = vpack.c.bf16 %v3336, %v3335
      %v3360 = vpack.c.bf16 %v3339, %v3338
      %v3361 = vpack.c.bf16 %v3342, %v3341
      %v3362 = vpack.c.bf16 %v3345, %v3344
      %v3363 = vpack.c.bf16 %v3348, %v3347
      %v3364 = vpack.c.bf16 %v3351, %v3350
      %v3365 = vpack.c.bf16 %v3354, %v3353
      %v3366 = vpack.c.bf16 %v3357, %v3356
      %s3367 = scalar_lea.vmem %s3, 192
      %v3368 = vld [vmem:[%s3367] sm:$0xf]
      %v3369 = vld [vmem:[%s3367 + $0x4] sm:$0xf]
      %v3370 = vld [vmem:[%s3367 + $0x8] sm:$0xf]
      %v3371 = vld [vmem:[%s3367 + $0xc] sm:$0xf]
      %v3372 = vld [vmem:[%s3367 + $0x10] sm:$0xf]
      %v3373 = vld [vmem:[%s3367 + $0x14] sm:$0xf]
      %v3374 = vld [vmem:[%s3367 + $0x18] sm:$0xf]
      %v3375 = vld [vmem:[%s3367 + $0x1c] sm:$0xf]
      %v3376 = vld [vmem:[%s3367 + $0x20] sm:$0xf]
      %v3377 = vld [vmem:[%s3367 + $0x24] sm:$0xf]
      %v3378 = vld [vmem:[%s3367 + $0x28] sm:$0xf]
      %v3379 = vld [vmem:[%s3367 + $0x2c] sm:$0xf]
      %v3380 = vld [vmem:[%s3367 + $0x30] sm:$0xf]
      %v3381 = vld [vmem:[%s3367 + $0x34] sm:$0xf]
      %v3382 = vld [vmem:[%s3367 + $0x38] sm:$0xf]
      %v3383 = vld [vmem:[%s3367 + $0x3c] sm:$0xf]
      %v3400 = vunpack.c.l.b16 %v3368
      %v3401 = vunpack.c.l.b16 %v3369
      %v3402 = vunpack.c.l.b16 %v3370
      %v3403 = vunpack.c.l.b16 %v3371
      %v3404 = vunpack.c.l.b16 %v3372
      %v3405 = vunpack.c.l.b16 %v3373
      %v3406 = vunpack.c.l.b16 %v3374
      %v3407 = vunpack.c.l.b16 %v3375
      %v3408 = vunpack.c.l.b16 %v3376
      %v3409 = vunpack.c.l.b16 %v3377
      %v3410 = vunpack.c.l.b16 %v3378
      %v3411 = vunpack.c.l.b16 %v3379
      %v3412 = vunpack.c.l.b16 %v3380
      %v3413 = vunpack.c.l.b16 %v3381
      %v3414 = vunpack.c.l.b16 %v3382
      %v3415 = vunpack.c.l.b16 %v3383
      %v3416 = vpack.c.b16 %v3401, %v3400
      %v3417 = vpack.c.b16 %v3403, %v3402
      %v3418 = vpack.c.b16 %v3405, %v3404
      %v3419 = vpack.c.b16 %v3407, %v3406
      %v3420 = vpack.c.b16 %v3409, %v3408
      %v3421 = vpack.c.b16 %v3411, %v3410
      %v3422 = vpack.c.b16 %v3413, %v3412
      %v3423 = vpack.c.b16 %v3415, %v3414
      %3432 = vmatprep.subr.bf16.mxu0 0
      %3433 = vmatpush1.bf16.msra.mxu0 %v3416
      %3434 = vmatprep.subr.bf16.mxu0 0
      %3435 = vmatpush1.bf16.msra.mxu0 %v3417
      %3436 = vmatprep.subr.bf16.mxu0 0
      %3437 = vmatpush1.bf16.msra.mxu0 %v3418
      %3438 = vmatprep.subr.bf16.mxu0 0
      %3439 = vmatpush1.bf16.msra.mxu0 %v3419
      %3440 = vmatprep.subr.bf16.mxu0 0
      %3441 = vmatpush1.bf16.msra.mxu0 %v3420
      %3442 = vmatprep.subr.bf16.mxu0 0
      %3443 = vmatpush1.bf16.msra.mxu0 %v3421
      %3444 = vmatprep.subr.bf16.mxu0 0
      %3445 = vmatpush1.bf16.msra.mxu0 %v3422
      %3446 = vmatprep.subr.bf16.mxu0 0
      %3447 = vmatpush1.bf16.msra.mxu0 %v3423
      %3448 = vmatprep.subr.bf16.mxu0 0
      %3449 = vmatpush1.bf16.msra.mxu0 0
      %3450 = vmatprep.subr.bf16.mxu0 0
      %3451 = vmatpush1.bf16.msra.mxu0 0
      %3452 = vmatprep.subr.bf16.mxu0 0
      %3453 = vmatpush1.bf16.msra.mxu0 0
      %3454 = vmatprep.subr.bf16.mxu0 0
      %3455 = vmatpush1.bf16.msra.mxu0 0
      %3456 = vmatprep.subr.bf16.mxu0 0
      %3457 = vmatpush1.bf16.msra.mxu0 0
      %3458 = vmatprep.subr.bf16.mxu0 0
      %3459 = vmatpush1.bf16.msra.mxu0 0
      %3460 = vmatprep.subr.bf16.mxu0 0
      %3461 = vmatpush1.bf16.msra.mxu0 0
      %3462 = vmatprep.subr.bf16.mxu0 0
      %3463 = vmatpush1.bf16.msra.mxu0 0
      %3464 = vmatprep.mubr.bf16.mxu0 0
      %3465 = vmatmul.mubr.bf16.gmra.mrb[0].mxu0 %v3359
      %v3466 = vpop.f32.mrb[0].mxu0
      %v3467 = vadd.f32 0.0, %v3466
      %v3468 = vpop.f32.mrb[0].mxu0
      %v3469 = vpop.f32.mrb[0].mxu0
      %v3470 = vadd.f32 0.0, %v3469
      %v3471 = vpop.f32.mrb[0].mxu0
      %3472 = vmatprep.mubr.bf16.mxu0 0
      %3473 = vmatmul.mubr.bf16.gmra.mrb[0].mxu0 %v3360
      %v3474 = vpop.f32.mrb[0].mxu0
      %v3475 = vadd.f32 0.0, %v3474
      %v3476 = vpop.f32.mrb[0].mxu0
      %v3477 = vpop.f32.mrb[0].mxu0
      %v3478 = vadd.f32 0.0, %v3477
      %v3479 = vpop.f32.mrb[0].mxu0
      %3480 = vmatprep.mubr.bf16.mxu0 0
      %3481 = vmatmul.mubr.bf16.gmra.mrb[0].mxu0 %v3361
      %v3482 = vpop.f32.mrb[0].mxu0
      %v3483 = vadd.f32 0.0, %v3482
      %v3484 = vpop.f32.mrb[0].mxu0
      %v3485 = vpop.f32.mrb[0].mxu0
      %v3486 = vadd.f32 0.0, %v3485
      %v3487 = vpop.f32.mrb[0].mxu0
      %3488 = vmatprep.mubr.bf16.mxu0 0
      %3489 = vmatmul.mubr.bf16.gmra.mrb[0].mxu0 %v3362
      %v3490 = vpop.f32.mrb[0].mxu0
      %v3491 = vadd.f32 0.0, %v3490
      %v3492 = vpop.f32.mrb[0].mxu0
      %v3493 = vpop.f32.mrb[0].mxu0
      %v3494 = vadd.f32 0.0, %v3493
      %v3495 = vpop.f32.mrb[0].mxu0
      %3496 = vmatprep.mubr.bf16.mxu0 0
      %3497 = vmatmul.mubr.bf16.gmra.mrb[0].mxu0 %v3363
      %v3498 = vpop.f32.mrb[0].mxu0
      %v3499 = vadd.f32 0.0, %v3498
      %v3500 = vpop.f32.mrb[0].mxu0
      %v3501 = vpop.f32.mrb[0].mxu0
      %v3502 = vadd.f32 0.0, %v3501
      %v3503 = vpop.f32.mrb[0].mxu0
      %3504 = vmatprep.mubr.bf16.mxu0 0
      %3505 = vmatmul.mubr.bf16.gmra.mrb[0].mxu0 %v3364
      %v3506 = vpop.f32.mrb[0].mxu0
      %v3507 = vadd.f32 0.0, %v3506
      %v3508 = vpop.f32.mrb[0].mxu0
      %v3509 = vpop.f32.mrb[0].mxu0
      %v3510 = vadd.f32 0.0, %v3509
      %v3511 = vpop.f32.mrb[0].mxu0
      %3512 = vmatprep.mubr.bf16.mxu0 0
      %3513 = vmatmul.mubr.bf16.gmra.mrb[0].mxu0 %v3365
      %v3514 = vpop.f32.mrb[0].mxu0
      %v3515 = vadd.f32 0.0, %v3514
      %v3516 = vpop.f32.mrb[0].mxu0
      %v3517 = vpop.f32.mrb[0].mxu0
      %v3518 = vadd.f32 0.0, %v3517
      %v3519 = vpop.f32.mrb[0].mxu0
      %3520 = vmatprep.mubr.bf16.mxu0 0
      %3521 = vmatmul.mubr.bf16.gmra.mrb[0].mxu0 %v3366
      %v3522 = vpop.f32.mrb[0].mxu0
      %v3523 = vadd.f32 0.0, %v3522
      %v3524 = vpop.f32.mrb[0].mxu0
      %v3525 = vpop.f32.mrb[0].mxu0
      %v3526 = vadd.f32 0.0, %v3525
      %v3527 = vpop.f32.mrb[0].mxu0
      %3528 = vdwg.mxu0
      %v3529 = vadd.f32 %v3293, %v3467
      %v3530 = vadd.f32 %v3294, %v3470
      %v3531 = vadd.f32 %v3295, %v3475
      %v3532 = vadd.f32 %v3296, %v3478
      %v3533 = vadd.f32 %v3297, %v3483
      %v3534 = vadd.f32 %v3298, %v3486
      %v3535 = vadd.f32 %v3299, %v3491
      %v3536 = vadd.f32 %v3300, %v3494
      %v3537 = vadd.f32 %v3301, %v3499
      %v3538 = vadd.f32 %v3302, %v3502
      %v3539 = vadd.f32 %v3303, %v3507
      %v3540 = vadd.f32 %v3304, %v3510
      %v3541 = vadd.f32 %v3305, %v3515
      %v3542 = vadd.f32 %v3306, %v3518
      %v3543 = vadd.f32 %v3307, %v3523
      %v3544 = vadd.f32 %v3308, %v3526
      %v3569 = vrot.slane %v3335, 1
      %v3570 = vrot.slane %v3336, 1
      %v3571 = vsel %vm452, %v3569, %v3570
      %v3572 = vrot.slane %v3337, 1
      %v3573 = vsel %vm452, %v3570, %v3572
      %v3574 = vrot.slane %v3338, 1
      %v3575 = vrot.slane %v3339, 1
      %v3576 = vsel %vm452, %v3574, %v3575
      %v3577 = vrot.slane %v3340, 1
      %v3578 = vsel %vm452, %v3575, %v3577
      %v3579 = vrot.slane %v3341, 1
      %v3580 = vrot.slane %v3342, 1
      %v3581 = vsel %vm452, %v3579, %v3580
      %v3582 = vrot.slane %v3343, 1
      %v3583 = vsel %vm452, %v3580, %v3582
      %v3584 = vrot.slane %v3344, 1
      %v3585 = vrot.slane %v3345, 1
      %v3586 = vsel %vm452, %v3584, %v3585
      %v3587 = vrot.slane %v3346, 1
      %v3588 = vsel %vm452, %v3585, %v3587
      %v3589 = vrot.slane %v3347, 1
      %v3590 = vrot.slane %v3348, 1
      %v3591 = vsel %vm452, %v3589, %v3590
      %v3592 = vrot.slane %v3349, 1
      %v3593 = vsel %vm452, %v3590, %v3592
      %v3594 = vrot.slane %v3350, 1
      %v3595 = vrot.slane %v3351, 1
      %v3596 = vsel %vm452, %v3594, %v3595
      %v3597 = vrot.slane %v3352, 1
      %v3598 = vsel %vm452, %v3595, %v3597
      %v3599 = vrot.slane %v3353, 1
      %v3600 = vrot.slane %v3354, 1
      %v3601 = vsel %vm452, %v3599, %v3600
      %v3602 = vrot.slane %v3355, 1
      %v3603 = vsel %vm452, %v3600, %v3602
      %v3604 = vrot.slane %v3356, 1
      %v3605 = vrot.slane %v3357, 1
      %v3606 = vsel %vm452, %v3604, %v3605
      %v3607 = vrot.slane %v3358, 1
      %v3608 = vsel %vm452, %v3605, %v3607
      %v3625 = vpack.c.bf16 %v3573, %v3571
      %v3626 = vpack.c.bf16 %v3578, %v3576
      %v3627 = vpack.c.bf16 %v3583, %v3581
      %v3628 = vpack.c.bf16 %v3588, %v3586
      %v3629 = vpack.c.bf16 %v3593, %v3591
      %v3630 = vpack.c.bf16 %v3598, %v3596
      %v3631 = vpack.c.bf16 %v3603, %v3601
      %v3632 = vpack.c.bf16 %v3608, %v3606
      %s3633 = scalar_lea.vmem %s3, 256
      %v3634 = vld [vmem:[%s3633] sm:$0xf]
      %v3635 = vld [vmem:[%s3633 + $0x4] sm:$0xf]
      %v3636 = vld [vmem:[%s3633 + $0x8] sm:$0xf]
      %v3637 = vld [vmem:[%s3633 + $0xc] sm:$0xf]
      %v3638 = vld [vmem:[%s3633 + $0x10] sm:$0xf]
      %v3639 = vld [vmem:[%s3633 + $0x14] sm:$0xf]
      %v3640 = vld [vmem:[%s3633 + $0x18] sm:$0xf]
      %v3641 = vld [vmem:[%s3633 + $0x1c] sm:$0xf]
      %v3642 = vld [vmem:[%s3633 + $0x20] sm:$0xf]
      %v3643 = vld [vmem:[%s3633 + $0x24] sm:$0xf]
      %v3644 = vld [vmem:[%s3633 + $0x28] sm:$0xf]
      %v3645 = vld [vmem:[%s3633 + $0x2c] sm:$0xf]
      %v3646 = vld [vmem:[%s3633 + $0x30] sm:$0xf]
      %v3647 = vld [vmem:[%s3633 + $0x34] sm:$0xf]
      %v3648 = vld [vmem:[%s3633 + $0x38] sm:$0xf]
      %v3649 = vld [vmem:[%s3633 + $0x3c] sm:$0xf]
      %v3666 = vunpack.c.l.b16 %v3634
      %v3667 = vunpack.c.l.b16 %v3635
      %v3668 = vunpack.c.l.b16 %v3636
      %v3669 = vunpack.c.l.b16 %v3637
      %v3670 = vunpack.c.l.b16 %v3638
      %v3671 = vunpack.c.l.b16 %v3639
      %v3672 = vunpack.c.l.b16 %v3640
      %v3673 = vunpack.c.l.b16 %v3641
      %v3674 = vunpack.c.l.b16 %v3642
      %v3675 = vunpack.c.l.b16 %v3643
      %v3676 = vunpack.c.l.b16 %v3644
      %v3677 = vunpack.c.l.b16 %v3645
      %v3678 = vunpack.c.l.b16 %v3646
      %v3679 = vunpack.c.l.b16 %v3647
      %v3680 = vunpack.c.l.b16 %v3648
      %v3681 = vunpack.c.l.b16 %v3649
      %v3682 = vpack.c.b16 %v3667, %v3666
      %v3683 = vpack.c.b16 %v3669, %v3668
      %v3684 = vpack.c.b16 %v3671, %v3670
      %v3685 = vpack.c.b16 %v3673, %v3672
      %v3686 = vpack.c.b16 %v3675, %v3674
      %v3687 = vpack.c.b16 %v3677, %v3676
      %v3688 = vpack.c.b16 %v3679, %v3678
      %v3689 = vpack.c.b16 %v3681, %v3680
      %3698 = vmatprep.subr.bf16.mxu0 0
      %3699 = vmatpush1.bf16.msra.mxu0 %v3682
      %3700 = vmatprep.subr.bf16.mxu0 0
      %3701 = vmatpush1.bf16.msra.mxu0 %v3683
      %3702 = vmatprep.subr.bf16.mxu0 0
      %3703 = vmatpush1.bf16.msra.mxu0 %v3684
      %3704 = vmatprep.subr.bf16.mxu0 0
      %3705 = vmatpush1.bf16.msra.mxu0 %v3685
      %3706 = vmatprep.subr.bf16.mxu0 0
      %3707 = vmatpush1.bf16.msra.mxu0 %v3686
      %3708 = vmatprep.subr.bf16.mxu0 0
      %3709 = vmatpush1.bf16.msra.mxu0 %v3687
      %3710 = vmatprep.subr.bf16.mxu0 0
      %3711 = vmatpush1.bf16.msra.mxu0 %v3688
      %3712 = vmatprep.subr.bf16.mxu0 0
      %3713 = vmatpush1.bf16.msra.mxu0 %v3689
      %3714 = vmatprep.subr.bf16.mxu0 0
      %3715 = vmatpush1.bf16.msra.mxu0 0
      %3716 = vmatprep.subr.bf16.mxu0 0
      %3717 = vmatpush1.bf16.msra.mxu0 0
      %3718 = vmatprep.subr.bf16.mxu0 0
      %3719 = vmatpush1.bf16.msra.mxu0 0
      %3720 = vmatprep.subr.bf16.mxu0 0
      %3721 = vmatpush1.bf16.msra.mxu0 0
      %3722 = vmatprep.subr.bf16.mxu0 0
      %3723 = vmatpush1.bf16.msra.mxu0 0
      %3724 = vmatprep.subr.bf16.mxu0 0
      %3725 = vmatpush1.bf16.msra.mxu0 0
      %3726 = vmatprep.subr.bf16.mxu0 0
      %3727 = vmatpush1.bf16.msra.mxu0 0
      %3728 = vmatprep.subr.bf16.mxu0 0
      %3729 = vmatpush1.bf16.msra.mxu0 0
      %3730 = vmatprep.mubr.bf16.mxu0 0
      %3731 = vmatmul.mubr.bf16.gmra.mrb[0].mxu0 %v3625
      %v3732 = vpop.f32.mrb[0].mxu0
      %v3733 = vadd.f32 0.0, %v3732
      %v3734 = vpop.f32.mrb[0].mxu0
      %v3735 = vpop.f32.mrb[0].mxu0
      %v3736 = vadd.f32 0.0, %v3735
      %v3737 = vpop.f32.mrb[0].mxu0
      %3738 = vmatprep.mubr.bf16.mxu0 0
      %3739 = vmatmul.mubr.bf16.gmra.mrb[0].mxu0 %v3626
      %v3740 = vpop.f32.mrb[0].mxu0
      %v3741 = vadd.f32 0.0, %v3740
      %v3742 = vpop.f32.mrb[0].mxu0
      %v3743 = vpop.f32.mrb[0].mxu0
      %v3744 = vadd.f32 0.0, %v3743
      %v3745 = vpop.f32.mrb[0].mxu0
      %3746 = vmatprep.mubr.bf16.mxu0 0
      %3747 = vmatmul.mubr.bf16.gmra.mrb[0].mxu0 %v3627
      %v3748 = vpop.f32.mrb[0].mxu0
      %v3749 = vadd.f32 0.0, %v3748
      %v3750 = vpop.f32.mrb[0].mxu0
      %v3751 = vpop.f32.mrb[0].mxu0
      %v3752 = vadd.f32 0.0, %v3751
      %v3753 = vpop.f32.mrb[0].mxu0
      %3754 = vmatprep.mubr.bf16.mxu0 0
      %3755 = vmatmul.mubr.bf16.gmra.mrb[0].mxu0 %v3628
      %v3756 = vpop.f32.mrb[0].mxu0
      %v3757 = vadd.f32 0.0, %v3756
      %v3758 = vpop.f32.mrb[0].mxu0
      %v3759 = vpop.f32.mrb[0].mxu0
      %v3760 = vadd.f32 0.0, %v3759
      %v3761 = vpop.f32.mrb[0].mxu0
      %3762 = vmatprep.mubr.bf16.mxu0 0
      %3763 = vmatmul.mubr.bf16.gmra.mrb[0].mxu0 %v3629
      %v3764 = vpop.f32.mrb[0].mxu0
      %v3765 = vadd.f32 0.0, %v3764
      %v3766 = vpop.f32.mrb[0].mxu0
      %v3767 = vpop.f32.mrb[0].mxu0
      %v3768 = vadd.f32 0.0, %v3767
      %v3769 = vpop.f32.mrb[0].mxu0
      %3770 = vmatprep.mubr.bf16.mxu0 0
      %3771 = vmatmul.mubr.bf16.gmra.mrb[0].mxu0 %v3630
      %v3772 = vpop.f32.mrb[0].mxu0
      %v3773 = vadd.f32 0.0, %v3772
      %v3774 = vpop.f32.mrb[0].mxu0
      %v3775 = vpop.f32.mrb[0].mxu0
      %v3776 = vadd.f32 0.0, %v3775
      %v3777 = vpop.f32.mrb[0].mxu0
      %3778 = vmatprep.mubr.bf16.mxu0 0
      %3779 = vmatmul.mubr.bf16.gmra.mrb[0].mxu0 %v3631
      %v3780 = vpop.f32.mrb[0].mxu0
      %v3781 = vadd.f32 0.0, %v3780
      %v3782 = vpop.f32.mrb[0].mxu0
      %v3783 = vpop.f32.mrb[0].mxu0
      %v3784 = vadd.f32 0.0, %v3783
      %v3785 = vpop.f32.mrb[0].mxu0
      %3786 = vmatprep.mubr.bf16.mxu0 0
      %3787 = vmatmul.mubr.bf16.gmra.mrb[0].mxu0 %v3632
      %v3788 = vpop.f32.mrb[0].mxu0
      %v3789 = vadd.f32 0.0, %v3788
      %v3790 = vpop.f32.mrb[0].mxu0
      %v3791 = vpop.f32.mrb[0].mxu0
      %v3792 = vadd.f32 0.0, %v3791
      %v3793 = vpop.f32.mrb[0].mxu0
      %3794 = vdwg.mxu0
      %v3795 = vadd.f32 %v3529, %v3733
      %v3796 = vadd.f32 %v3530, %v3736
      %v3797 = vadd.f32 %v3531, %v3741
      %v3798 = vadd.f32 %v3532, %v3744
      %v3799 = vadd.f32 %v3533, %v3749
      %v3800 = vadd.f32 %v3534, %v3752
      %v3801 = vadd.f32 %v3535, %v3757
      %v3802 = vadd.f32 %v3536, %v3760
      %v3803 = vadd.f32 %v3537, %v3765
      %v3804 = vadd.f32 %v3538, %v3768
      %v3805 = vadd.f32 %v3539, %v3773
      %v3806 = vadd.f32 %v3540, %v3776
      %v3807 = vadd.f32 %v3541, %v3781
      %v3808 = vadd.f32 %v3542, %v3784
      %v3809 = vadd.f32 %v3543, %v3789
      %v3810 = vadd.f32 %v3544, %v3792
      %v3811 = vrot.slane %v3335, 2
      %v3812 = vrot.slane %v3336, 2
      %v3813 = vsel %vm824, %v3811, %v3812
      %v3814 = vrot.slane %v3337, 2
      %v3815 = vsel %vm824, %v3812, %v3814
      %v3816 = vrot.slane %v3338, 2
      %v3817 = vrot.slane %v3339, 2
      %v3818 = vsel %vm824, %v3816, %v3817
      %v3819 = vrot.slane %v3340, 2
      %v3820 = vsel %vm824, %v3817, %v3819
      %v3821 = vrot.slane %v3341, 2
      %v3822 = vrot.slane %v3342, 2
      %v3823 = vsel %vm824, %v3821, %v3822
      %v3824 = vrot.slane %v3343, 2
      %v3825 = vsel %vm824, %v3822, %v3824
      %v3826 = vrot.slane %v3344, 2
      %v3827 = vrot.slane %v3345, 2
      %v3828 = vsel %vm824, %v3826, %v3827
      %v3829 = vrot.slane %v3346, 2
      %v3830 = vsel %vm824, %v3827, %v3829
      %v3831 = vrot.slane %v3347, 2
      %v3832 = vrot.slane %v3348, 2
      %v3833 = vsel %vm824, %v3831, %v3832
      %v3834 = vrot.slane %v3349, 2
      %v3835 = vsel %vm824, %v3832, %v3834
      %v3836 = vrot.slane %v3350, 2
      %v3837 = vrot.slane %v3351, 2
      %v3838 = vsel %vm824, %v3836, %v3837
      %v3839 = vrot.slane %v3352, 2
      %v3840 = vsel %vm824, %v3837, %v3839
      %v3841 = vrot.slane %v3353, 2
      %v3842 = vrot.slane %v3354, 2
      %v3843 = vsel %vm824, %v3841, %v3842
      %v3844 = vrot.slane %v3355, 2
      %v3845 = vsel %vm824, %v3842, %v3844
      %v3846 = vrot.slane %v3356, 2
      %v3847 = vrot.slane %v3357, 2
      %v3848 = vsel %vm824, %v3846, %v3847
      %v3849 = vrot.slane %v3358, 2
      %v3850 = vsel %vm824, %v3847, %v3849
      %v3867 = vpack.c.bf16 %v3815, %v3813
      %v3868 = vpack.c.bf16 %v3820, %v3818
      %v3869 = vpack.c.bf16 %v3825, %v3823
      %v3870 = vpack.c.bf16 %v3830, %v3828
      %v3871 = vpack.c.bf16 %v3835, %v3833
      %v3872 = vpack.c.bf16 %v3840, %v3838
      %v3873 = vpack.c.bf16 %v3845, %v3843
      %v3874 = vpack.c.bf16 %v3850, %v3848
      %s3875 = scalar_lea.vmem %s3, 320
      %v3876 = vld [vmem:[%s3875] sm:$0xf]
      %v3877 = vld [vmem:[%s3875 + $0x4] sm:$0xf]
      %v3878 = vld [vmem:[%s3875 + $0x8] sm:$0xf]
      %v3879 = vld [vmem:[%s3875 + $0xc] sm:$0xf]
      %v3880 = vld [vmem:[%s3875 + $0x10] sm:$0xf]
      %v3881 = vld [vmem:[%s3875 + $0x14] sm:$0xf]
      %v3882 = vld [vmem:[%s3875 + $0x18] sm:$0xf]
      %v3883 = vld [vmem:[%s3875 + $0x1c] sm:$0xf]
      %v3884 = vld [vmem:[%s3875 + $0x20] sm:$0xf]
      %v3885 = vld [vmem:[%s3875 + $0x24] sm:$0xf]
      %v3886 = vld [vmem:[%s3875 + $0x28] sm:$0xf]
      %v3887 = vld [vmem:[%s3875 + $0x2c] sm:$0xf]
      %v3888 = vld [vmem:[%s3875 + $0x30] sm:$0xf]
      %v3889 = vld [vmem:[%s3875 + $0x34] sm:$0xf]
      %v3890 = vld [vmem:[%s3875 + $0x38] sm:$0xf]
      %v3891 = vld [vmem:[%s3875 + $0x3c] sm:$0xf]
      %v3908 = vunpack.c.l.b16 %v3876
      %v3909 = vunpack.c.l.b16 %v3877
      %v3910 = vunpack.c.l.b16 %v3878
      %v3911 = vunpack.c.l.b16 %v3879
      %v3912 = vunpack.c.l.b16 %v3880
      %v3913 = vunpack.c.l.b16 %v3881
      %v3914 = vunpack.c.l.b16 %v3882
      %v3915 = vunpack.c.l.b16 %v3883
      %v3916 = vunpack.c.l.b16 %v3884
      %v3917 = vunpack.c.l.b16 %v3885
      %v3918 = vunpack.c.l.b16 %v3886
      %v3919 = vunpack.c.l.b16 %v3887
      %v3920 = vunpack.c.l.b16 %v3888
      %v3921 = vunpack.c.l.b16 %v3889
      %v3922 = vunpack.c.l.b16 %v3890
      %v3923 = vunpack.c.l.b16 %v3891
      %v3924 = vpack.c.b16 %v3909, %v3908
      %v3925 = vpack.c.b16 %v3911, %v3910
      %v3926 = vpack.c.b16 %v3913, %v3912
      %v3927 = vpack.c.b16 %v3915, %v3914
      %v3928 = vpack.c.b16 %v3917, %v3916
      %v3929 = vpack.c.b16 %v3919, %v3918
      %v3930 = vpack.c.b16 %v3921, %v3920
      %v3931 = vpack.c.b16 %v3923, %v3922
      %3940 = vmatprep.subr.bf16.mxu0 0
      %3941 = vmatpush1.bf16.msra.mxu0 %v3924
      %3942 = vmatprep.subr.bf16.mxu0 0
      %3943 = vmatpush1.bf16.msra.mxu0 %v3925
      %3944 = vmatprep.subr.bf16.mxu0 0
      %3945 = vmatpush1.bf16.msra.mxu0 %v3926
      %3946 = vmatprep.subr.bf16.mxu0 0
      %3947 = vmatpush1.bf16.msra.mxu0 %v3927
      %3948 = vmatprep.subr.bf16.mxu0 0
      %3949 = vmatpush1.bf16.msra.mxu0 %v3928
      %3950 = vmatprep.subr.bf16.mxu0 0
      %3951 = vmatpush1.bf16.msra.mxu0 %v3929
      %3952 = vmatprep.subr.bf16.mxu0 0
      %3953 = vmatpush1.bf16.msra.mxu0 %v3930
      %3954 = vmatprep.subr.bf16.mxu0 0
      %3955 = vmatpush1.bf16.msra.mxu0 %v3931
      %3956 = vmatprep.subr.bf16.mxu0 0
      %3957 = vmatpush1.bf16.msra.mxu0 0
      %3958 = vmatprep.subr.bf16.mxu0 0
      %3959 = vmatpush1.bf16.msra.mxu0 0
      %3960 = vmatprep.subr.bf16.mxu0 0
      %3961 = vmatpush1.bf16.msra.mxu0 0
      %3962 = vmatprep.subr.bf16.mxu0 0
      %3963 = vmatpush1.bf16.msra.mxu0 0
      %3964 = vmatprep.subr.bf16.mxu0 0
      %3965 = vmatpush1.bf16.msra.mxu0 0
      %3966 = vmatprep.subr.bf16.mxu0 0
      %3967 = vmatpush1.bf16.msra.mxu0 0
      %3968 = vmatprep.subr.bf16.mxu0 0
      %3969 = vmatpush1.bf16.msra.mxu0 0
      %3970 = vmatprep.subr.bf16.mxu0 0
      %3971 = vmatpush1.bf16.msra.mxu0 0
      %3972 = vmatprep.mubr.bf16.mxu0 0
      %3973 = vmatmul.mubr.bf16.gmra.mrb[0].mxu0 %v3867
      %v3974 = vpop.f32.mrb[0].mxu0
      %v3975 = vadd.f32 0.0, %v3974
      %v3976 = vpop.f32.mrb[0].mxu0
      %v3977 = vpop.f32.mrb[0].mxu0
      %v3978 = vadd.f32 0.0, %v3977
      %v3979 = vpop.f32.mrb[0].mxu0
      %3980 = vmatprep.mubr.bf16.mxu0 0
      %3981 = vmatmul.mubr.bf16.gmra.mrb[0].mxu0 %v3868
      %v3982 = vpop.f32.mrb[0].mxu0
      %v3983 = vadd.f32 0.0, %v3982
      %v3984 = vpop.f32.mrb[0].mxu0
      %v3985 = vpop.f32.mrb[0].mxu0
      %v3986 = vadd.f32 0.0, %v3985
      %v3987 = vpop.f32.mrb[0].mxu0
      %3988 = vmatprep.mubr.bf16.mxu0 0
      %3989 = vmatmul.mubr.bf16.gmra.mrb[0].mxu0 %v3869
      %v3990 = vpop.f32.mrb[0].mxu0
      %v3991 = vadd.f32 0.0, %v3990
      %v3992 = vpop.f32.mrb[0].mxu0
      %v3993 = vpop.f32.mrb[0].mxu0
      %v3994 = vadd.f32 0.0, %v3993
      %v3995 = vpop.f32.mrb[0].mxu0
      %3996 = vmatprep.mubr.bf16.mxu0 0
      %3997 = vmatmul.mubr.bf16.gmra.mrb[0].mxu0 %v3870
      %v3998 = vpop.f32.mrb[0].mxu0
      %v3999 = vadd.f32 0.0, %v3998
      %v4000 = vpop.f32.mrb[0].mxu0
      %v4001 = vpop.f32.mrb[0].mxu0
      %v4002 = vadd.f32 0.0, %v4001
      %v4003 = vpop.f32.mrb[0].mxu0
      %4004 = vmatprep.mubr.bf16.mxu0 0
      %4005 = vmatmul.mubr.bf16.gmra.mrb[0].mxu0 %v3871
      %v4006 = vpop.f32.mrb[0].mxu0
      %v4007 = vadd.f32 0.0, %v4006
      %v4008 = vpop.f32.mrb[0].mxu0
      %v4009 = vpop.f32.mrb[0].mxu0
      %v4010 = vadd.f32 0.0, %v4009
      %v4011 = vpop.f32.mrb[0].mxu0
      %4012 = vmatprep.mubr.bf16.mxu0 0
      %4013 = vmatmul.mubr.bf16.gmra.mrb[0].mxu0 %v3872
      %v4014 = vpop.f32.mrb[0].mxu0
      %v4015 = vadd.f32 0.0, %v4014
      %v4016 = vpop.f32.mrb[0].mxu0
      %v4017 = vpop.f32.mrb[0].mxu0
      %v4018 = vadd.f32 0.0, %v4017
      %v4019 = vpop.f32.mrb[0].mxu0
      %4020 = vmatprep.mubr.bf16.mxu0 0
      %4021 = vmatmul.mubr.bf16.gmra.mrb[0].mxu0 %v3873
      %v4022 = vpop.f32.mrb[0].mxu0
      %v4023 = vadd.f32 0.0, %v4022
      %v4024 = vpop.f32.mrb[0].mxu0
      %v4025 = vpop.f32.mrb[0].mxu0
      %v4026 = vadd.f32 0.0, %v4025
      %v4027 = vpop.f32.mrb[0].mxu0
      %4028 = vmatprep.mubr.bf16.mxu0 0
      %4029 = vmatmul.mubr.bf16.gmra.mrb[0].mxu0 %v3874
      %v4030 = vpop.f32.mrb[0].mxu0
      %v4031 = vadd.f32 0.0, %v4030
      %v4032 = vpop.f32.mrb[0].mxu0
      %v4033 = vpop.f32.mrb[0].mxu0
      %v4034 = vadd.f32 0.0, %v4033
      %v4035 = vpop.f32.mrb[0].mxu0
      %4036 = vdwg.mxu0
      %v4037 = vadd.f32 %v3795, %v3975
      %v4038 = vadd.f32 %v3796, %v3978
      %v4039 = vadd.f32 %v3797, %v3983
      %v4040 = vadd.f32 %v3798, %v3986
      %v4041 = vadd.f32 %v3799, %v3991
      %v4042 = vadd.f32 %v3800, %v3994
      %v4043 = vadd.f32 %v3801, %v3999
      %v4044 = vadd.f32 %v3802, %v4002
      %v4045 = vadd.f32 %v3803, %v4007
      %v4046 = vadd.f32 %v3804, %v4010
      %v4047 = vadd.f32 %v3805, %v4015
      %v4048 = vadd.f32 %v3806, %v4018
      %v4049 = vadd.f32 %v3807, %v4023
      %v4050 = vadd.f32 %v3808, %v4026
      %v4051 = vadd.f32 %v3809, %v4031
      %v4052 = vadd.f32 %v3810, %v4034
      %s4053 = smul.addr %s1814, 4
      %s4054 = scalar_lea.vmem %s339, %s4053
      %v4055 = vld [vmem:[%s4054] sm:$0xf]
      %v4056 = vld [vmem:[%s4054 + $0x4] sm:$0xf]
      %v4057 = vld [vmem:[%s4054 + $0x8] sm:$0x1]
      %v4058 = vld [vmem:[%s4054 + $0xc] sm:$0xf]
      %v4059 = vld [vmem:[%s4054 + $0x10] sm:$0xf]
      %v4060 = vld [vmem:[%s4054 + $0x14] sm:$0x1]
      %v4061 = vld [vmem:[%s4054 + $0x18] sm:$0xf]
      %v4062 = vld [vmem:[%s4054 + $0x1c] sm:$0xf]
      %v4063 = vld [vmem:[%s4054 + $0x20] sm:$0x1]
      %v4064 = vld [vmem:[%s4054 + $0x24] sm:$0xf]
      %v4065 = vld [vmem:[%s4054 + $0x28] sm:$0xf]
      %v4066 = vld [vmem:[%s4054 + $0x2c] sm:$0x1]
      %v4067 = vld [vmem:[%s4054 + $0x30] sm:$0xf]
      %v4068 = vld [vmem:[%s4054 + $0x34] sm:$0xf]
      %v4069 = vld [vmem:[%s4054 + $0x38] sm:$0x1]
      %v4070 = vld [vmem:[%s4054 + $0x3c] sm:$0xf]
      %v4071 = vld [vmem:[%s4054 + $0x40] sm:$0xf]
      %v4072 = vld [vmem:[%s4054 + $0x44] sm:$0x1]
      %v4073 = vld [vmem:[%s4054 + $0x48] sm:$0xf]
      %v4074 = vld [vmem:[%s4054 + $0x4c] sm:$0xf]
      %v4075 = vld [vmem:[%s4054 + $0x50] sm:$0x1]
      %v4076 = vld [vmem:[%s4054 + $0x54] sm:$0xf]
      %v4077 = vld [vmem:[%s4054 + $0x58] sm:$0xf]
      %v4078 = vld [vmem:[%s4054 + $0x5c] sm:$0x1]
      %v4079 = vunpack.c.l.bf16 %v4055
      %v4080 = vunpack.c.l.bf16 %v4056
      %v4081 = vunpack.c.l.bf16 %v4057
      %v4082 = vunpack.c.l.bf16 %v4058
      %v4083 = vunpack.c.l.bf16 %v4059
      %v4084 = vunpack.c.l.bf16 %v4060
      %v4085 = vunpack.c.l.bf16 %v4061
      %v4086 = vunpack.c.l.bf16 %v4062
      %v4087 = vunpack.c.l.bf16 %v4063
      %v4088 = vunpack.c.l.bf16 %v4064
      %v4089 = vunpack.c.l.bf16 %v4065
      %v4090 = vunpack.c.l.bf16 %v4066
      %v4091 = vunpack.c.l.bf16 %v4067
      %v4092 = vunpack.c.l.bf16 %v4068
      %v4093 = vunpack.c.l.bf16 %v4069
      %v4094 = vunpack.c.l.bf16 %v4070
      %v4095 = vunpack.c.l.bf16 %v4071
      %v4096 = vunpack.c.l.bf16 %v4072
      %v4097 = vunpack.c.l.bf16 %v4073
      %v4098 = vunpack.c.l.bf16 %v4074
      %v4099 = vunpack.c.l.bf16 %v4075
      %v4100 = vunpack.c.l.bf16 %v4076
      %v4101 = vunpack.c.l.bf16 %v4077
      %v4102 = vunpack.c.l.bf16 %v4078
      %v4103 = vpack.c.bf16 %v4080, %v4079
      %v4104 = vpack.c.bf16 %v4083, %v4082
      %v4105 = vpack.c.bf16 %v4086, %v4085
      %v4106 = vpack.c.bf16 %v4089, %v4088
      %v4107 = vpack.c.bf16 %v4092, %v4091
      %v4108 = vpack.c.bf16 %v4095, %v4094
      %v4109 = vpack.c.bf16 %v4098, %v4097
      %v4110 = vpack.c.bf16 %v4101, %v4100
      %s4111 = scalar_lea.vmem %s3, 384
      %v4112 = vld [vmem:[%s4111] sm:$0xf]
      %v4113 = vld [vmem:[%s4111 + $0x4] sm:$0xf]
      %v4114 = vld [vmem:[%s4111 + $0x8] sm:$0xf]
      %v4115 = vld [vmem:[%s4111 + $0xc] sm:$0xf]
      %v4116 = vld [vmem:[%s4111 + $0x10] sm:$0xf]
      %v4117 = vld [vmem:[%s4111 + $0x14] sm:$0xf]
      %v4118 = vld [vmem:[%s4111 + $0x18] sm:$0xf]
      %v4119 = vld [vmem:[%s4111 + $0x1c] sm:$0xf]
      %v4120 = vld [vmem:[%s4111 + $0x20] sm:$0xf]
      %v4121 = vld [vmem:[%s4111 + $0x24] sm:$0xf]
      %v4122 = vld [vmem:[%s4111 + $0x28] sm:$0xf]
      %v4123 = vld [vmem:[%s4111 + $0x2c] sm:$0xf]
      %v4124 = vld [vmem:[%s4111 + $0x30] sm:$0xf]
      %v4125 = vld [vmem:[%s4111 + $0x34] sm:$0xf]
      %v4126 = vld [vmem:[%s4111 + $0x38] sm:$0xf]
      %v4127 = vld [vmem:[%s4111 + $0x3c] sm:$0xf]
      %v4144 = vunpack.c.l.b16 %v4112
      %v4145 = vunpack.c.l.b16 %v4113
      %v4146 = vunpack.c.l.b16 %v4114
      %v4147 = vunpack.c.l.b16 %v4115
      %v4148 = vunpack.c.l.b16 %v4116
      %v4149 = vunpack.c.l.b16 %v4117
      %v4150 = vunpack.c.l.b16 %v4118
      %v4151 = vunpack.c.l.b16 %v4119
      %v4152 = vunpack.c.l.b16 %v4120
      %v4153 = vunpack.c.l.b16 %v4121
      %v4154 = vunpack.c.l.b16 %v4122
      %v4155 = vunpack.c.l.b16 %v4123
      %v4156 = vunpack.c.l.b16 %v4124
      %v4157 = vunpack.c.l.b16 %v4125
      %v4158 = vunpack.c.l.b16 %v4126
      %v4159 = vunpack.c.l.b16 %v4127
      %v4160 = vpack.c.b16 %v4145, %v4144
      %v4161 = vpack.c.b16 %v4147, %v4146
      %v4162 = vpack.c.b16 %v4149, %v4148
      %v4163 = vpack.c.b16 %v4151, %v4150
      %v4164 = vpack.c.b16 %v4153, %v4152
      %v4165 = vpack.c.b16 %v4155, %v4154
      %v4166 = vpack.c.b16 %v4157, %v4156
      %v4167 = vpack.c.b16 %v4159, %v4158
      %4176 = vmatprep.subr.bf16.mxu0 0
      %4177 = vmatpush1.bf16.msra.mxu0 %v4160
      %4178 = vmatprep.subr.bf16.mxu0 0
      %4179 = vmatpush1.bf16.msra.mxu0 %v4161
      %4180 = vmatprep.subr.bf16.mxu0 0
      %4181 = vmatpush1.bf16.msra.mxu0 %v4162
      %4182 = vmatprep.subr.bf16.mxu0 0
      %4183 = vmatpush1.bf16.msra.mxu0 %v4163
      %4184 = vmatprep.subr.bf16.mxu0 0
      %4185 = vmatpush1.bf16.msra.mxu0 %v4164
      %4186 = vmatprep.subr.bf16.mxu0 0
      %4187 = vmatpush1.bf16.msra.mxu0 %v4165
      %4188 = vmatprep.subr.bf16.mxu0 0
      %4189 = vmatpush1.bf16.msra.mxu0 %v4166
      %4190 = vmatprep.subr.bf16.mxu0 0
      %4191 = vmatpush1.bf16.msra.mxu0 %v4167
      %4192 = vmatprep.subr.bf16.mxu0 0
      %4193 = vmatpush1.bf16.msra.mxu0 0
      %4194 = vmatprep.subr.bf16.mxu0 0
      %4195 = vmatpush1.bf16.msra.mxu0 0
      %4196 = vmatprep.subr.bf16.mxu0 0
      %4197 = vmatpush1.bf16.msra.mxu0 0
      %4198 = vmatprep.subr.bf16.mxu0 0
      %4199 = vmatpush1.bf16.msra.mxu0 0
      %4200 = vmatprep.subr.bf16.mxu0 0
      %4201 = vmatpush1.bf16.msra.mxu0 0
      %4202 = vmatprep.subr.bf16.mxu0 0
      %4203 = vmatpush1.bf16.msra.mxu0 0
      %4204 = vmatprep.subr.bf16.mxu0 0
      %4205 = vmatpush1.bf16.msra.mxu0 0
      %4206 = vmatprep.subr.bf16.mxu0 0
      %4207 = vmatpush1.bf16.msra.mxu0 0
      %4208 = vmatprep.mubr.bf16.mxu0 0
      %4209 = vmatmul.mubr.bf16.gmra.mrb[0].mxu0 %v4103
      %v4210 = vpop.f32.mrb[0].mxu0
      %v4211 = vadd.f32 0.0, %v4210
      %v4212 = vpop.f32.mrb[0].mxu0
      %v4213 = vpop.f32.mrb[0].mxu0
      %v4214 = vadd.f32 0.0, %v4213
      %v4215 = vpop.f32.mrb[0].mxu0
      %4216 = vmatprep.mubr.bf16.mxu0 0
      %4217 = vmatmul.mubr.bf16.gmra.mrb[0].mxu0 %v4104
      %v4218 = vpop.f32.mrb[0].mxu0
      %v4219 = vadd.f32 0.0, %v4218
      %v4220 = vpop.f32.mrb[0].mxu0
      %v4221 = vpop.f32.mrb[0].mxu0
      %v4222 = vadd.f32 0.0, %v4221
      %v4223 = vpop.f32.mrb[0].mxu0
      %4224 = vmatprep.mubr.bf16.mxu0 0
      %4225 = vmatmul.mubr.bf16.gmra.mrb[0].mxu0 %v4105
      %v4226 = vpop.f32.mrb[0].mxu0
      %v4227 = vadd.f32 0.0, %v4226
      %v4228 = vpop.f32.mrb[0].mxu0
      %v4229 = vpop.f32.mrb[0].mxu0
      %v4230 = vadd.f32 0.0, %v4229
      %v4231 = vpop.f32.mrb[0].mxu0
      %4232 = vmatprep.mubr.bf16.mxu0 0
      %4233 = vmatmul.mubr.bf16.gmra.mrb[0].mxu0 %v4106
      %v4234 = vpop.f32.mrb[0].mxu0
      %v4235 = vadd.f32 0.0, %v4234
      %v4236 = vpop.f32.mrb[0].mxu0
      %v4237 = vpop.f32.mrb[0].mxu0
      %v4238 = vadd.f32 0.0, %v4237
      %v4239 = vpop.f32.mrb[0].mxu0
      %4240 = vmatprep.mubr.bf16.mxu0 0
      %4241 = vmatmul.mubr.bf16.gmra.mrb[0].mxu0 %v4107
      %v4242 = vpop.f32.mrb[0].mxu0
      %v4243 = vadd.f32 0.0, %v4242
      %v4244 = vpop.f32.mrb[0].mxu0
      %v4245 = vpop.f32.mrb[0].mxu0
      %v4246 = vadd.f32 0.0, %v4245
      %v4247 = vpop.f32.mrb[0].mxu0
      %4248 = vmatprep.mubr.bf16.mxu0 0
      %4249 = vmatmul.mubr.bf16.gmra.mrb[0].mxu0 %v4108
      %v4250 = vpop.f32.mrb[0].mxu0
      %v4251 = vadd.f32 0.0, %v4250
      %v4252 = vpop.f32.mrb[0].mxu0
      %v4253 = vpop.f32.mrb[0].mxu0
      %v4254 = vadd.f32 0.0, %v4253
      %v4255 = vpop.f32.mrb[0].mxu0
      %4256 = vmatprep.mubr.bf16.mxu0 0
      %4257 = vmatmul.mubr.bf16.gmra.mrb[0].mxu0 %v4109
      %v4258 = vpop.f32.mrb[0].mxu0
      %v4259 = vadd.f32 0.0, %v4258
      %v4260 = vpop.f32.mrb[0].mxu0
      %v4261 = vpop.f32.mrb[0].mxu0
      %v4262 = vadd.f32 0.0, %v4261
      %v4263 = vpop.f32.mrb[0].mxu0
      %4264 = vmatprep.mubr.bf16.mxu0 0
      %4265 = vmatmul.mubr.bf16.gmra.mrb[0].mxu0 %v4110
      %v4266 = vpop.f32.mrb[0].mxu0
      %v4267 = vadd.f32 0.0, %v4266
      %v4268 = vpop.f32.mrb[0].mxu0
      %v4269 = vpop.f32.mrb[0].mxu0
      %v4270 = vadd.f32 0.0, %v4269
      %v4271 = vpop.f32.mrb[0].mxu0
      %4272 = vdwg.mxu0
      %v4273 = vadd.f32 %v4037, %v4211
      %v4274 = vadd.f32 %v4038, %v4214
      %v4275 = vadd.f32 %v4039, %v4219
      %v4276 = vadd.f32 %v4040, %v4222
      %v4277 = vadd.f32 %v4041, %v4227
      %v4278 = vadd.f32 %v4042, %v4230
      %v4279 = vadd.f32 %v4043, %v4235
      %v4280 = vadd.f32 %v4044, %v4238
      %v4281 = vadd.f32 %v4045, %v4243
      %v4282 = vadd.f32 %v4046, %v4246
      %v4283 = vadd.f32 %v4047, %v4251
      %v4284 = vadd.f32 %v4048, %v4254
      %v4285 = vadd.f32 %v4049, %v4259
      %v4286 = vadd.f32 %v4050, %v4262
      %v4287 = vadd.f32 %v4051, %v4267
      %v4288 = vadd.f32 %v4052, %v4270
      %v4313 = vrot.slane %v4079, 1
      %v4314 = vrot.slane %v4080, 1
      %v4315 = vsel %vm452, %v4313, %v4314
      %v4316 = vrot.slane %v4081, 1
      %v4317 = vsel %vm452, %v4314, %v4316
      %v4318 = vrot.slane %v4082, 1
      %v4319 = vrot.slane %v4083, 1
      %v4320 = vsel %vm452, %v4318, %v4319
      %v4321 = vrot.slane %v4084, 1
      %v4322 = vsel %vm452, %v4319, %v4321
      %v4323 = vrot.slane %v4085, 1
      %v4324 = vrot.slane %v4086, 1
      %v4325 = vsel %vm452, %v4323, %v4324
      %v4326 = vrot.slane %v4087, 1
      %v4327 = vsel %vm452, %v4324, %v4326
      %v4328 = vrot.slane %v4088, 1
      %v4329 = vrot.slane %v4089, 1
      %v4330 = vsel %vm452, %v4328, %v4329
      %v4331 = vrot.slane %v4090, 1
      %v4332 = vsel %vm452, %v4329, %v4331
      %v4333 = vrot.slane %v4091, 1
      %v4334 = vrot.slane %v4092, 1
      %v4335 = vsel %vm452, %v4333, %v4334
      %v4336 = vrot.slane %v4093, 1
      %v4337 = vsel %vm452, %v4334, %v4336
      %v4338 = vrot.slane %v4094, 1
      %v4339 = vrot.slane %v4095, 1
      %v4340 = vsel %vm452, %v4338, %v4339
      %v4341 = vrot.slane %v4096, 1
      %v4342 = vsel %vm452, %v4339, %v4341
      %v4343 = vrot.slane %v4097, 1
      %v4344 = vrot.slane %v4098, 1
      %v4345 = vsel %vm452, %v4343, %v4344
      %v4346 = vrot.slane %v4099, 1
      %v4347 = vsel %vm452, %v4344, %v4346
      %v4348 = vrot.slane %v4100, 1
      %v4349 = vrot.slane %v4101, 1
      %v4350 = vsel %vm452, %v4348, %v4349
      %v4351 = vrot.slane %v4102, 1
      %v4352 = vsel %vm452, %v4349, %v4351
      %v4369 = vpack.c.bf16 %v4317, %v4315
      %v4370 = vpack.c.bf16 %v4322, %v4320
      %v4371 = vpack.c.bf16 %v4327, %v4325
      %v4372 = vpack.c.bf16 %v4332, %v4330
      %v4373 = vpack.c.bf16 %v4337, %v4335
      %v4374 = vpack.c.bf16 %v4342, %v4340
      %v4375 = vpack.c.bf16 %v4347, %v4345
      %v4376 = vpack.c.bf16 %v4352, %v4350
      %s4377 = scalar_lea.vmem %s3, 448
      %v4378 = vld [vmem:[%s4377] sm:$0xf]
      %v4379 = vld [vmem:[%s4377 + $0x4] sm:$0xf]
      %v4380 = vld [vmem:[%s4377 + $0x8] sm:$0xf]
      %v4381 = vld [vmem:[%s4377 + $0xc] sm:$0xf]
      %v4382 = vld [vmem:[%s4377 + $0x10] sm:$0xf]
      %v4383 = vld [vmem:[%s4377 + $0x14] sm:$0xf]
      %v4384 = vld [vmem:[%s4377 + $0x18] sm:$0xf]
      %v4385 = vld [vmem:[%s4377 + $0x1c] sm:$0xf]
      %v4386 = vld [vmem:[%s4377 + $0x20] sm:$0xf]
      %v4387 = vld [vmem:[%s4377 + $0x24] sm:$0xf]
      %v4388 = vld [vmem:[%s4377 + $0x28] sm:$0xf]
      %v4389 = vld [vmem:[%s4377 + $0x2c] sm:$0xf]
      %v4390 = vld [vmem:[%s4377 + $0x30] sm:$0xf]
      %v4391 = vld [vmem:[%s4377 + $0x34] sm:$0xf]
      %v4392 = vld [vmem:[%s4377 + $0x38] sm:$0xf]
      %v4393 = vld [vmem:[%s4377 + $0x3c] sm:$0xf]
      %v4410 = vunpack.c.l.b16 %v4378
      %v4411 = vunpack.c.l.b16 %v4379
      %v4412 = vunpack.c.l.b16 %v4380
      %v4413 = vunpack.c.l.b16 %v4381
      %v4414 = vunpack.c.l.b16 %v4382
      %v4415 = vunpack.c.l.b16 %v4383
      %v4416 = vunpack.c.l.b16 %v4384
      %v4417 = vunpack.c.l.b16 %v4385
      %v4418 = vunpack.c.l.b16 %v4386
      %v4419 = vunpack.c.l.b16 %v4387
      %v4420 = vunpack.c.l.b16 %v4388
      %v4421 = vunpack.c.l.b16 %v4389
      %v4422 = vunpack.c.l.b16 %v4390
      %v4423 = vunpack.c.l.b16 %v4391
      %v4424 = vunpack.c.l.b16 %v4392
      %v4425 = vunpack.c.l.b16 %v4393
      %v4426 = vpack.c.b16 %v4411, %v4410
      %v4427 = vpack.c.b16 %v4413, %v4412
      %v4428 = vpack.c.b16 %v4415, %v4414
      %v4429 = vpack.c.b16 %v4417, %v4416
      %v4430 = vpack.c.b16 %v4419, %v4418
      %v4431 = vpack.c.b16 %v4421, %v4420
      %v4432 = vpack.c.b16 %v4423, %v4422
      %v4433 = vpack.c.b16 %v4425, %v4424
      %4442 = vmatprep.subr.bf16.mxu0 0
      %4443 = vmatpush1.bf16.msra.mxu0 %v4426
      %4444 = vmatprep.subr.bf16.mxu0 0
      %4445 = vmatpush1.bf16.msra.mxu0 %v4427
      %4446 = vmatprep.subr.bf16.mxu0 0
      %4447 = vmatpush1.bf16.msra.mxu0 %v4428
      %4448 = vmatprep.subr.bf16.mxu0 0
      %4449 = vmatpush1.bf16.msra.mxu0 %v4429
      %4450 = vmatprep.subr.bf16.mxu0 0
      %4451 = vmatpush1.bf16.msra.mxu0 %v4430
      %4452 = vmatprep.subr.bf16.mxu0 0
      %4453 = vmatpush1.bf16.msra.mxu0 %v4431
      %4454 = vmatprep.subr.bf16.mxu0 0
      %4455 = vmatpush1.bf16.msra.mxu0 %v4432
      %4456 = vmatprep.subr.bf16.mxu0 0
      %4457 = vmatpush1.bf16.msra.mxu0 %v4433
      %4458 = vmatprep.subr.bf16.mxu0 0
      %4459 = vmatpush1.bf16.msra.mxu0 0
      %4460 = vmatprep.subr.bf16.mxu0 0
      %4461 = vmatpush1.bf16.msra.mxu0 0
      %4462 = vmatprep.subr.bf16.mxu0 0
      %4463 = vmatpush1.bf16.msra.mxu0 0
      %4464 = vmatprep.subr.bf16.mxu0 0
      %4465 = vmatpush1.bf16.msra.mxu0 0
      %4466 = vmatprep.subr.bf16.mxu0 0
      %4467 = vmatpush1.bf16.msra.mxu0 0
      %4468 = vmatprep.subr.bf16.mxu0 0
      %4469 = vmatpush1.bf16.msra.mxu0 0
      %4470 = vmatprep.subr.bf16.mxu0 0
      %4471 = vmatpush1.bf16.msra.mxu0 0
      %4472 = vmatprep.subr.bf16.mxu0 0
      %4473 = vmatpush1.bf16.msra.mxu0 0
      %4474 = vmatprep.mubr.bf16.mxu0 0
      %4475 = vmatmul.mubr.bf16.gmra.mrb[0].mxu0 %v4369
      %v4476 = vpop.f32.mrb[0].mxu0
      %v4477 = vadd.f32 0.0, %v4476
      %v4478 = vpop.f32.mrb[0].mxu0
      %v4479 = vpop.f32.mrb[0].mxu0
      %v4480 = vadd.f32 0.0, %v4479
      %v4481 = vpop.f32.mrb[0].mxu0
      %4482 = vmatprep.mubr.bf16.mxu0 0
      %4483 = vmatmul.mubr.bf16.gmra.mrb[0].mxu0 %v4370
      %v4484 = vpop.f32.mrb[0].mxu0
      %v4485 = vadd.f32 0.0, %v4484
      %v4486 = vpop.f32.mrb[0].mxu0
      %v4487 = vpop.f32.mrb[0].mxu0
      %v4488 = vadd.f32 0.0, %v4487
      %v4489 = vpop.f32.mrb[0].mxu0
      %4490 = vmatprep.mubr.bf16.mxu0 0
      %4491 = vmatmul.mubr.bf16.gmra.mrb[0].mxu0 %v4371
      %v4492 = vpop.f32.mrb[0].mxu0
      %v4493 = vadd.f32 0.0, %v4492
      %v4494 = vpop.f32.mrb[0].mxu0
      %v4495 = vpop.f32.mrb[0].mxu0
      %v4496 = vadd.f32 0.0, %v4495
      %v4497 = vpop.f32.mrb[0].mxu0
      %4498 = vmatprep.mubr.bf16.mxu0 0
      %4499 = vmatmul.mubr.bf16.gmra.mrb[0].mxu0 %v4372
      %v4500 = vpop.f32.mrb[0].mxu0
      %v4501 = vadd.f32 0.0, %v4500
      %v4502 = vpop.f32.mrb[0].mxu0
      %v4503 = vpop.f32.mrb[0].mxu0
      %v4504 = vadd.f32 0.0, %v4503
      %v4505 = vpop.f32.mrb[0].mxu0
      %4506 = vmatprep.mubr.bf16.mxu0 0
      %4507 = vmatmul.mubr.bf16.gmra.mrb[0].mxu0 %v4373
      %v4508 = vpop.f32.mrb[0].mxu0
      %v4509 = vadd.f32 0.0, %v4508
      %v4510 = vpop.f32.mrb[0].mxu0
      %v4511 = vpop.f32.mrb[0].mxu0
      %v4512 = vadd.f32 0.0, %v4511
      %v4513 = vpop.f32.mrb[0].mxu0
      %4514 = vmatprep.mubr.bf16.mxu0 0
      %4515 = vmatmul.mubr.bf16.gmra.mrb[0].mxu0 %v4374
      %v4516 = vpop.f32.mrb[0].mxu0
      %v4517 = vadd.f32 0.0, %v4516
      %v4518 = vpop.f32.mrb[0].mxu0
      %v4519 = vpop.f32.mrb[0].mxu0
      %v4520 = vadd.f32 0.0, %v4519
      %v4521 = vpop.f32.mrb[0].mxu0
      %4522 = vmatprep.mubr.bf16.mxu0 0
      %4523 = vmatmul.mubr.bf16.gmra.mrb[0].mxu0 %v4375
      %v4524 = vpop.f32.mrb[0].mxu0
      %v4525 = vadd.f32 0.0, %v4524
      %v4526 = vpop.f32.mrb[0].mxu0
      %v4527 = vpop.f32.mrb[0].mxu0
      %v4528 = vadd.f32 0.0, %v4527
      %v4529 = vpop.f32.mrb[0].mxu0
      %4530 = vmatprep.mubr.bf16.mxu0 0
      %4531 = vmatmul.mubr.bf16.gmra.mrb[0].mxu0 %v4376
      %v4532 = vpop.f32.mrb[0].mxu0
      %v4533 = vadd.f32 0.0, %v4532
      %v4534 = vpop.f32.mrb[0].mxu0
      %v4535 = vpop.f32.mrb[0].mxu0
      %v4536 = vadd.f32 0.0, %v4535
      %v4537 = vpop.f32.mrb[0].mxu0
      %4538 = vdwg.mxu0
      %v4539 = vadd.f32 %v4273, %v4477
      %v4540 = vadd.f32 %v4274, %v4480
      %v4541 = vadd.f32 %v4275, %v4485
      %v4542 = vadd.f32 %v4276, %v4488
      %v4543 = vadd.f32 %v4277, %v4493
      %v4544 = vadd.f32 %v4278, %v4496
      %v4545 = vadd.f32 %v4279, %v4501
      %v4546 = vadd.f32 %v4280, %v4504
      %v4547 = vadd.f32 %v4281, %v4509
      %v4548 = vadd.f32 %v4282, %v4512
      %v4549 = vadd.f32 %v4283, %v4517
      %v4550 = vadd.f32 %v4284, %v4520
      %v4551 = vadd.f32 %v4285, %v4525
      %v4552 = vadd.f32 %v4286, %v4528
      %v4553 = vadd.f32 %v4287, %v4533
      %v4554 = vadd.f32 %v4288, %v4536
      %v4555 = vrot.slane %v4079, 2
      %v4556 = vrot.slane %v4080, 2
      %v4557 = vsel %vm824, %v4555, %v4556
      %v4558 = vrot.slane %v4081, 2
      %v4559 = vsel %vm824, %v4556, %v4558
      %v4560 = vrot.slane %v4082, 2
      %v4561 = vrot.slane %v4083, 2
      %v4562 = vsel %vm824, %v4560, %v4561
      %v4563 = vrot.slane %v4084, 2
      %v4564 = vsel %vm824, %v4561, %v4563
      %v4565 = vrot.slane %v4085, 2
      %v4566 = vrot.slane %v4086, 2
      %v4567 = vsel %vm824, %v4565, %v4566
      %v4568 = vrot.slane %v4087, 2
      %v4569 = vsel %vm824, %v4566, %v4568
      %v4570 = vrot.slane %v4088, 2
      %v4571 = vrot.slane %v4089, 2
      %v4572 = vsel %vm824, %v4570, %v4571
      %v4573 = vrot.slane %v4090, 2
      %v4574 = vsel %vm824, %v4571, %v4573
      %v4575 = vrot.slane %v4091, 2
      %v4576 = vrot.slane %v4092, 2
      %v4577 = vsel %vm824, %v4575, %v4576
      %v4578 = vrot.slane %v4093, 2
      %v4579 = vsel %vm824, %v4576, %v4578
      %v4580 = vrot.slane %v4094, 2
      %v4581 = vrot.slane %v4095, 2
      %v4582 = vsel %vm824, %v4580, %v4581
      %v4583 = vrot.slane %v4096, 2
      %v4584 = vsel %vm824, %v4581, %v4583
      %v4585 = vrot.slane %v4097, 2
      %v4586 = vrot.slane %v4098, 2
      %v4587 = vsel %vm824, %v4585, %v4586
      %v4588 = vrot.slane %v4099, 2
      %v4589 = vsel %vm824, %v4586, %v4588
      %v4590 = vrot.slane %v4100, 2
      %v4591 = vrot.slane %v4101, 2
      %v4592 = vsel %vm824, %v4590, %v4591
      %v4593 = vrot.slane %v4102, 2
      %v4594 = vsel %vm824, %v4591, %v4593
      %v4611 = vpack.c.bf16 %v4559, %v4557
      %v4612 = vpack.c.bf16 %v4564, %v4562
      %v4613 = vpack.c.bf16 %v4569, %v4567
      %v4614 = vpack.c.bf16 %v4574, %v4572
      %v4615 = vpack.c.bf16 %v4579, %v4577
      %v4616 = vpack.c.bf16 %v4584, %v4582
      %v4617 = vpack.c.bf16 %v4589, %v4587
      %v4618 = vpack.c.bf16 %v4594, %v4592
      %s4619 = scalar_lea.vmem %s3, 512
      %v4620 = vld [vmem:[%s4619] sm:$0xf]
      %v4621 = vld [vmem:[%s4619 + $0x4] sm:$0xf]
      %v4622 = vld [vmem:[%s4619 + $0x8] sm:$0xf]
      %v4623 = vld [vmem:[%s4619 + $0xc] sm:$0xf]
      %v4624 = vld [vmem:[%s4619 + $0x10] sm:$0xf]
      %v4625 = vld [vmem:[%s4619 + $0x14] sm:$0xf]
      %v4626 = vld [vmem:[%s4619 + $0x18] sm:$0xf]
      %v4627 = vld [vmem:[%s4619 + $0x1c] sm:$0xf]
      %v4628 = vld [vmem:[%s4619 + $0x20] sm:$0xf]
      %v4629 = vld [vmem:[%s4619 + $0x24] sm:$0xf]
      %v4630 = vld [vmem:[%s4619 + $0x28] sm:$0xf]
      %v4631 = vld [vmem:[%s4619 + $0x2c] sm:$0xf]
      %v4632 = vld [vmem:[%s4619 + $0x30] sm:$0xf]
      %v4633 = vld [vmem:[%s4619 + $0x34] sm:$0xf]
      %v4634 = vld [vmem:[%s4619 + $0x38] sm:$0xf]
      %v4635 = vld [vmem:[%s4619 + $0x3c] sm:$0xf]
      %v4652 = vunpack.c.l.b16 %v4620
      %v4653 = vunpack.c.l.b16 %v4621
      %v4654 = vunpack.c.l.b16 %v4622
      %v4655 = vunpack.c.l.b16 %v4623
      %v4656 = vunpack.c.l.b16 %v4624
      %v4657 = vunpack.c.l.b16 %v4625
      %v4658 = vunpack.c.l.b16 %v4626
      %v4659 = vunpack.c.l.b16 %v4627
      %v4660 = vunpack.c.l.b16 %v4628
      %v4661 = vunpack.c.l.b16 %v4629
      %v4662 = vunpack.c.l.b16 %v4630
      %v4663 = vunpack.c.l.b16 %v4631
      %v4664 = vunpack.c.l.b16 %v4632
      %v4665 = vunpack.c.l.b16 %v4633
      %v4666 = vunpack.c.l.b16 %v4634
      %v4667 = vunpack.c.l.b16 %v4635
      %v4668 = vpack.c.b16 %v4653, %v4652
      %v4669 = vpack.c.b16 %v4655, %v4654
      %v4670 = vpack.c.b16 %v4657, %v4656
      %v4671 = vpack.c.b16 %v4659, %v4658
      %v4672 = vpack.c.b16 %v4661, %v4660
      %v4673 = vpack.c.b16 %v4663, %v4662
      %v4674 = vpack.c.b16 %v4665, %v4664
      %v4675 = vpack.c.b16 %v4667, %v4666
      %4684 = vmatprep.subr.bf16.mxu0 0
      %4685 = vmatpush1.bf16.msra.mxu0 %v4668
      %4686 = vmatprep.subr.bf16.mxu0 0
      %4687 = vmatpush1.bf16.msra.mxu0 %v4669
      %4688 = vmatprep.subr.bf16.mxu0 0
      %4689 = vmatpush1.bf16.msra.mxu0 %v4670
      %4690 = vmatprep.subr.bf16.mxu0 0
      %4691 = vmatpush1.bf16.msra.mxu0 %v4671
      %4692 = vmatprep.subr.bf16.mxu0 0
      %4693 = vmatpush1.bf16.msra.mxu0 %v4672
      %4694 = vmatprep.subr.bf16.mxu0 0
      %4695 = vmatpush1.bf16.msra.mxu0 %v4673
      %4696 = vmatprep.subr.bf16.mxu0 0
      %4697 = vmatpush1.bf16.msra.mxu0 %v4674
      %4698 = vmatprep.subr.bf16.mxu0 0
      %4699 = vmatpush1.bf16.msra.mxu0 %v4675
      %4700 = vmatprep.subr.bf16.mxu0 0
      %4701 = vmatpush1.bf16.msra.mxu0 0
      %4702 = vmatprep.subr.bf16.mxu0 0
      %4703 = vmatpush1.bf16.msra.mxu0 0
      %4704 = vmatprep.subr.bf16.mxu0 0
      %4705 = vmatpush1.bf16.msra.mxu0 0
      %4706 = vmatprep.subr.bf16.mxu0 0
      %4707 = vmatpush1.bf16.msra.mxu0 0
      %4708 = vmatprep.subr.bf16.mxu0 0
      %4709 = vmatpush1.bf16.msra.mxu0 0
      %4710 = vmatprep.subr.bf16.mxu0 0
      %4711 = vmatpush1.bf16.msra.mxu0 0
      %4712 = vmatprep.subr.bf16.mxu0 0
      %4713 = vmatpush1.bf16.msra.mxu0 0
      %4714 = vmatprep.subr.bf16.mxu0 0
      %4715 = vmatpush1.bf16.msra.mxu0 0
      %4716 = vmatprep.mubr.bf16.mxu0 0
      %4717 = vmatmul.mubr.bf16.gmra.mrb[0].mxu0 %v4611
      %v4718 = vpop.f32.mrb[0].mxu0
      %v4719 = vadd.f32 0.0, %v4718
      %v4720 = vpop.f32.mrb[0].mxu0
      %v4721 = vpop.f32.mrb[0].mxu0
      %v4722 = vadd.f32 0.0, %v4721
      %v4723 = vpop.f32.mrb[0].mxu0
      %4724 = vmatprep.mubr.bf16.mxu0 0
      %4725 = vmatmul.mubr.bf16.gmra.mrb[0].mxu0 %v4612
      %v4726 = vpop.f32.mrb[0].mxu0
      %v4727 = vadd.f32 0.0, %v4726
      %v4728 = vpop.f32.mrb[0].mxu0
      %v4729 = vpop.f32.mrb[0].mxu0
      %v4730 = vadd.f32 0.0, %v4729
      %v4731 = vpop.f32.mrb[0].mxu0
      %4732 = vmatprep.mubr.bf16.mxu0 0
      %4733 = vmatmul.mubr.bf16.gmra.mrb[0].mxu0 %v4613
      %v4734 = vpop.f32.mrb[0].mxu0
      %v4735 = vadd.f32 0.0, %v4734
      %v4736 = vpop.f32.mrb[0].mxu0
      %v4737 = vpop.f32.mrb[0].mxu0
      %v4738 = vadd.f32 0.0, %v4737
      %v4739 = vpop.f32.mrb[0].mxu0
      %4740 = vmatprep.mubr.bf16.mxu0 0
      %4741 = vmatmul.mubr.bf16.gmra.mrb[0].mxu0 %v4614
      %v4742 = vpop.f32.mrb[0].mxu0
      %v4743 = vadd.f32 0.0, %v4742
      %v4744 = vpop.f32.mrb[0].mxu0
      %v4745 = vpop.f32.mrb[0].mxu0
      %v4746 = vadd.f32 0.0, %v4745
      %v4747 = vpop.f32.mrb[0].mxu0
      %4748 = vmatprep.mubr.bf16.mxu0 0
      %4749 = vmatmul.mubr.bf16.gmra.mrb[0].mxu0 %v4615
      %v4750 = vpop.f32.mrb[0].mxu0
      %v4751 = vadd.f32 0.0, %v4750
      %v4752 = vpop.f32.mrb[0].mxu0
      %v4753 = vpop.f32.mrb[0].mxu0
      %v4754 = vadd.f32 0.0, %v4753
      %v4755 = vpop.f32.mrb[0].mxu0
      %4756 = vmatprep.mubr.bf16.mxu0 0
      %4757 = vmatmul.mubr.bf16.gmra.mrb[0].mxu0 %v4616
      %v4758 = vpop.f32.mrb[0].mxu0
      %v4759 = vadd.f32 0.0, %v4758
      %v4760 = vpop.f32.mrb[0].mxu0
      %v4761 = vpop.f32.mrb[0].mxu0
      %v4762 = vadd.f32 0.0, %v4761
      %v4763 = vpop.f32.mrb[0].mxu0
      %4764 = vmatprep.mubr.bf16.mxu0 0
      %4765 = vmatmul.mubr.bf16.gmra.mrb[0].mxu0 %v4617
      %v4766 = vpop.f32.mrb[0].mxu0
      %v4767 = vadd.f32 0.0, %v4766
      %v4768 = vpop.f32.mrb[0].mxu0
      %v4769 = vpop.f32.mrb[0].mxu0
      %v4770 = vadd.f32 0.0, %v4769
      %v4771 = vpop.f32.mrb[0].mxu0
      %4772 = vmatprep.mubr.bf16.mxu0 0
      %4773 = vmatmul.mubr.bf16.gmra.mrb[0].mxu0 %v4618
      %v4774 = vpop.f32.mrb[0].mxu0
      %v4775 = vadd.f32 0.0, %v4774
      %v4776 = vpop.f32.mrb[0].mxu0
      %v4777 = vpop.f32.mrb[0].mxu0
      %v4778 = vadd.f32 0.0, %v4777
      %v4779 = vpop.f32.mrb[0].mxu0
      %4780 = vdwg.mxu0
      %v4781 = vadd.f32 %v4539, %v4719
      %v4782 = vadd.f32 %v4540, %v4722
      %v4783 = vadd.f32 %v4541, %v4727
      %v4784 = vadd.f32 %v4542, %v4730
      %v4785 = vadd.f32 %v4543, %v4735
      %v4786 = vadd.f32 %v4544, %v4738
      %v4787 = vadd.f32 %v4545, %v4743
      %v4788 = vadd.f32 %v4546, %v4746
      %v4789 = vadd.f32 %v4547, %v4751
      %v4790 = vadd.f32 %v4548, %v4754
      %v4791 = vadd.f32 %v4549, %v4759
      %v4792 = vadd.f32 %v4550, %v4762
      %v4793 = vadd.f32 %v4551, %v4767
      %v4794 = vadd.f32 %v4552, %v4770
      %v4795 = vadd.f32 %v4553, %v4775
      %v4796 = vadd.f32 %v4554, %v4778
      %v4797 = vld [vmem:[%s7] sm:$0x1]
      %v4799 = vlaneseq
      %v4800 = vshrl.u32 %v4799, 7
      %v4801 = vsub.s32 0, %v4800
      %v4802 = vrot.slane %v4797, %v4801
      %v4804 = vadd.f32 %v4781, %v4802
      %v4805 = vadd.f32 %v4782, %v4802
      %v4806 = vadd.f32 %v4783, %v4802
      %v4807 = vadd.f32 %v4784, %v4802
      %v4808 = vadd.f32 %v4785, %v4802
      %v4809 = vadd.f32 %v4786, %v4802
      %v4810 = vadd.f32 %v4787, %v4802
      %v4811 = vadd.f32 %v4788, %v4802
      %v4812 = vadd.f32 %v4789, %v4802
      %v4813 = vadd.f32 %v4790, %v4802
      %v4814 = vadd.f32 %v4791, %v4802
      %v4815 = vadd.f32 %v4792, %v4802
      %v4816 = vadd.f32 %v4793, %v4802
      %v4817 = vadd.f32 %v4794, %v4802
      %v4818 = vadd.f32 %v4795, %v4802
      %v4819 = vadd.f32 %v4796, %v4802
      %v4820 = vmax.f32 %v4804, 0.0
      %v4821 = vmax.f32 %v4805, 0.0
      %v4822 = vmax.f32 %v4806, 0.0
      %v4823 = vmax.f32 %v4807, 0.0
      %v4824 = vmax.f32 %v4808, 0.0
      %v4825 = vmax.f32 %v4809, 0.0
      %v4826 = vmax.f32 %v4810, 0.0
      %v4827 = vmax.f32 %v4811, 0.0
      %v4828 = vmax.f32 %v4812, 0.0
      %v4829 = vmax.f32 %v4813, 0.0
      %v4830 = vmax.f32 %v4814, 0.0
      %v4831 = vmax.f32 %v4815, 0.0
      %v4832 = vmax.f32 %v4816, 0.0
      %v4833 = vmax.f32 %v4817, 0.0
      %v4834 = vmax.f32 %v4818, 0.0
      %v4835 = vmax.f32 %v4819, 0.0
      %v4836 = vpack.c.bf16 %v2583, %v2582
      %v4837 = vpack.c.bf16 %v2585, %v2584
      %v4838 = vpack.c.bf16 %v2587, %v2586
      %v4839 = vpack.c.bf16 %v2589, %v2588
      %v4840 = vpack.c.bf16 %v2591, %v2590
      %v4841 = vpack.c.bf16 %v2593, %v2592
      %v4842 = vpack.c.bf16 %v2595, %v2594
      %v4843 = vpack.c.bf16 %v2597, %v2596
      %v4844 = vld [vmem:[%s4] sm:$0xf]
      %v4845 = vld [vmem:[%s4 + $0x4] sm:$0xf]
      %v4846 = vld [vmem:[%s4 + $0x8] sm:$0xf]
      %v4847 = vld [vmem:[%s4 + $0xc] sm:$0xf]
      %v4848 = vld [vmem:[%s4 + $0x10] sm:$0xf]
      %v4849 = vld [vmem:[%s4 + $0x14] sm:$0xf]
      %v4850 = vld [vmem:[%s4 + $0x18] sm:$0xf]
      %v4851 = vld [vmem:[%s4 + $0x1c] sm:$0xf]
      %v4852 = vld [vmem:[%s4 + $0x20] sm:$0xf]
      %v4853 = vld [vmem:[%s4 + $0x24] sm:$0xf]
      %v4854 = vld [vmem:[%s4 + $0x28] sm:$0xf]
      %v4855 = vld [vmem:[%s4 + $0x2c] sm:$0xf]
      %v4856 = vld [vmem:[%s4 + $0x30] sm:$0xf]
      %v4857 = vld [vmem:[%s4 + $0x34] sm:$0xf]
      %v4858 = vld [vmem:[%s4 + $0x38] sm:$0xf]
      %v4859 = vld [vmem:[%s4 + $0x3c] sm:$0xf]
      %v4860 = vpack.c.bf16 %v4821, %v4820
      %v4861 = vpack.c.bf16 %v4823, %v4822
      %v4862 = vpack.c.bf16 %v4825, %v4824
      %v4863 = vpack.c.bf16 %v4827, %v4826
      %v4864 = vpack.c.bf16 %v4829, %v4828
      %v4865 = vpack.c.bf16 %v4831, %v4830
      %v4866 = vpack.c.bf16 %v4833, %v4832
      %v4867 = vpack.c.bf16 %v4835, %v4834
      %v4868 = vld [vmem:[%s5] sm:$0xf]
      %v4869 = vld [vmem:[%s5 + $0x4] sm:$0xf]
      %v4870 = vld [vmem:[%s5 + $0x8] sm:$0xf]
      %v4871 = vld [vmem:[%s5 + $0xc] sm:$0xf]
      %v4872 = vld [vmem:[%s5 + $0x10] sm:$0xf]
      %v4873 = vld [vmem:[%s5 + $0x14] sm:$0xf]
      %v4874 = vld [vmem:[%s5 + $0x18] sm:$0xf]
      %v4875 = vld [vmem:[%s5 + $0x1c] sm:$0xf]
      %v4876 = vld [vmem:[%s5 + $0x20] sm:$0xf]
      %v4877 = vld [vmem:[%s5 + $0x24] sm:$0xf]
      %v4878 = vld [vmem:[%s5 + $0x28] sm:$0xf]
      %v4879 = vld [vmem:[%s5 + $0x2c] sm:$0xf]
      %v4880 = vld [vmem:[%s5 + $0x30] sm:$0xf]
      %v4881 = vld [vmem:[%s5 + $0x34] sm:$0xf]
      %v4882 = vld [vmem:[%s5 + $0x38] sm:$0xf]
      %v4883 = vld [vmem:[%s5 + $0x3c] sm:$0xf]
      %v4900 = vunpack.c.l.b16 %v4868
      %v4901 = vunpack.c.l.b16 %v4869
      %v4902 = vunpack.c.l.b16 %v4870
      %v4903 = vunpack.c.l.b16 %v4871
      %v4904 = vunpack.c.l.b16 %v4872
      %v4905 = vunpack.c.l.b16 %v4873
      %v4906 = vunpack.c.l.b16 %v4874
      %v4907 = vunpack.c.l.b16 %v4875
      %v4908 = vunpack.c.l.b16 %v4876
      %v4909 = vunpack.c.l.b16 %v4877
      %v4910 = vunpack.c.l.b16 %v4878
      %v4911 = vunpack.c.l.b16 %v4879
      %v4912 = vunpack.c.l.b16 %v4880
      %v4913 = vunpack.c.l.b16 %v4881
      %v4914 = vunpack.c.l.b16 %v4882
      %v4915 = vunpack.c.l.b16 %v4883
      %v4916 = vpack.c.b16 %v4901, %v4900
      %v4917 = vpack.c.b16 %v4903, %v4902
      %v4918 = vpack.c.b16 %v4905, %v4904
      %v4919 = vpack.c.b16 %v4907, %v4906
      %v4920 = vpack.c.b16 %v4909, %v4908
      %v4921 = vpack.c.b16 %v4911, %v4910
      %v4922 = vpack.c.b16 %v4913, %v4912
      %v4923 = vpack.c.b16 %v4915, %v4914
      %4932 = vmatprep.subr.bf16.mxu0 0
      %4933 = vmatpush1.bf16.msra.mxu0 %v4916
      %4934 = vmatprep.subr.bf16.mxu0 0
      %4935 = vmatpush1.bf16.msra.mxu0 %v4917
      %4936 = vmatprep.subr.bf16.mxu0 0
      %4937 = vmatpush1.bf16.msra.mxu0 %v4918
      %4938 = vmatprep.subr.bf16.mxu0 0
      %4939 = vmatpush1.bf16.msra.mxu0 %v4919
      %4940 = vmatprep.subr.bf16.mxu0 0
      %4941 = vmatpush1.bf16.msra.mxu0 %v4920
      %4942 = vmatprep.subr.bf16.mxu0 0
      %4943 = vmatpush1.bf16.msra.mxu0 %v4921
      %4944 = vmatprep.subr.bf16.mxu0 0
      %4945 = vmatpush1.bf16.msra.mxu0 %v4922
      %4946 = vmatprep.subr.bf16.mxu0 0
      %4947 = vmatpush1.bf16.msra.mxu0 %v4923
      %4948 = vmatprep.subr.bf16.mxu0 0
      %4949 = vmatpush1.bf16.msra.mxu0 0
      %4950 = vmatprep.subr.bf16.mxu0 0
      %4951 = vmatpush1.bf16.msra.mxu0 0
      %4952 = vmatprep.subr.bf16.mxu0 0
      %4953 = vmatpush1.bf16.msra.mxu0 0
      %4954 = vmatprep.subr.bf16.mxu0 0
      %4955 = vmatpush1.bf16.msra.mxu0 0
      %4956 = vmatprep.subr.bf16.mxu0 0
      %4957 = vmatpush1.bf16.msra.mxu0 0
      %4958 = vmatprep.subr.bf16.mxu0 0
      %4959 = vmatpush1.bf16.msra.mxu0 0
      %4960 = vmatprep.subr.bf16.mxu0 0
      %4961 = vmatpush1.bf16.msra.mxu0 0
      %4962 = vmatprep.subr.bf16.mxu0 0
      %4963 = vmatpush1.bf16.msra.mxu0 0
      %4964 = vmatprep.mubr.bf16.mxu0 0
      %4965 = vmatmul.mubr.bf16.gmra.mrb[0].mxu0 %v4860
      %v4966 = vpop.f32.mrb[0].mxu0
      %v4967 = vadd.f32 0.0, %v4966
      %v4968 = vpop.f32.mrb[0].mxu0
      %v4969 = vpop.f32.mrb[0].mxu0
      %v4970 = vadd.f32 0.0, %v4969
      %v4971 = vpop.f32.mrb[0].mxu0
      %4972 = vmatprep.mubr.bf16.mxu0 0
      %4973 = vmatmul.mubr.bf16.gmra.mrb[0].mxu0 %v4861
      %v4974 = vpop.f32.mrb[0].mxu0
      %v4975 = vadd.f32 0.0, %v4974
      %v4976 = vpop.f32.mrb[0].mxu0
      %v4977 = vpop.f32.mrb[0].mxu0
      %v4978 = vadd.f32 0.0, %v4977
      %v4979 = vpop.f32.mrb[0].mxu0
      %4980 = vmatprep.mubr.bf16.mxu0 0
      %4981 = vmatmul.mubr.bf16.gmra.mrb[0].mxu0 %v4862
      %v4982 = vpop.f32.mrb[0].mxu0
      %v4983 = vadd.f32 0.0, %v4982
      %v4984 = vpop.f32.mrb[0].mxu0
      %v4985 = vpop.f32.mrb[0].mxu0
      %v4986 = vadd.f32 0.0, %v4985
      %v4987 = vpop.f32.mrb[0].mxu0
      %4988 = vmatprep.mubr.bf16.mxu0 0
      %4989 = vmatmul.mubr.bf16.gmra.mrb[0].mxu0 %v4863
      %v4990 = vpop.f32.mrb[0].mxu0
      %v4991 = vadd.f32 0.0, %v4990
      %v4992 = vpop.f32.mrb[0].mxu0
      %v4993 = vpop.f32.mrb[0].mxu0
      %v4994 = vadd.f32 0.0, %v4993
      %v4995 = vpop.f32.mrb[0].mxu0
      %4996 = vmatprep.mubr.bf16.mxu0 0
      %4997 = vmatmul.mubr.bf16.gmra.mrb[0].mxu0 %v4864
      %v4998 = vpop.f32.mrb[0].mxu0
      %v4999 = vadd.f32 0.0, %v4998
      %v5000 = vpop.f32.mrb[0].mxu0
      %v5001 = vpop.f32.mrb[0].mxu0
      %v5002 = vadd.f32 0.0, %v5001
      %v5003 = vpop.f32.mrb[0].mxu0
      %5004 = vmatprep.mubr.bf16.mxu0 0
      %5005 = vmatmul.mubr.bf16.gmra.mrb[0].mxu0 %v4865
      %v5006 = vpop.f32.mrb[0].mxu0
      %v5007 = vadd.f32 0.0, %v5006
      %v5008 = vpop.f32.mrb[0].mxu0
      %v5009 = vpop.f32.mrb[0].mxu0
      %v5010 = vadd.f32 0.0, %v5009
      %v5011 = vpop.f32.mrb[0].mxu0
      %5012 = vmatprep.mubr.bf16.mxu0 0
      %5013 = vmatmul.mubr.bf16.gmra.mrb[0].mxu0 %v4866
      %v5014 = vpop.f32.mrb[0].mxu0
      %v5015 = vadd.f32 0.0, %v5014
      %v5016 = vpop.f32.mrb[0].mxu0
      %v5017 = vpop.f32.mrb[0].mxu0
      %v5018 = vadd.f32 0.0, %v5017
      %v5019 = vpop.f32.mrb[0].mxu0
      %5020 = vmatprep.mubr.bf16.mxu0 0
      %5021 = vmatmul.mubr.bf16.gmra.mrb[0].mxu0 %v4867
      %v5022 = vpop.f32.mrb[0].mxu0
      %v5023 = vadd.f32 0.0, %v5022
      %v5024 = vpop.f32.mrb[0].mxu0
      %v5025 = vpop.f32.mrb[0].mxu0
      %v5026 = vadd.f32 0.0, %v5025
      %v5027 = vpop.f32.mrb[0].mxu0
      %5028 = vdwg.mxu0
      %v5045 = vunpack.c.l.b16 %v4844
      %v5046 = vunpack.c.l.b16 %v4845
      %v5047 = vunpack.c.l.b16 %v4846
      %v5048 = vunpack.c.l.b16 %v4847
      %v5049 = vunpack.c.l.b16 %v4848
      %v5050 = vunpack.c.l.b16 %v4849
      %v5051 = vunpack.c.l.b16 %v4850
      %v5052 = vunpack.c.l.b16 %v4851
      %v5053 = vunpack.c.l.b16 %v4852
      %v5054 = vunpack.c.l.b16 %v4853
      %v5055 = vunpack.c.l.b16 %v4854
      %v5056 = vunpack.c.l.b16 %v4855
      %v5057 = vunpack.c.l.b16 %v4856
      %v5058 = vunpack.c.l.b16 %v4857
      %v5059 = vunpack.c.l.b16 %v4858
      %v5060 = vunpack.c.l.b16 %v4859
      %v5061 = vpack.c.b16 %v5046, %v5045
      %v5062 = vpack.c.b16 %v5048, %v5047
      %v5063 = vpack.c.b16 %v5050, %v5049
      %v5064 = vpack.c.b16 %v5052, %v5051
      %v5065 = vpack.c.b16 %v5054, %v5053
      %v5066 = vpack.c.b16 %v5056, %v5055
      %v5067 = vpack.c.b16 %v5058, %v5057
      %v5068 = vpack.c.b16 %v5060, %v5059
      %5077 = vmatprep.subr.bf16.mxu0 0
      %5078 = vmatpush1.bf16.msra.mxu0 %v5061
      %5079 = vmatprep.subr.bf16.mxu0 0
      %5080 = vmatpush1.bf16.msra.mxu0 %v5062
      %5081 = vmatprep.subr.bf16.mxu0 0
      %5082 = vmatpush1.bf16.msra.mxu0 %v5063
      %5083 = vmatprep.subr.bf16.mxu0 0
      %5084 = vmatpush1.bf16.msra.mxu0 %v5064
      %5085 = vmatprep.subr.bf16.mxu0 0
      %5086 = vmatpush1.bf16.msra.mxu0 %v5065
      %5087 = vmatprep.subr.bf16.mxu0 0
      %5088 = vmatpush1.bf16.msra.mxu0 %v5066
      %5089 = vmatprep.subr.bf16.mxu0 0
      %5090 = vmatpush1.bf16.msra.mxu0 %v5067
      %5091 = vmatprep.subr.bf16.mxu0 0
      %5092 = vmatpush1.bf16.msra.mxu0 %v5068
      %5093 = vmatprep.subr.bf16.mxu0 0
      %5094 = vmatpush1.bf16.msra.mxu0 0
      %5095 = vmatprep.subr.bf16.mxu0 0
      %5096 = vmatpush1.bf16.msra.mxu0 0
      %5097 = vmatprep.subr.bf16.mxu0 0
      %5098 = vmatpush1.bf16.msra.mxu0 0
      %5099 = vmatprep.subr.bf16.mxu0 0
      %5100 = vmatpush1.bf16.msra.mxu0 0
      %5101 = vmatprep.subr.bf16.mxu0 0
      %5102 = vmatpush1.bf16.msra.mxu0 0
      %5103 = vmatprep.subr.bf16.mxu0 0
      %5104 = vmatpush1.bf16.msra.mxu0 0
      %5105 = vmatprep.subr.bf16.mxu0 0
      %5106 = vmatpush1.bf16.msra.mxu0 0
      %5107 = vmatprep.subr.bf16.mxu0 0
      %5108 = vmatpush1.bf16.msra.mxu0 0
      %5109 = vmatprep.mubr.bf16.mxu0 0
      %5110 = vmatmul.mubr.bf16.gmra.mrb[0].mxu0 %v4836
      %v5111 = vpop.f32.mrb[0].mxu0
      %v5112 = vadd.f32 %v4967, %v5111
      %v5113 = vpop.f32.mrb[0].mxu0
      %v5114 = vpop.f32.mrb[0].mxu0
      %v5115 = vadd.f32 %v4970, %v5114
      %v5116 = vpop.f32.mrb[0].mxu0
      %5117 = vmatprep.mubr.bf16.mxu0 0
      %5118 = vmatmul.mubr.bf16.gmra.mrb[0].mxu0 %v4837
      %v5119 = vpop.f32.mrb[0].mxu0
      %v5120 = vadd.f32 %v4975, %v5119
      %v5121 = vpop.f32.mrb[0].mxu0
      %v5122 = vpop.f32.mrb[0].mxu0
      %v5123 = vadd.f32 %v4978, %v5122
      %v5124 = vpop.f32.mrb[0].mxu0
      %5125 = vmatprep.mubr.bf16.mxu0 0
      %5126 = vmatmul.mubr.bf16.gmra.mrb[0].mxu0 %v4838
      %v5127 = vpop.f32.mrb[0].mxu0
      %v5128 = vadd.f32 %v4983, %v5127
      %v5129 = vpop.f32.mrb[0].mxu0
      %v5130 = vpop.f32.mrb[0].mxu0
      %v5131 = vadd.f32 %v4986, %v5130
      %v5132 = vpop.f32.mrb[0].mxu0
      %5133 = vmatprep.mubr.bf16.mxu0 0
      %5134 = vmatmul.mubr.bf16.gmra.mrb[0].mxu0 %v4839
      %v5135 = vpop.f32.mrb[0].mxu0
      %v5136 = vadd.f32 %v4991, %v5135
      %v5137 = vpop.f32.mrb[0].mxu0
      %v5138 = vpop.f32.mrb[0].mxu0
      %v5139 = vadd.f32 %v4994, %v5138
      %v5140 = vpop.f32.mrb[0].mxu0
      %5141 = vmatprep.mubr.bf16.mxu0 0
      %5142 = vmatmul.mubr.bf16.gmra.mrb[0].mxu0 %v4840
      %v5143 = vpop.f32.mrb[0].mxu0
      %v5144 = vadd.f32 %v4999, %v5143
      %v5145 = vpop.f32.mrb[0].mxu0
      %v5146 = vpop.f32.mrb[0].mxu0
      %v5147 = vadd.f32 %v5002, %v5146
      %v5148 = vpop.f32.mrb[0].mxu0
      %5149 = vmatprep.mubr.bf16.mxu0 0
      %5150 = vmatmul.mubr.bf16.gmra.mrb[0].mxu0 %v4841
      %v5151 = vpop.f32.mrb[0].mxu0
      %v5152 = vadd.f32 %v5007, %v5151
      %v5153 = vpop.f32.mrb[0].mxu0
      %v5154 = vpop.f32.mrb[0].mxu0
      %v5155 = vadd.f32 %v5010, %v5154
      %v5156 = vpop.f32.mrb[0].mxu0
      %5157 = vmatprep.mubr.bf16.mxu0 0
      %5158 = vmatmul.mubr.bf16.gmra.mrb[0].mxu0 %v4842
      %v5159 = vpop.f32.mrb[0].mxu0
      %v5160 = vadd.f32 %v5015, %v5159
      %v5161 = vpop.f32.mrb[0].mxu0
      %v5162 = vpop.f32.mrb[0].mxu0
      %v5163 = vadd.f32 %v5018, %v5162
      %v5164 = vpop.f32.mrb[0].mxu0
      %5165 = vmatprep.mubr.bf16.mxu0 0
      %5166 = vmatmul.mubr.bf16.gmra.mrb[0].mxu0 %v4843
      %v5167 = vpop.f32.mrb[0].mxu0
      %v5168 = vadd.f32 %v5023, %v5167
      %v5169 = vpop.f32.mrb[0].mxu0
      %v5170 = vpop.f32.mrb[0].mxu0
      %v5171 = vadd.f32 %v5026, %v5170
      %v5172 = vpop.f32.mrb[0].mxu0
      %5173 = vdwg.mxu0
      %v5174 = vmax.f32 %v5112, 0.0
      %v5175 = vmax.f32 %v5115, 0.0
      %v5176 = vmax.f32 %v5120, 0.0
      %v5177 = vmax.f32 %v5123, 0.0
      %v5178 = vmax.f32 %v5128, 0.0
      %v5179 = vmax.f32 %v5131, 0.0
      %v5180 = vmax.f32 %v5136, 0.0
      %v5181 = vmax.f32 %v5139, 0.0
      %v5182 = vmax.f32 %v5144, 0.0
      %v5183 = vmax.f32 %v5147, 0.0
      %v5184 = vmax.f32 %v5152, 0.0
      %v5185 = vmax.f32 %v5155, 0.0
      %v5186 = vmax.f32 %v5160, 0.0
      %v5187 = vmax.f32 %v5163, 0.0
      %v5188 = vmax.f32 %v5168, 0.0
      %v5189 = vmax.f32 %v5171, 0.0
      %5190 = vst [vmem:[%s349] sm:$0xff] %v5174
      %5191 = vst [vmem:[%s349 + $0x8] sm:$0xff] %v5175
      %5192 = vst [vmem:[%s349 + $0x10] sm:$0xff] %v5176
      %5193 = vst [vmem:[%s349 + $0x18] sm:$0xff] %v5177
      %5194 = vst [vmem:[%s349 + $0x20] sm:$0xff] %v5178
      %5195 = vst [vmem:[%s349 + $0x28] sm:$0xff] %v5179
      %5196 = vst [vmem:[%s349 + $0x30] sm:$0xff] %v5180
      %5197 = vst [vmem:[%s349 + $0x38] sm:$0xff] %v5181
      %5198 = vst [vmem:[%s349 + $0x40] sm:$0xff] %v5182
      %5199 = vst [vmem:[%s349 + $0x48] sm:$0xff] %v5183
      %5200 = vst [vmem:[%s349 + $0x50] sm:$0xff] %v5184
      %5201 = vst [vmem:[%s349 + $0x58] sm:$0xff] %v5185
      %5202 = vst [vmem:[%s349 + $0x60] sm:$0xff] %v5186
      %5203 = vst [vmem:[%s349 + $0x68] sm:$0xff] %v5187
      %5204 = vst [vmem:[%s349 + $0x70] sm:$0xff] %v5188
      %5205 = vst [vmem:[%s349 + $0x78] sm:$0xff] %v5189
      %s5206 = smul.u32 8, %s24
      %p5207 = scmp.lt.s32.totalorder %s23, 1
      %s5208 = scalar_select %p5207, %s23, 1
      %p5209 = scmp.lt.s32.totalorder %s5206, 15
      %s5210 = scalar_select %p5209, %s5206, 15
      %s5211 = smul.addr %s5210, 2
      %s5212 = smul.addr %s5208, 32
      %s5213 = sadd.s32 %s5211, %s5212
      %s5214 = smul.addr %s5213, 8
      %s5215 = scalar_lea.vmem %s8, %s5214
      // Predicated region
      $region53: #{feature_fused_concat.1} parent=51 // pred_check
        %p5216 = pneg %p229
      $region54: #{feature_fused_concat.1} parent=51 // pred_check_branch
        %5218 = sbr.rel (%p5216) target = $region56
      $region55: #{feature_fused_concat.1} parent=51 // pred_region
        %s5219 = smul.u32 8, %s24
      $region56: #{feature_fused_concat.1} parent=51 // pred_fallthru
        _
    $region52: #{feature_fused_concat.1} parent=5 // pred_fallthru
      _
    %p5220 = scmp.le.s32.totalorder 2, %s14
    // Predicated region
    $region57: #{feature_fused_concat.1} parent=5 // pred_check
      %p5221 = pneg %p5220
    $region58: #{feature_fused_concat.1} parent=5 // pred_check_branch
      %5223 = sbr.rel (%p5221) target = $region60
    $region59: #{feature_fused_concat.1} parent=5 // pred_region
      %s5224 = ssub.s32 %s14, 2
      // Predicated region
      $region61: #{feature_fused_concat.1} parent=59 // pred_check
        %p5225 = pneg %p235
      $region62: #{feature_fused_concat.1} parent=59 // pred_check_branch
        %5227 = sbr.rel (%p5225) target = $region64
      $region63: #{feature_fused_concat.1} parent=59 // pred_region
        %s5228 = smul.u32 8, %s26
        %p5229 = scmp.lt.s32.totalorder %s25, 1
        %s5230 = scalar_select %p5229, %s25, 1
        %p5231 = scmp.lt.s32.totalorder %s5228, 15
        %s5232 = scalar_select %p5231, %s5228, 15
        %s5233 = smul.addr %s5232, 2
        %s5234 = smul.addr %s5230, 32
        %s5235 = sadd.s32 %s5233, %s5234
        %s5236 = smul.addr %s5235, 8
        %s5237 = scalar_lea.vmem %s8, %s5236
      $region64: #{feature_fused_concat.1} parent=59 // pred_fallthru
        _
    $region60: #{feature_fused_concat.1} parent=5 // pred_fallthru
      _
  $region6: #{feature_fused_concat.1} parent=0 // loop_footer
    %s18 = sadd.s32 1, %s14
  $region7: #{feature_fused_concat.1} parent=0 // loop_footer_branch
    %13 = sbr.rel target = $region3
  $region8: #{feature_fused_concat.1} parent=0 // loop_exit
    _

</llo_original>
